<compile_context>
chip_gen: v6e
topology: v6e:2x2x1
jax: 0.10.0
libtpu: 0.0.40
codegen_flags: <defaults>
</compile_context>

<pallas_src>
import functools

import jax
import jax.numpy as jnp
from jax import lax
from jax.experimental import pallas as pl
from jax.experimental.pallas import tpu as pltpu

F32 = jnp.float32
BF16 = jnp.bfloat16
LANE = 128


def _round_up(v, m):
    return ((v + m - 1) // m) * m


def _vmem():
    return pl.BlockSpec(memory_space=pltpu.MemorySpace.VMEM)


def _smem():
    return pl.BlockSpec(memory_space=pltpu.MemorySpace.SMEM)


def _vmem_limit_bytes():
    # v5e/v6e: 128 MiB physical -> ~96-100 MiB scoped; v7x: 64 MiB -> ~48 MiB.
    try:
        cap = pltpu.get_tpu_info().vmem_capacity_bytes
    except Exception:
        return 32 * 1024 * 1024          # conservative, valid on every generation
    return int(min(cap * 3 // 4, 100 * 1024 * 1024))


def _pad2(a, rows, cols, fill=0.0):
    r, c = a.shape
    return jnp.pad(a, ((0, rows - r), (0, cols - c)), constant_values=fill)


# ----------------------------------------------------------------------------
# Kernel A: fused DMPNN graph pass
#   ea0   = (lin_u(x)[ei0] + lin_v(x)[ei1] + lin_edge(ea)) / 3
#   msg_1 = A_lg @ ea0
#   for t in 1..n_iter:
#       out_t  = ea0 + msg_t
#       agg_t  = A_lg @ out_t                 (== msg_{t+1}, reused)
#       conv   = sum_f(out*wroot + agg*wrel) + b        GraphConv(F->1), VPU
#       scores = segment_softmax(conv, edge_batch)      per-segment max
#       gout_t = tanh((Mb @ (out*scores)) @ Wg + bg)
#       online-softmax update of iteration attention with logit
#           s_t = sum_f gout_t * a[:,t] + a_bias[t]
#   x_new = x + S @ (sum_t out_t * softmax_t(s)[batch])
# ----------------------------------------------------------------------------
def dmpnn_graph_kernel(bconv_ref, abias_ref, x_ref, ea_ref, wu_ref, wv_ref,
                       we_ref, g0_ref, g1_ref, alg_ref, mb_ref, mbt_ref,
                       wroot_ref, wrel_ref, wg_ref, bg_ref, aT_ref, scat_ref,
                       xout_ref, *, n_iter):
    x = x_ref[...]

    # bf16 storage (exact 0/1/count values, half the DMA bytes); compute in f32
    # so message passing matches the f32 PyTorch reference.
    # TODO(synk): at realistic E cast the message operand to bf16 instead to hit
    # the full-rate bf16 MXU path (documented small precision trade).
    g0 = g0_ref[...].astype(F32)          # [E, N]
    g1 = g1_ref[...].astype(F32)          # [E, N]
    alg = alg_ref[...].astype(F32)        # [E, E] line-graph adjacency (dst, src)
    scat = scat_ref[...].astype(F32)      # [N, E] scatter to destination nodes
    mb = mb_ref[...]                      # [B, E] f32
    mbt = mbt_ref[...]                    # [E, B] f32
    mbt_mask = mbt > 0.5                  # [E, B] segment membership mask

    # ---- initial edge features (gathers as one-hot matmuls) ----
    xu = jnp.dot(x, wu_ref[...], preferred_element_type=F32)
    xv = jnp.dot(x, wv_ref[...], preferred_element_type=F32)
    euv = jnp.dot(ea_ref[...], we_ref[...], preferred_element_type=F32)
    ea0 = (jnp.dot(g0, xu, preferred_element_type=F32)
           + jnp.dot(g1, xv, preferred_element_type=F32)
           + euv) * (1.0 / 3.0)

    wroot = wroot_ref[...]                # [1, Fp]
    wrel = wrel_ref[...]                  # [1, Fp]
    wg = wg_ref[...]                      # [Fp, Fp]
    bg = bg_ref[...]                      # [1, Fp]
    aT = aT_ref[...]                      # [T, Fp]
    bconv = bconv_ref[0]                  # scalar (SMEM)

    B = mb.shape[0]
    E, Fp = ea0.shape
    NEG = jnp.float32(-1e30)

    # Online softmax state over the iteration axis (flash-style).
    m_b = jnp.full((B, 1), NEG, F32)      # running max of iteration logits
    den_b = jnp.zeros((B, 1), F32)        # running sum of exp(logit - max)
    acc = jnp.zeros((E, Fp), F32)         # running weighted sum of out_t

    # agg_t == msg_{t+1}: one [E,E]@[E,Fp] matmul per iteration (+1 up front).
    msg = jnp.dot(alg, ea0, preferred_element_type=F32)

    # n_iter is a small static hyper-parameter -> fully unrolled.
    for t in range(n_iter):
        out = ea0 + msg                                               # [E, Fp]
        agg = jnp.dot(alg, out, preferred_element_type=F32)           # reused as next msg

        # GraphConv(F -> 1) on VPU/XLU; MXU stays free for the alg matmuls.
        conv = jnp.sum(out * wroot + agg * wrel, axis=-1, keepdims=True) + bconv

        # Segment softmax over each graph's edges with a true per-segment max.
        masked = jnp.where(mbt_mask, conv, NEG)                       # [E, B]
        seg_max = jnp.max(masked, axis=0, keepdims=True)              # [1, B]
        seg_max_e = jnp.sum(mbt * seg_max, axis=-1, keepdims=True)    # [E, 1] pick
        ex = jnp.exp(conv - seg_max_e)                                # [E, 1]
        den_seg = jnp.dot(mb, ex, preferred_element_type=F32)         # [B, 1]
        den_e = jnp.dot(mbt, den_seg, preferred_element_type=F32)     # [E, 1]
        scores = ex * pl.reciprocal(den_e, approx=True)               # EUP divide

        # global_add_pool + lin_gout + tanh.
        gx = jnp.dot(mb, out * scores, preferred_element_type=F32)    # [B, Fp]
        gout = jnp.tanh(jnp.dot(gx, wg, preferred_element_type=F32) + bg)

        # Online iteration-attention softmax update (weighted sum kept in acc).
        s_t = (jnp.sum(gout * aT[t:t + 1, :], axis=-1, keepdims=True)
               + abias_ref[t])                                        # [B, 1]
        m_new = jnp.maximum(m_b, s_t)
        alpha = jnp.exp(m_b - m_new)                                  # [B, 1]
        p = jnp.exp(s_t - m_new)                                      # [B, 1]
        den_b = den_b * alpha + p
        alpha_e = jnp.dot(mbt, alpha, preferred_element_type=F32)     # [E, 1]
        p_e = jnp.dot(mbt, p, preferred_element_type=F32)             # [E, 1]
        acc = acc * alpha_e + out * p_e
        m_b = m_new
        msg = agg

    inv_den_e = jnp.dot(mbt, pl.reciprocal(den_b, approx=True),
                        preferred_element_type=F32)                   # [E, 1]
    acc = acc * inv_den_e

    # Scatter-add edge features back to destination nodes + residual.
    xout_ref[...] = x + jnp.dot(scat, acc, preferred_element_type=F32)


def dmpnn_graph(params, x, ea, g0, g1, alg, mb, mbt, scat, n_iter):
    N, Fp = x.shape
    kernel = functools.partial(dmpnn_graph_kernel, n_iter=n_iter)
    return pl.pallas_call(
        kernel,
        out_shape=jax.ShapeDtypeStruct((N, Fp), F32),
        in_specs=[_smem(), _smem()] + [_vmem()] * 16,
        out_specs=_vmem(),
        input_output_aliases={2: 0},      # x -> x_new (read fully before store)
        compiler_params=pltpu.CompilerParams(
            vmem_limit_bytes=_vmem_limit_bytes()),
    )(params["conv_b"], params["a_bias"], x, ea,
      params["wu"], params["wv"], params["we"], g0, g1, alg, mb, mbt,
      params["conv_wroot"], params["conv_wrel"], params["wg"], params["bg"],
      params["a"], scat)


# ----------------------------------------------------------------------------
# Kernel B: fused LinearBlock
#   h1  = Lin1(BN1(x))
#   h   = (Lin3(PReLU(BN3(Lin2(PReLU(BN2(h1)))))) + h1) / 2
#   h   = (Lin4(PReLU(BN4(h))) + h) / 2
#   out = Lin5(PReLU(BN5(h)))
# BatchNorm1d uses batch statistics (PyTorch training mode).
# TODO(synk): for large N, row-tile with a two-pass BN (stats pass + apply pass)
# so per-tile statistics do not silently change the semantics.
# ----------------------------------------------------------------------------
def linear_block_kernel(alphas_ref, x_ref,
                        g1_ref, b1_ref, w1_ref, c1_ref,
                        g2_ref, b2_ref, w2_ref, c2_ref,
                        g3_ref, b3_ref, w3_ref, c3_ref,
                        g4_ref, b4_ref, w4_ref, c4_ref,
                        g5_ref, b5_ref, w5_ref, c5_ref,
                        o_ref):
    def bn(h, g_ref, b_ref):
        mean = jnp.mean(h, axis=0, keepdims=True)
        var = jnp.mean((h - mean) ** 2, axis=0, keepdims=True)   # biased (BN train)
        return (h - mean) * lax.rsqrt(var + 1e-5) * g_ref[...] + b_ref[...]

    def lin(h, w_ref, c_ref):
        return jnp.dot(h, w_ref[...], preferred_element_type=F32) + c_ref[...]

    def prelu(h, i):
        a = alphas_ref[i]                     # scalar from SMEM
        return jnp.where(h >= 0, h, a * h)

    x = x_ref[...]
    h1 = lin(bn(x, g1_ref, b1_ref), w1_ref, c1_ref)                 # lin1 (no PReLU)
    h2 = lin(prelu(bn(h1, g2_ref, b2_ref), 0), w2_ref, c2_ref)      # lin2
    h3 = lin(prelu(bn(h2, g3_ref, b3_ref), 1), w3_ref, c3_ref)      # lin3
    h = (h3 + h1) * 0.5
    h4 = lin(prelu(bn(h, g4_ref, b4_ref), 2), w4_ref, c4_ref)       # lin4
    h = (h4 + h) * 0.5
    o_ref[...] = lin(prelu(bn(h, g5_ref, b5_ref), 3), w5_ref, c5_ref)  # lin5


def linear_block(p, x):
    N, Fp = x.shape
    return pl.pallas_call(
        linear_block_kernel,
        out_shape=jax.ShapeDtypeStruct((N, Fp), F32),
        in_specs=[_smem()] + [_vmem()] * 21,
        out_specs=_vmem(),
        input_output_aliases={1: 0},      # x -> out
        compiler_params=pltpu.CompilerParams(
            vmem_limit_bytes=_vmem_limit_bytes()),
    )(p["alphas"], x,
      p["bn1_g"], p["bn1_b"], p["w1"], p["b1"],
      p["bn2_g"], p["bn2_b"], p["w2"], p["b2"],
      p["bn3_g"], p["bn3_b"], p["w3"], p["b3"],
      p["bn4_g"], p["bn4_b"], p["w4"], p["b4"],
      p["bn5_g"], p["bn5_b"], p["w5"], p["b5"])


# ----------------------------------------------------------------------------
# Parameters (deterministic synthetic init, logical/unpadded sizes)
# ----------------------------------------------------------------------------
def init_params(key, n_feats, n_iter):
    F = n_feats
    snd = 6 * F
    kit = iter(jax.random.split(key, 16))

    def w(shape, scale=0.2):
        return scale * jax.random.normal(next(kit), shape, dtype=F32)

    glorot_scale = (6.0 / (F + n_iter)) ** 0.5
    lb = {
        "alphas": jnp.full((4,), 0.25, F32),            # PReLU alphas (lin2..lin5)
        "bn1_g": jnp.ones((1, F), F32), "bn1_b": jnp.zeros((1, F), F32),
        "w1": w((F, snd), 0.1), "b1": jnp.zeros((1, snd), F32),
        "bn2_g": jnp.ones((1, snd), F32), "bn2_b": jnp.zeros((1, snd), F32),
        "w2": w((snd, snd), 0.05), "b2": jnp.zeros((1, snd), F32),
        "bn3_g": jnp.ones((1, snd), F32), "bn3_b": jnp.zeros((1, snd), F32),
        "w3": w((snd, snd), 0.05), "b3": jnp.zeros((1, snd), F32),
        "bn4_g": jnp.ones((1, snd), F32), "bn4_b": jnp.zeros((1, snd), F32),
        "w4": w((snd, snd), 0.05), "b4": jnp.zeros((1, snd), F32),
        "bn5_g": jnp.ones((1, snd), F32), "bn5_b": jnp.zeros((1, snd), F32),
        "w5": w((snd, F), 0.05), "b5": jnp.zeros((1, F), F32),
    }
    return {
        "wu": w((F, F)), "wv": w((F, F)), "we": w((F, F)),
        "conv_wroot": w((1, F)), "conv_wrel": w((1, F)),
        "conv_b": jnp.zeros((1,), F32),                  # SMEM scalar
        "wg": w((F, F)), "bg": jnp.zeros((1, F), F32),
        "a": w((n_iter, F), glorot_scale),               # stored as [T, F]
        "a_bias": jnp.zeros((n_iter,), F32),             # SMEM
        "lin_block": lb,
    }


# ----------------------------------------------------------------------------
# Full forward (host-side glue: lane-dense padding + dense graph matrices)
# ----------------------------------------------------------------------------
def dmpnn_forward(params, x, edge_attr, edge_index, lg_edge_index, edge_batch,
                  num_graphs, n_iter):
    N, F = x.shape
    E = edge_attr.shape[0]
    B = num_graphs
    Fp = _round_up(F, LANE)
    snd = 6 * F
    Sp = _round_up(snd, LANE)

    # ---- lane-dense zero padding (exact: padded columns stay identically 0) --
    xp = _pad2(x.astype(F32), N, Fp)
    eap = _pad2(edge_attr.astype(F32), E, Fp)

    p = params
    gp = {
        "wu": _pad2(p["wu"], Fp, Fp), "wv": _pad2(p["wv"], Fp, Fp),
        "we": _pad2(p["we"], Fp, Fp),
        "conv_wroot": _pad2(p["conv_wroot"], 1, Fp),
        "conv_wrel": _pad2(p["conv_wrel"], 1, Fp),
        "conv_b": p["conv_b"],
        "wg": _pad2(p["wg"], Fp, Fp), "bg": _pad2(p["bg"], 1, Fp),
        "a": _pad2(p["a"], n_iter, Fp), "a_bias": p["a_bias"],
    }
    lb = p["lin_block"]
    lbp = {
        "alphas": lb["alphas"],
        "bn1_g": _pad2(lb["bn1_g"], 1, Fp, 1.0), "bn1_b": _pad2(lb["bn1_b"], 1, Fp),
        "w1": _pad2(lb["w1"], Fp, Sp), "b1": _pad2(lb["b1"], 1, Sp),
        "bn2_g": _pad2(lb["bn2_g"], 1, Sp, 1.0), "bn2_b": _pad2(lb["bn2_b"], 1, Sp),
        "w2": _pad2(lb["w2"], Sp, Sp), "b2": _pad2(lb["b2"], 1, Sp),
        "bn3_g": _pad2(lb["bn3_g"], 1, Sp, 1.0), "bn3_b": _pad2(lb["bn3_b"], 1, Sp),
        "w3": _pad2(lb["w3"], Sp, Sp), "b3": _pad2(lb["b3"], 1, Sp),
        "bn4_g": _pad2(lb["bn4_g"], 1, Sp, 1.0), "bn4_b": _pad2(lb["bn4_b"], 1, Sp),
        "w4": _pad2(lb["w4"], Sp, Sp), "b4": _pad2(lb["b4"], 1, Sp),
        "bn5_g": _pad2(lb["bn5_g"], 1, Sp, 1.0), "bn5_b": _pad2(lb["bn5_b"], 1, Sp),
        "w5": _pad2(lb["w5"], Sp, Fp), "b5": _pad2(lb["b5"], 1, Fp),
    }

    # ---- dense helper matrices (exact 0/1/count values; big ones in bf16) ----
    g0 = jax.nn.one_hot(edge_index[0], N, dtype=BF16)                  # [E, N]
    g1 = jax.nn.one_hot(edge_index[1], N, dtype=BF16)                  # [E, N]
    alg = (jnp.zeros((E, E), F32)
           .at[lg_edge_index[1], lg_edge_index[0]].add(1.0)).astype(BF16)  # [E, E]
    mbt = jax.nn.one_hot(edge_batch, B, dtype=F32)                     # [E, B]
    mb = mbt.T                                                         # [B, E]
    scat = (jnp.zeros((N, E), F32)
            .at[edge_index[1], jnp.arange(E)].add(1.0)).astype(BF16)   # [N, E]

    x_new = dmpnn_graph(gp, xp, eap, g0, g1, alg, mb, mbt, scat, n_iter)
    out = linear_block(lbp, x_new)
    return out[:, :F]


# ----------------------------------------------------------------------------
# Deterministic small example graph: 2 graphs of 8 nodes each, directed
# bidirectional ring per graph (32 directed edges total), line graph built
# from consecutive non-backtracking directed edges.
# ----------------------------------------------------------------------------
def build_example_graph():
    edges = []
    for base in (0, 8):
        for i in range(8):
            edges.append((base + i, base + (i + 1) % 8))
        for i in range(8):
            edges.append((base + (i + 1) % 8, base + i))
    lg_src, lg_dst = [], []
    for a, (u, v) in enumerate(edges):
        for c, (src, w) in enumerate(edges):
            if src == v and w != u:
                lg_src.append(a)
                lg_dst.append(c)
    edge_index = jnp.array(edges, dtype=jnp.int32).T                  # [2, E]
    lg_edge_index = jnp.array([lg_src, lg_dst], dtype=jnp.int32)      # [2, E_lg]
    edge_batch = jnp.array([0] * 16 + [1] * 16, dtype=jnp.int32)      # [E]
    return edge_index, lg_edge_index, edge_batch


if __name__ == "__main__":
    n_feats = 32
    n_iter = 3
    num_nodes = 16
    num_graphs = 2

    edge_index, lg_edge_index, edge_batch = build_example_graph()
    num_edges = edge_index.shape[1]

    key = jax.random.PRNGKey(0)
    kx, kea, kp = jax.random.split(key, 3)
    x = jax.random.normal(kx, (num_nodes, n_feats), dtype=F32)
    edge_attr = jax.random.normal(kea, (num_edges, n_feats), dtype=F32)
    params = init_params(kp, n_feats, n_iter)

    fwd = jax.jit(dmpnn_forward, static_argnums=(6, 7))
    out = fwd(params, x, edge_attr, edge_index, lg_edge_index, edge_batch,
              num_graphs, n_iter)
    out = jax.block_until_ready(out)
    assert out.shape == (num_nodes, n_feats)
    assert bool(jnp.isfinite(out).all())
    print("KERNEL_OK")
</pallas_src>

<mosaic_0001>
module attributes {stable_mosaic.version = 11 : i64} {
  func.func private @main(%arg0: i32) attributes {dimension_semantics = [#tpu.dimension_semantics<core_parallel>], iteration_bounds = array<i64: 2>, tpu.core_type = #tpu.core_type<sc_scalar_subcore>, window_params = []} {
    return
  }
}

module attributes {stable_mosaic.version = 11 : i64} {
  func.func private @main(%arg0: i32) attributes {dimension_semantics = [#tpu.dimension_semantics<core_parallel>], iteration_bounds = array<i64: 2>, tpu.core_type = #tpu.core_type<sc_scalar_subcore>, window_params = []} {
    return
  }
}

module attributes {stable_mosaic.version = 11 : i64} {
  func.func @linear_block_kernel(%arg0: memref<4xf32, #tpu.memory_space<smem>>, %arg1: memref<16x128xf32, #tpu.memory_space<vmem>>, %arg2: memref<1x128xf32, #tpu.memory_space<vmem>>, %arg3: memref<1x128xf32, #tpu.memory_space<vmem>>, %arg4: memref<128x256xf32, #tpu.memory_space<vmem>>, %arg5: memref<1x256xf32, #tpu.memory_space<vmem>>, %arg6: memref<1x256xf32, #tpu.memory_space<vmem>>, %arg7: memref<1x256xf32, #tpu.memory_space<vmem>>, %arg8: memref<256x256xf32, #tpu.memory_space<vmem>>, %arg9: memref<1x256xf32, #tpu.memory_space<vmem>>, %arg10: memref<1x256xf32, #tpu.memory_space<vmem>>, %arg11: memref<1x256xf32, #tpu.memory_space<vmem>>, %arg12: memref<256x256xf32, #tpu.memory_space<vmem>>, %arg13: memref<1x256xf32, #tpu.memory_space<vmem>>, %arg14: memref<1x256xf32, #tpu.memory_space<vmem>>, %arg15: memref<1x256xf32, #tpu.memory_space<vmem>>, %arg16: memref<256x256xf32, #tpu.memory_space<vmem>>, %arg17: memref<1x256xf32, #tpu.memory_space<vmem>>, %arg18: memref<1x256xf32, #tpu.memory_space<vmem>>, %arg19: memref<1x256xf32, #tpu.memory_space<vmem>>, %arg20: memref<256x128xf32, #tpu.memory_space<vmem>>, %arg21: memref<1x128xf32, #tpu.memory_space<vmem>>, %arg22: memref<16x128xf32, #tpu.memory_space<vmem>>) attributes {dimension_semantics = [], scalar_prefetch = 0 : i64, scratch_operands = 0 : i64, tpu.core_type = #tpu.core_type<tc>} {
    %c0 = arith.constant 0 : index
    %c0_0 = arith.constant 0 : index
    %0 = vector.load %arg1[%c0, %c0_0] : memref<16x128xf32, #tpu.memory_space<vmem>>, vector<16x128xf32>
    %cst = arith.constant dense<0.000000e+00> : vector<128xf32>
    %1 = vector.multi_reduction <add>, %0, %cst [0] : vector<16x128xf32> to vector<128xf32>
    %2 = vector.shape_cast %1 : vector<128xf32> to vector<1x128xf32>
    %cst_1 = arith.constant 1.600000e+01 : f32
    %3 = vector.broadcast %cst_1 : f32 to vector<1x128xf32>
    %4 = arith.divf %2, %3 : vector<1x128xf32>
    %5 = vector.broadcast %4 : vector<1x128xf32> to vector<16x128xf32>
    %6 = arith.subf %0, %5 : vector<16x128xf32>
    %7 = arith.mulf %6, %6 : vector<16x128xf32>
    %cst_2 = arith.constant dense<0.000000e+00> : vector<128xf32>
    %8 = vector.multi_reduction <add>, %7, %cst_2 [0] : vector<16x128xf32> to vector<128xf32>
    %9 = vector.shape_cast %8 : vector<128xf32> to vector<1x128xf32>
    %cst_3 = arith.constant 1.600000e+01 : f32
    %10 = vector.broadcast %cst_3 : f32 to vector<1x128xf32>
    %11 = arith.divf %9, %10 : vector<1x128xf32>
    %12 = vector.broadcast %4 : vector<1x128xf32> to vector<16x128xf32>
    %13 = arith.subf %0, %12 : vector<16x128xf32>
    %cst_4 = arith.constant 9.99999974E-6 : f32
    %14 = vector.broadcast %cst_4 : f32 to vector<1x128xf32>
    %15 = arith.addf %11, %14 : vector<1x128xf32>
    %16 = math.rsqrt %15 : vector<1x128xf32>
    %17 = vector.broadcast %16 : vector<1x128xf32> to vector<16x128xf32>
    %18 = arith.mulf %13, %17 : vector<16x128xf32>
    %c0_5 = arith.constant 0 : index
    %c0_6 = arith.constant 0 : index
    %19 = vector.load %arg2[%c0_5, %c0_6] : memref<1x128xf32, #tpu.memory_space<vmem>>, vector<1x128xf32>
    %20 = vector.broadcast %19 : vector<1x128xf32> to vector<16x128xf32>
    %21 = arith.mulf %18, %20 : vector<16x128xf32>
    %c0_7 = arith.constant 0 : index
    %c0_8 = arith.constant 0 : index
    %22 = vector.load %arg3[%c0_7, %c0_8] : memref<1x128xf32, #tpu.memory_space<vmem>>, vector<1x128xf32>
    %23 = vector.broadcast %22 : vector<1x128xf32> to vector<16x128xf32>
    %24 = arith.addf %21, %23 : vector<16x128xf32>
    %c0_9 = arith.constant 0 : index
    %c0_10 = arith.constant 0 : index
    %25 = vector.load %arg4[%c0_9, %c0_10] : memref<128x256xf32, #tpu.memory_space<vmem>>, vector<128x256xf32>
    %cst_11 = arith.constant dense<0.000000e+00> : vector<16x256xf32>
    %26 = tpu.matmul %24, %25, %cst_11 {dimension_numbers = #tpu.dot_dimension_numbers<[1], [0], [0], [1], [0, 0, 1, 1], [], []>} : vector<16x128xf32>, vector<128x256xf32>, vector<16x256xf32> -> vector<16x256xf32>
    %c0_12 = arith.constant 0 : index
    %c0_13 = arith.constant 0 : index
    %27 = vector.load %arg5[%c0_12, %c0_13] : memref<1x256xf32, #tpu.memory_space<vmem>>, vector<1x256xf32>
    %28 = vector.broadcast %27 : vector<1x256xf32> to vector<16x256xf32>
    %29 = arith.addf %26, %28 : vector<16x256xf32>
    %cst_14 = arith.constant dense<0.000000e+00> : vector<256xf32>
    %30 = vector.multi_reduction <add>, %29, %cst_14 [0] : vector<16x256xf32> to vector<256xf32>
    %31 = vector.shape_cast %30 : vector<256xf32> to vector<1x256xf32>
    %cst_15 = arith.constant 1.600000e+01 : f32
    %32 = vector.broadcast %cst_15 : f32 to vector<1x256xf32>
    %33 = arith.divf %31, %32 : vector<1x256xf32>
    %34 = vector.broadcast %33 : vector<1x256xf32> to vector<16x256xf32>
    %35 = arith.subf %29, %34 : vector<16x256xf32>
    %36 = arith.mulf %35, %35 : vector<16x256xf32>
    %cst_16 = arith.constant dense<0.000000e+00> : vector<256xf32>
    %37 = vector.multi_reduction <add>, %36, %cst_16 [0] : vector<16x256xf32> to vector<256xf32>
    %38 = vector.shape_cast %37 : vector<256xf32> to vector<1x256xf32>
    %cst_17 = arith.constant 1.600000e+01 : f32
    %39 = vector.broadcast %cst_17 : f32 to vector<1x256xf32>
    %40 = arith.divf %38, %39 : vector<1x256xf32>
    %41 = vector.broadcast %33 : vector<1x256xf32> to vector<16x256xf32>
    %42 = arith.subf %29, %41 : vector<16x256xf32>
    %cst_18 = arith.constant 9.99999974E-6 : f32
    %43 = vector.broadcast %cst_18 : f32 to vector<1x256xf32>
    %44 = arith.addf %40, %43 : vector<1x256xf32>
    %45 = math.rsqrt %44 : vector<1x256xf32>
    %46 = vector.broadcast %45 : vector<1x256xf32> to vector<16x256xf32>
    %47 = arith.mulf %42, %46 : vector<16x256xf32>
    %c0_19 = arith.constant 0 : index
    %c0_20 = arith.constant 0 : index
    %48 = vector.load %arg6[%c0_19, %c0_20] : memref<1x256xf32, #tpu.memory_space<vmem>>, vector<1x256xf32>
    %49 = vector.broadcast %48 : vector<1x256xf32> to vector<16x256xf32>
    %50 = arith.mulf %47, %49 : vector<16x256xf32>
    %c0_21 = arith.constant 0 : index
    %c0_22 = arith.constant 0 : index
    %51 = vector.load %arg7[%c0_21, %c0_22] : memref<1x256xf32, #tpu.memory_space<vmem>>, vector<1x256xf32>
    %52 = vector.broadcast %51 : vector<1x256xf32> to vector<16x256xf32>
    %53 = arith.addf %50, %52 : vector<16x256xf32>
    %c0_23 = arith.constant 0 : index
    %54 = memref.load %arg0[%c0_23] : memref<4xf32, #tpu.memory_space<smem>>
    %cst_24 = arith.constant 0.000000e+00 : f32
    %55 = vector.broadcast %cst_24 : f32 to vector<16x256xf32>
    %56 = arith.cmpf oge, %53, %55 : vector<16x256xf32>
    %57 = vector.broadcast %54 : f32 to vector<16x256xf32>
    %58 = arith.mulf %57, %53 : vector<16x256xf32>
    %59 = arith.select %56, %53, %58 : vector<16x256xi1>, vector<16x256xf32>
    %c0_25 = arith.constant 0 : index
    %c0_26 = arith.constant 0 : index
    %60 = vector.load %arg8[%c0_25, %c0_26] : memref<256x256xf32, #tpu.memory_space<vmem>>, vector<256x256xf32>
    %cst_27 = arith.constant dense<0.000000e+00> : vector<16x256xf32>
    %61 = tpu.matmul %59, %60, %cst_27 {dimension_numbers = #tpu.dot_dimension_numbers<[1], [0], [0], [1], [0, 0, 1, 1], [], []>} : vector<16x256xf32>, vector<256x256xf32>, vector<16x256xf32> -> vector<16x256xf32>
    %c0_28 = arith.constant 0 : index
    %c0_29 = arith.constant 0 : index
    %62 = vector.load %arg9[%c0_28, %c0_29] : memref<1x256xf32, #tpu.memory_space<vmem>>, vector<1x256xf32>
    %63 = vector.broadcast %62 : vector<1x256xf32> to vector<16x256xf32>
    %64 = arith.addf %61, %63 : vector<16x256xf32>
    %cst_30 = arith.constant dense<0.000000e+00> : vector<256xf32>
    %65 = vector.multi_reduction <add>, %64, %cst_30 [0] : vector<16x256xf32> to vector<256xf32>
    %66 = vector.shape_cast %65 : vector<256xf32> to vector<1x256xf32>
    %cst_31 = arith.constant 1.600000e+01 : f32
    %67 = vector.broadcast %cst_31 : f32 to vector<1x256xf32>
    %68 = arith.divf %66, %67 : vector<1x256xf32>
    %69 = vector.broadcast %68 : vector<1x256xf32> to vector<16x256xf32>
    %70 = arith.subf %64, %69 : vector<16x256xf32>
    %71 = arith.mulf %70, %70 : vector<16x256xf32>
    %cst_32 = arith.constant dense<0.000000e+00> : vector<256xf32>
    %72 = vector.multi_reduction <add>, %71, %cst_32 [0] : vector<16x256xf32> to vector<256xf32>
    %73 = vector.shape_cast %72 : vector<256xf32> to vector<1x256xf32>
    %cst_33 = arith.constant 1.600000e+01 : f32
    %74 = vector.broadcast %cst_33 : f32 to vector<1x256xf32>
    %75 = arith.divf %73, %74 : vector<1x256xf32>
    %76 = vector.broadcast %68 : vector<1x256xf32> to vector<16x256xf32>
    %77 = arith.subf %64, %76 : vector<16x256xf32>
    %cst_34 = arith.constant 9.99999974E-6 : f32
    %78 = vector.broadcast %cst_34 : f32 to vector<1x256xf32>
    %79 = arith.addf %75, %78 : vector<1x256xf32>
    %80 = math.rsqrt %79 : vector<1x256xf32>
    %81 = vector.broadcast %80 : vector<1x256xf32> to vector<16x256xf32>
    %82 = arith.mulf %77, %81 : vector<16x256xf32>
    %c0_35 = arith.constant 0 : index
    %c0_36 = arith.constant 0 : index
    %83 = vector.load %arg10[%c0_35, %c0_36] : memref<1x256xf32, #tpu.memory_space<vmem>>, vector<1x256xf32>
    %84 = vector.broadcast %83 : vector<1x256xf32> to vector<16x256xf32>
    %85 = arith.mulf %82, %84 : vector<16x256xf32>
    %c0_37 = arith.constant 0 : index
    %c0_38 = arith.constant 0 : index
    %86 = vector.load %arg11[%c0_37, %c0_38] : memref<1x256xf32, #tpu.memory_space<vmem>>, vector<1x256xf32>
    %87 = vector.broadcast %86 : vector<1x256xf32> to vector<16x256xf32>
    %88 = arith.addf %85, %87 : vector<16x256xf32>
    %c1 = arith.constant 1 : index
    %89 = memref.load %arg0[%c1] : memref<4xf32, #tpu.memory_space<smem>>
    %cst_39 = arith.constant 0.000000e+00 : f32
    %90 = vector.broadcast %cst_39 : f32 to vector<16x256xf32>
    %91 = arith.cmpf oge, %88, %90 : vector<16x256xf32>
    %92 = vector.broadcast %89 : f32 to vector<16x256xf32>
    %93 = arith.mulf %92, %88 : vector<16x256xf32>
    %94 = arith.select %91, %88, %93 : vector<16x256xi1>, vector<16x256xf32>
    %c0_40 = arith.constant 0 : index
    %c0_41 = arith.constant 0 : index
    %95 = vector.load %arg12[%c0_40, %c0_41] : memref<256x256xf32, #tpu.memory_space<vmem>>, vector<256x256xf32>
    %cst_42 = arith.constant dense<0.000000e+00> : vector<16x256xf32>
    %96 = tpu.matmul %94, %95, %cst_42 {dimension_numbers = #tpu.dot_dimension_numbers<[1], [0], [0], [1], [0, 0, 1, 1], [], []>} : vector<16x256xf32>, vector<256x256xf32>, vector<16x256xf32> -> vector<16x256xf32>
    %c0_43 = arith.constant 0 : index
    %c0_44 = arith.constant 0 : index
    %97 = vector.load %arg13[%c0_43, %c0_44] : memref<1x256xf32, #tpu.memory_space<vmem>>, vector<1x256xf32>
    %98 = vector.broadcast %97 : vector<1x256xf32> to vector<16x256xf32>
    %99 = arith.addf %96, %98 : vector<16x256xf32>
    %100 = arith.addf %99, %29 : vector<16x256xf32>
    %cst_45 = arith.constant 5.000000e-01 : f32
    %101 = vector.broadcast %cst_45 : f32 to vector<16x256xf32>
    %102 = arith.mulf %100, %101 : vector<16x256xf32>
    %cst_46 = arith.constant dense<0.000000e+00> : vector<256xf32>
    %103 = vector.multi_reduction <add>, %102, %cst_46 [0] : vector<16x256xf32> to vector<256xf32>
    %104 = vector.shape_cast %103 : vector<256xf32> to vector<1x256xf32>
    %cst_47 = arith.constant 1.600000e+01 : f32
    %105 = vector.broadcast %cst_47 : f32 to vector<1x256xf32>
    %106 = arith.divf %104, %105 : vector<1x256xf32>
    %107 = vector.broadcast %106 : vector<1x256xf32> to vector<16x256xf32>
    %108 = arith.subf %102, %107 : vector<16x256xf32>
    %109 = arith.mulf %108, %108 : vector<16x256xf32>
    %cst_48 = arith.constant dense<0.000000e+00> : vector<256xf32>
    %110 = vector.multi_reduction <add>, %109, %cst_48 [0] : vector<16x256xf32> to vector<256xf32>
    %111 = vector.shape_cast %110 : vector<256xf32> to vector<1x256xf32>
    %cst_49 = arith.constant 1.600000e+01 : f32
    %112 = vector.broadcast %cst_49 : f32 to vector<1x256xf32>
    %113 = arith.divf %111, %112 : vector<1x256xf32>
    %114 = vector.broadcast %106 : vector<1x256xf32> to vector<16x256xf32>
    %115 = arith.subf %102, %114 : vector<16x256xf32>
    %cst_50 = arith.constant 9.99999974E-6 : f32
    %116 = vector.broadcast %cst_50 : f32 to vector<1x256xf32>
    %117 = arith.addf %113, %116 : vector<1x256xf32>
    %118 = math.rsqrt %117 : vector<1x256xf32>
    %119 = vector.broadcast %118 : vector<1x256xf32> to vector<16x256xf32>
    %120 = arith.mulf %115, %119 : vector<16x256xf32>
    %c0_51 = arith.constant 0 : index
    %c0_52 = arith.constant 0 : index
    %121 = vector.load %arg14[%c0_51, %c0_52] : memref<1x256xf32, #tpu.memory_space<vmem>>, vector<1x256xf32>
    %122 = vector.broadcast %121 : vector<1x256xf32> to vector<16x256xf32>
    %123 = arith.mulf %120, %122 : vector<16x256xf32>
    %c0_53 = arith.constant 0 : index
    %c0_54 = arith.constant 0 : index
    %124 = vector.load %arg15[%c0_53, %c0_54] : memref<1x256xf32, #tpu.memory_space<vmem>>, vector<1x256xf32>
    %125 = vector.broadcast %124 : vector<1x256xf32> to vector<16x256xf32>
    %126 = arith.addf %123, %125 : vector<16x256xf32>
    %c2 = arith.constant 2 : index
    %127 = memref.load %arg0[%c2] : memref<4xf32, #tpu.memory_space<smem>>
    %cst_55 = arith.constant 0.000000e+00 : f32
    %128 = vector.broadcast %cst_55 : f32 to vector<16x256xf32>
    %129 = arith.cmpf oge, %126, %128 : vector<16x256xf32>
    %130 = vector.broadcast %127 : f32 to vector<16x256xf32>
    %131 = arith.mulf %130, %126 : vector<16x256xf32>
    %132 = arith.select %129, %126, %131 : vector<16x256xi1>, vector<16x256xf32>
    %c0_56 = arith.constant 0 : index
    %c0_57 = arith.constant 0 : index
    %133 = vector.load %arg16[%c0_56, %c0_57] : memref<256x256xf32, #tpu.memory_space<vmem>>, vector<256x256xf32>
    %cst_58 = arith.constant dense<0.000000e+00> : vector<16x256xf32>
    %134 = tpu.matmul %132, %133, %cst_58 {dimension_numbers = #tpu.dot_dimension_numbers<[1], [0], [0], [1], [0, 0, 1, 1], [], []>} : vector<16x256xf32>, vector<256x256xf32>, vector<16x256xf32> -> vector<16x256xf32>
    %c0_59 = arith.constant 0 : index
    %c0_60 = arith.constant 0 : index
    %135 = vector.load %arg17[%c0_59, %c0_60] : memref<1x256xf32, #tpu.memory_space<vmem>>, vector<1x256xf32>
    %136 = vector.broadcast %135 : vector<1x256xf32> to vector<16x256xf32>
    %137 = arith.addf %134, %136 : vector<16x256xf32>
    %138 = arith.addf %137, %102 : vector<16x256xf32>
    %cst_61 = arith.constant 5.000000e-01 : f32
    %139 = vector.broadcast %cst_61 : f32 to vector<16x256xf32>
    %140 = arith.mulf %138, %139 : vector<16x256xf32>
    %cst_62 = arith.constant dense<0.000000e+00> : vector<256xf32>
    %141 = vector.multi_reduction <add>, %140, %cst_62 [0] : vector<16x256xf32> to vector<256xf32>
    %142 = vector.shape_cast %141 : vector<256xf32> to vector<1x256xf32>
    %cst_63 = arith.constant 1.600000e+01 : f32
    %143 = vector.broadcast %cst_63 : f32 to vector<1x256xf32>
    %144 = arith.divf %142, %143 : vector<1x256xf32>
    %145 = vector.broadcast %144 : vector<1x256xf32> to vector<16x256xf32>
    %146 = arith.subf %140, %145 : vector<16x256xf32>
    %147 = arith.mulf %146, %146 : vector<16x256xf32>
    %cst_64 = arith.constant dense<0.000000e+00> : vector<256xf32>
    %148 = vector.multi_reduction <add>, %147, %cst_64 [0] : vector<16x256xf32> to vector<256xf32>
    %149 = vector.shape_cast %148 : vector<256xf32> to vector<1x256xf32>
    %cst_65 = arith.constant 1.600000e+01 : f32
    %150 = vector.broadcast %cst_65 : f32 to vector<1x256xf32>
    %151 = arith.divf %149, %150 : vector<1x256xf32>
    %152 = vector.broadcast %144 : vector<1x256xf32> to vector<16x256xf32>
    %153 = arith.subf %140, %152 : vector<16x256xf32>
    %cst_66 = arith.constant 9.99999974E-6 : f32
    %154 = vector.broadcast %cst_66 : f32 to vector<1x256xf32>
    %155 = arith.addf %151, %154 : vector<1x256xf32>
    %156 = math.rsqrt %155 : vector<1x256xf32>
    %157 = vector.broadcast %156 : vector<1x256xf32> to vector<16x256xf32>
    %158 = arith.mulf %153, %157 : vector<16x256xf32>
    %c0_67 = arith.constant 0 : index
    %c0_68 = arith.constant 0 : index
    %159 = vector.load %arg18[%c0_67, %c0_68] : memref<1x256xf32, #tpu.memory_space<vmem>>, vector<1x256xf32>
    %160 = vector.broadcast %159 : vector<1x256xf32> to vector<16x256xf32>
    %161 = arith.mulf %158, %160 : vector<16x256xf32>
    %c0_69 = arith.constant 0 : index
    %c0_70 = arith.constant 0 : index
    %162 = vector.load %arg19[%c0_69, %c0_70] : memref<1x256xf32, #tpu.memory_space<vmem>>, vector<1x256xf32>
    %163 = vector.broadcast %162 : vector<1x256xf32> to vector<16x256xf32>
    %164 = arith.addf %161, %163 : vector<16x256xf32>
    %c3 = arith.constant 3 : index
    %165 = memref.load %arg0[%c3] : memref<4xf32, #tpu.memory_space<smem>>
    %cst_71 = arith.constant 0.000000e+00 : f32
    %166 = vector.broadcast %cst_71 : f32 to vector<16x256xf32>
    %167 = arith.cmpf oge, %164, %166 : vector<16x256xf32>
    %168 = vector.broadcast %165 : f32 to vector<16x256xf32>
    %169 = arith.mulf %168, %164 : vector<16x256xf32>
    %170 = arith.select %167, %164, %169 : vector<16x256xi1>, vector<16x256xf32>
    %c0_72 = arith.constant 0 : index
    %c0_73 = arith.constant 0 : index
    %171 = vector.load %arg20[%c0_72, %c0_73] : memref<256x128xf32, #tpu.memory_space<vmem>>, vector<256x128xf32>
    %cst_74 = arith.constant dense<0.000000e+00> : vector<16x128xf32>
    %172 = tpu.matmul %170, %171, %cst_74 {dimension_numbers = #tpu.dot_dimension_numbers<[1], [0], [0], [1], [0, 0, 1, 1], [], []>} : vector<16x256xf32>, vector<256x128xf32>, vector<16x128xf32> -> vector<16x128xf32>
    %c0_75 = arith.constant 0 : index
    %c0_76 = arith.constant 0 : index
    %173 = vector.load %arg21[%c0_75, %c0_76] : memref<1x128xf32, #tpu.memory_space<vmem>>, vector<1x128xf32>
    %174 = vector.broadcast %173 : vector<1x128xf32> to vector<16x128xf32>
    %175 = arith.addf %172, %174 : vector<16x128xf32>
    %c0_77 = arith.constant 0 : index
    %c0_78 = arith.constant 0 : index
    %176 = vector.load %arg22[%c0_77, %c0_78] : memref<16x128xf32, #tpu.memory_space<vmem>>, vector<16x128xf32>
    tpu.vector_store %arg22[%c0_77, %c0_78], %175 {strides = array<i32>} : memref<16x128xf32, #tpu.memory_space<vmem>>, vector<16x128xf32>,
    return
  }
}

module attributes {stable_mosaic.version = 11 : i64} {
  func.func @dmpnn_graph_kernel(%arg0: memref<1xf32, #tpu.memory_space<smem>>, %arg1: memref<3xf32, #tpu.memory_space<smem>>, %arg2: memref<16x128xf32, #tpu.memory_space<vmem>>, %arg3: memref<32x128xf32, #tpu.memory_space<vmem>>, %arg4: memref<128x128xf32, #tpu.memory_space<vmem>>, %arg5: memref<128x128xf32, #tpu.memory_space<vmem>>, %arg6: memref<128x128xf32, #tpu.memory_space<vmem>>, %arg7: memref<32x16xbf16, #tpu.memory_space<vmem>>, %arg8: memref<32x16xbf16, #tpu.memory_space<vmem>>, %arg9: memref<32x32xbf16, #tpu.memory_space<vmem>>, %arg10: memref<2x32xf32, #tpu.memory_space<vmem>>, %arg11: memref<32x2xf32, #tpu.memory_space<vmem>>, %arg12: memref<1x128xf32, #tpu.memory_space<vmem>>, %arg13: memref<1x128xf32, #tpu.memory_space<vmem>>, %arg14: memref<128x128xf32, #tpu.memory_space<vmem>>, %arg15: memref<1x128xf32, #tpu.memory_space<vmem>>, %arg16: memref<3x128xf32, #tpu.memory_space<vmem>>, %arg17: memref<16x32xbf16, #tpu.memory_space<vmem>>, %arg18: memref<16x128xf32, #tpu.memory_space<vmem>>) attributes {dimension_semantics = [], scalar_prefetch = 0 : i64, scratch_operands = 0 : i64, tpu.core_type = #tpu.core_type<tc>} {
    %c0 = arith.constant 0 : index
    %c0_0 = arith.constant 0 : index
    %0 = vector.load %arg2[%c0, %c0_0] : memref<16x128xf32, #tpu.memory_space<vmem>>, vector<16x128xf32>
    %c0_1 = arith.constant 0 : index
    %c0_2 = arith.constant 0 : index
    %1 = vector.load %arg7[%c0_1, %c0_2] : memref<32x16xbf16, #tpu.memory_space<vmem>>, vector<32x16xbf16>
    %2 = arith.extf %1 : vector<32x16xbf16> to vector<32x16xf32>
    %c0_3 = arith.constant 0 : index
    %c0_4 = arith.constant 0 : index
    %3 = vector.load %arg8[%c0_3, %c0_4] : memref<32x16xbf16, #tpu.memory_space<vmem>>, vector<32x16xbf16>
    %4 = arith.extf %3 : vector<32x16xbf16> to vector<32x16xf32>
    %c0_5 = arith.constant 0 : index
    %c0_6 = arith.constant 0 : index
    %5 = vector.load %arg9[%c0_5, %c0_6] : memref<32x32xbf16, #tpu.memory_space<vmem>>, vector<32x32xbf16>
    %6 = arith.extf %5 : vector<32x32xbf16> to vector<32x32xf32>
    %c0_7 = arith.constant 0 : index
    %c0_8 = arith.constant 0 : index
    %7 = vector.load %arg17[%c0_7, %c0_8] : memref<16x32xbf16, #tpu.memory_space<vmem>>, vector<16x32xbf16>
    %8 = arith.extf %7 : vector<16x32xbf16> to vector<16x32xf32>
    %c0_9 = arith.constant 0 : index
    %c0_10 = arith.constant 0 : index
    %9 = vector.load %arg10[%c0_9, %c0_10] : memref<2x32xf32, #tpu.memory_space<vmem>>, vector<2x32xf32>
    %c0_11 = arith.constant 0 : index
    %c0_12 = arith.constant 0 : index
    %10 = vector.load %arg11[%c0_11, %c0_12] : memref<32x2xf32, #tpu.memory_space<vmem>>, vector<32x2xf32>
    %cst = arith.constant 5.000000e-01 : f32
    %11 = vector.broadcast %cst : f32 to vector<32x2xf32>
    %12 = arith.cmpf ogt, %10, %11 : vector<32x2xf32>
    %c0_13 = arith.constant 0 : index
    %c0_14 = arith.constant 0 : index
    %13 = vector.load %arg4[%c0_13, %c0_14] : memref<128x128xf32, #tpu.memory_space<vmem>>, vector<128x128xf32>
    %cst_15 = arith.constant dense<0.000000e+00> : vector<16x128xf32>
    %14 = tpu.matmul %0, %13, %cst_15 {dimension_numbers = #tpu.dot_dimension_numbers<[1], [0], [0], [1], [0, 0, 1, 1], [], []>} : vector<16x128xf32>, vector<128x128xf32>, vector<16x128xf32> -> vector<16x128xf32>
    %c0_16 = arith.constant 0 : index
    %c0_17 = arith.constant 0 : index
    %15 = vector.load %arg5[%c0_16, %c0_17] : memref<128x128xf32, #tpu.memory_space<vmem>>, vector<128x128xf32>
    %cst_18 = arith.constant dense<0.000000e+00> : vector<16x128xf32>
    %16 = tpu.matmul %0, %15, %cst_18 {dimension_numbers = #tpu.dot_dimension_numbers<[1], [0], [0], [1], [0, 0, 1, 1], [], []>} : vector<16x128xf32>, vector<128x128xf32>, vector<16x128xf32> -> vector<16x128xf32>
    %c0_19 = arith.constant 0 : index
    %c0_20 = arith.constant 0 : index
    %17 = vector.load %arg3[%c0_19, %c0_20] : memref<32x128xf32, #tpu.memory_space<vmem>>, vector<32x128xf32>
    %c0_21 = arith.constant 0 : index
    %c0_22 = arith.constant 0 : index
    %18 = vector.load %arg6[%c0_21, %c0_22] : memref<128x128xf32, #tpu.memory_space<vmem>>, vector<128x128xf32>
    %cst_23 = arith.constant dense<0.000000e+00> : vector<32x128xf32>
    %19 = tpu.matmul %17, %18, %cst_23 {dimension_numbers = #tpu.dot_dimension_numbers<[1], [0], [0], [1], [0, 0, 1, 1], [], []>} : vector<32x128xf32>, vector<128x128xf32>, vector<32x128xf32> -> vector<32x128xf32>
    %cst_24 = arith.constant dense<0.000000e+00> : vector<32x128xf32>
    %20 = tpu.matmul %2, %14, %cst_24 {dimension_numbers = #tpu.dot_dimension_numbers<[1], [0], [0], [1], [0, 0, 1, 1], [], []>} : vector<32x16xf32>, vector<16x128xf32>, vector<32x128xf32> -> vector<32x128xf32>
    %cst_25 = arith.constant dense<0.000000e+00> : vector<32x128xf32>
    %21 = tpu.matmul %4, %16, %cst_25 {dimension_numbers = #tpu.dot_dimension_numbers<[1], [0], [0], [1], [0, 0, 1, 1], [], []>} : vector<32x16xf32>, vector<16x128xf32>, vector<32x128xf32> -> vector<32x128xf32>
    %22 = arith.addf %20, %21 : vector<32x128xf32>
    %23 = arith.addf %22, %19 : vector<32x128xf32>
    %cst_26 = arith.constant 0.333333343 : f32
    %24 = vector.broadcast %cst_26 : f32 to vector<32x128xf32>
    %25 = arith.mulf %23, %24 : vector<32x128xf32>
    %c0_27 = arith.constant 0 : index
    %c0_28 = arith.constant 0 : index
    %26 = vector.load %arg12[%c0_27, %c0_28] : memref<1x128xf32, #tpu.memory_space<vmem>>, vector<1x128xf32>
    %c0_29 = arith.constant 0 : index
    %c0_30 = arith.constant 0 : index
    %27 = vector.load %arg13[%c0_29, %c0_30] : memref<1x128xf32, #tpu.memory_space<vmem>>, vector<1x128xf32>
    %c0_31 = arith.constant 0 : index
    %c0_32 = arith.constant 0 : index
    %28 = vector.load %arg14[%c0_31, %c0_32] : memref<128x128xf32, #tpu.memory_space<vmem>>, vector<128x128xf32>
    %c0_33 = arith.constant 0 : index
    %c0_34 = arith.constant 0 : index
    %29 = vector.load %arg15[%c0_33, %c0_34] : memref<1x128xf32, #tpu.memory_space<vmem>>, vector<1x128xf32>
    %c0_35 = arith.constant 0 : index
    %c0_36 = arith.constant 0 : index
    %30 = vector.load %arg16[%c0_35, %c0_36] : memref<3x128xf32, #tpu.memory_space<vmem>>, vector<3x128xf32>
    %c0_37 = arith.constant 0 : index
    %31 = memref.load %arg0[%c0_37] : memref<1xf32, #tpu.memory_space<smem>>
    %cst_38 = arith.constant -1.000000e+30 : f32
    %32 = vector.broadcast %cst_38 : f32 to vector<2x1xf32>
    %cst_39 = arith.constant 0.000000e+00 : f32
    %33 = vector.broadcast %cst_39 : f32 to vector<2x1xf32>
    %cst_40 = arith.constant 0.000000e+00 : f32
    %34 = vector.broadcast %cst_40 : f32 to vector<32x128xf32>
    %cst_41 = arith.constant dense<0.000000e+00> : vector<32x128xf32>
    %35 = tpu.matmul %6, %25, %cst_41 {dimension_numbers = #tpu.dot_dimension_numbers<[1], [0], [0], [1], [0, 0, 1, 1], [], []>} : vector<32x32xf32>, vector<32x128xf32>, vector<32x128xf32> -> vector<32x128xf32>
    %36 = arith.addf %25, %35 : vector<32x128xf32>
    %cst_42 = arith.constant dense<0.000000e+00> : vector<32x128xf32>
    %37 = tpu.matmul %6, %36, %cst_42 {dimension_numbers = #tpu.dot_dimension_numbers<[1], [0], [0], [1], [0, 0, 1, 1], [], []>} : vector<32x32xf32>, vector<32x128xf32>, vector<32x128xf32> -> vector<32x128xf32>
    %38 = vector.broadcast %26 : vector<1x128xf32> to vector<32x128xf32>
    %39 = arith.mulf %36, %38 : vector<32x128xf32>
    %40 = vector.broadcast %27 : vector<1x128xf32> to vector<32x128xf32>
    %41 = arith.mulf %37, %40 : vector<32x128xf32>
    %42 = arith.addf %39, %41 : vector<32x128xf32>
    %cst_43 = arith.constant dense<0.000000e+00> : vector<32xf32>
    %43 = vector.multi_reduction <add>, %42, %cst_43 [1] : vector<32x128xf32> to vector<32xf32>
    %44 = vector.shape_cast %43 : vector<32xf32> to vector<32x1xf32>
    %45 = vector.broadcast %31 : f32 to vector<32x1xf32>
    %46 = arith.addf %44, %45 : vector<32x1xf32>
    %cst_44 = arith.constant -1.000000e+30 : f32
    %47 = vector.shape_cast %46 : vector<32x1xf32> to vector<32x1xf32>
    %48 = vector.broadcast %47 : vector<32x1xf32> to vector<32x2xf32>
    %49 = vector.broadcast %cst_44 : f32 to vector<32x2xf32>
    %50 = arith.select %12, %48, %49 : vector<32x2xi1>, vector<32x2xf32>
    %cst_45 = arith.constant dense<0xFF800000> : vector<2xf32>
    %51 = vector.multi_reduction <maximumf>, %50, %cst_45 [0] : vector<32x2xf32> to vector<2xf32>
    %52 = vector.shape_cast %51 : vector<2xf32> to vector<1x2xf32>
    %53 = vector.broadcast %52 : vector<1x2xf32> to vector<32x2xf32>
    %54 = arith.mulf %10, %53 : vector<32x2xf32>
    %cst_46 = arith.constant dense<0.000000e+00> : vector<32xf32>
    %55 = vector.multi_reduction <add>, %54, %cst_46 [1] : vector<32x2xf32> to vector<32xf32>
    %56 = vector.shape_cast %55 : vector<32xf32> to vector<32x1xf32>
    %57 = arith.subf %46, %56 : vector<32x1xf32>
    %58 = math.exp %57 : vector<32x1xf32>
    %cst_47 = arith.constant dense<0.000000e+00> : vector<2x1xf32>
    %59 = tpu.matmul %9, %58, %cst_47 {dimension_numbers = #tpu.dot_dimension_numbers<[1], [0], [0], [1], [0, 0, 1, 1], [], []>} : vector<2x32xf32>, vector<32x1xf32>, vector<2x1xf32> -> vector<2x1xf32>
    %cst_48 = arith.constant dense<0.000000e+00> : vector<32x1xf32>
    %60 = tpu.matmul %10, %59, %cst_48 {dimension_numbers = #tpu.dot_dimension_numbers<[1], [0], [0], [1], [0, 0, 1, 1], [], []>} : vector<32x2xf32>, vector<2x1xf32>, vector<32x1xf32> -> vector<32x1xf32>
    %61 = tpu.reciprocal %60 {approx = true} : vector<32x1xf32> -> vector<32x1xf32>
    %62 = arith.mulf %58, %61 : vector<32x1xf32>
    %63 = vector.broadcast %62 : vector<32x1xf32> to vector<32x128xf32>
    %64 = arith.mulf %36, %63 : vector<32x128xf32>
    %cst_49 = arith.constant dense<0.000000e+00> : vector<2x128xf32>
    %65 = tpu.matmul %9, %64, %cst_49 {dimension_numbers = #tpu.dot_dimension_numbers<[1], [0], [0], [1], [0, 0, 1, 1], [], []>} : vector<2x32xf32>, vector<32x128xf32>, vector<2x128xf32> -> vector<2x128xf32>
    %cst_50 = arith.constant dense<0.000000e+00> : vector<2x128xf32>
    %66 = tpu.matmul %65, %28, %cst_50 {dimension_numbers = #tpu.dot_dimension_numbers<[1], [0], [0], [1], [0, 0, 1, 1], [], []>} : vector<2x128xf32>, vector<128x128xf32>, vector<2x128xf32> -> vector<2x128xf32>
    %67 = vector.broadcast %29 : vector<1x128xf32> to vector<2x128xf32>
    %68 = arith.addf %66, %67 : vector<2x128xf32>
    %69 = math.tanh %68 : vector<2x128xf32>
    %70 = vector.extract_strided_slice %30 {offsets = [0, 0], sizes = [1, 128], strides = [1, 1]} : vector<3x128xf32> to vector<1x128xf32>
    %71 = vector.broadcast %70 : vector<1x128xf32> to vector<2x128xf32>
    %72 = arith.mulf %69, %71 : vector<2x128xf32>
    %cst_51 = arith.constant dense<0.000000e+00> : vector<2xf32>
    %73 = vector.multi_reduction <add>, %72, %cst_51 [1] : vector<2x128xf32> to vector<2xf32>
    %74 = vector.shape_cast %73 : vector<2xf32> to vector<2x1xf32>
    %c0_52 = arith.constant 0 : index
    %75 = memref.load %arg1[%c0_52] : memref<3xf32, #tpu.memory_space<smem>>
    %76 = vector.broadcast %75 : f32 to vector<2x1xf32>
    %77 = arith.addf %74, %76 : vector<2x1xf32>
    %78 = arith.maximumf %32, %77 : vector<2x1xf32>
    %79 = arith.subf %32, %78 : vector<2x1xf32>
    %80 = math.exp %79 : vector<2x1xf32>
    %81 = arith.subf %77, %78 : vector<2x1xf32>
    %82 = math.exp %81 : vector<2x1xf32>
    %83 = arith.mulf %33, %80 : vector<2x1xf32>
    %84 = arith.addf %83, %82 : vector<2x1xf32>
    %cst_53 = arith.constant dense<0.000000e+00> : vector<32x1xf32>
    %85 = tpu.matmul %10, %80, %cst_53 {dimension_numbers = #tpu.dot_dimension_numbers<[1], [0], [0], [1], [0, 0, 1, 1], [], []>} : vector<32x2xf32>, vector<2x1xf32>, vector<32x1xf32> -> vector<32x1xf32>
    %cst_54 = arith.constant dense<0.000000e+00> : vector<32x1xf32>
    %86 = tpu.matmul %10, %82, %cst_54 {dimension_numbers = #tpu.dot_dimension_numbers<[1], [0], [0], [1], [0, 0, 1, 1], [], []>} : vector<32x2xf32>, vector<2x1xf32>, vector<32x1xf32> -> vector<32x1xf32>
    %87 = vector.broadcast %85 : vector<32x1xf32> to vector<32x128xf32>
    %88 = arith.mulf %34, %87 : vector<32x128xf32>
    %89 = vector.broadcast %86 : vector<32x1xf32> to vector<32x128xf32>
    %90 = arith.mulf %36, %89 : vector<32x128xf32>
    %91 = arith.addf %88, %90 : vector<32x128xf32>
    %92 = arith.addf %25, %37 : vector<32x128xf32>
    %cst_55 = arith.constant dense<0.000000e+00> : vector<32x128xf32>
    %93 = tpu.matmul %6, %92, %cst_55 {dimension_numbers = #tpu.dot_dimension_numbers<[1], [0], [0], [1], [0, 0, 1, 1], [], []>} : vector<32x32xf32>, vector<32x128xf32>, vector<32x128xf32> -> vector<32x128xf32>
    %94 = vector.broadcast %26 : vector<1x128xf32> to vector<32x128xf32>
    %95 = arith.mulf %92, %94 : vector<32x128xf32>
    %96 = vector.broadcast %27 : vector<1x128xf32> to vector<32x128xf32>
    %97 = arith.mulf %93, %96 : vector<32x128xf32>
    %98 = arith.addf %95, %97 : vector<32x128xf32>
    %cst_56 = arith.constant dense<0.000000e+00> : vector<32xf32>
    %99 = vector.multi_reduction <add>, %98, %cst_56 [1] : vector<32x128xf32> to vector<32xf32>
    %100 = vector.shape_cast %99 : vector<32xf32> to vector<32x1xf32>
    %101 = vector.broadcast %31 : f32 to vector<32x1xf32>
    %102 = arith.addf %100, %101 : vector<32x1xf32>
    %cst_57 = arith.constant -1.000000e+30 : f32
    %103 = vector.shape_cast %102 : vector<32x1xf32> to vector<32x1xf32>
    %104 = vector.broadcast %103 : vector<32x1xf32> to vector<32x2xf32>
    %105 = vector.broadcast %cst_57 : f32 to vector<32x2xf32>
    %106 = arith.select %12, %104, %105 : vector<32x2xi1>, vector<32x2xf32>
    %cst_58 = arith.constant dense<0xFF800000> : vector<2xf32>
    %107 = vector.multi_reduction <maximumf>, %106, %cst_58 [0] : vector<32x2xf32> to vector<2xf32>
    %108 = vector.shape_cast %107 : vector<2xf32> to vector<1x2xf32>
    %109 = vector.broadcast %108 : vector<1x2xf32> to vector<32x2xf32>
    %110 = arith.mulf %10, %109 : vector<32x2xf32>
    %cst_59 = arith.constant dense<0.000000e+00> : vector<32xf32>
    %111 = vector.multi_reduction <add>, %110, %cst_59 [1] : vector<32x2xf32> to vector<32xf32>
    %112 = vector.shape_cast %111 : vector<32xf32> to vector<32x1xf32>
    %113 = arith.subf %102, %112 : vector<32x1xf32>
    %114 = math.exp %113 : vector<32x1xf32>
    %cst_60 = arith.constant dense<0.000000e+00> : vector<2x1xf32>
    %115 = tpu.matmul %9, %114, %cst_60 {dimension_numbers = #tpu.dot_dimension_numbers<[1], [0], [0], [1], [0, 0, 1, 1], [], []>} : vector<2x32xf32>, vector<32x1xf32>, vector<2x1xf32> -> vector<2x1xf32>
    %cst_61 = arith.constant dense<0.000000e+00> : vector<32x1xf32>
    %116 = tpu.matmul %10, %115, %cst_61 {dimension_numbers = #tpu.dot_dimension_numbers<[1], [0], [0], [1], [0, 0, 1, 1], [], []>} : vector<32x2xf32>, vector<2x1xf32>, vector<32x1xf32> -> vector<32x1xf32>
    %117 = tpu.reciprocal %116 {approx = true} : vector<32x1xf32> -> vector<32x1xf32>
    %118 = arith.mulf %114, %117 : vector<32x1xf32>
    %119 = vector.broadcast %118 : vector<32x1xf32> to vector<32x128xf32>
    %120 = arith.mulf %92, %119 : vector<32x128xf32>
    %cst_62 = arith.constant dense<0.000000e+00> : vector<2x128xf32>
    %121 = tpu.matmul %9, %120, %cst_62 {dimension_numbers = #tpu.dot_dimension_numbers<[1], [0], [0], [1], [0, 0, 1, 1], [], []>} : vector<2x32xf32>, vector<32x128xf32>, vector<2x128xf32> -> vector<2x128xf32>
    %cst_63 = arith.constant dense<0.000000e+00> : vector<2x128xf32>
    %122 = tpu.matmul %121, %28, %cst_63 {dimension_numbers = #tpu.dot_dimension_numbers<[1], [0], [0], [1], [0, 0, 1, 1], [], []>} : vector<2x128xf32>, vector<128x128xf32>, vector<2x128xf32> -> vector<2x128xf32>
    %123 = vector.broadcast %29 : vector<1x128xf32> to vector<2x128xf32>
    %124 = arith.addf %122, %123 : vector<2x128xf32>
    %125 = math.tanh %124 : vector<2x128xf32>
    %126 = vector.extract_strided_slice %30 {offsets = [1, 0], sizes = [1, 128], strides = [1, 1]} : vector<3x128xf32> to vector<1x128xf32>
    %127 = vector.broadcast %126 : vector<1x128xf32> to vector<2x128xf32>
    %128 = arith.mulf %125, %127 : vector<2x128xf32>
    %cst_64 = arith.constant dense<0.000000e+00> : vector<2xf32>
    %129 = vector.multi_reduction <add>, %128, %cst_64 [1] : vector<2x128xf32> to vector<2xf32>
    %130 = vector.shape_cast %129 : vector<2xf32> to vector<2x1xf32>
    %c1 = arith.constant 1 : index
    %131 = memref.load %arg1[%c1] : memref<3xf32, #tpu.memory_space<smem>>
    %132 = vector.broadcast %131 : f32 to vector<2x1xf32>
    %133 = arith.addf %130, %132 : vector<2x1xf32>
    %134 = arith.maximumf %78, %133 : vector<2x1xf32>
    %135 = arith.subf %78, %134 : vector<2x1xf32>
    %136 = math.exp %135 : vector<2x1xf32>
    %137 = arith.subf %133, %134 : vector<2x1xf32>
    %138 = math.exp %137 : vector<2x1xf32>
    %139 = arith.mulf %84, %136 : vector<2x1xf32>
    %140 = arith.addf %139, %138 : vector<2x1xf32>
    %cst_65 = arith.constant dense<0.000000e+00> : vector<32x1xf32>
    %141 = tpu.matmul %10, %136, %cst_65 {dimension_numbers = #tpu.dot_dimension_numbers<[1], [0], [0], [1], [0, 0, 1, 1], [], []>} : vector<32x2xf32>, vector<2x1xf32>, vector<32x1xf32> -> vector<32x1xf32>
    %cst_66 = arith.constant dense<0.000000e+00> : vector<32x1xf32>
    %142 = tpu.matmul %10, %138, %cst_66 {dimension_numbers = #tpu.dot_dimension_numbers<[1], [0], [0], [1], [0, 0, 1, 1], [], []>} : vector<32x2xf32>, vector<2x1xf32>, vector<32x1xf32> -> vector<32x1xf32>
    %143 = vector.broadcast %141 : vector<32x1xf32> to vector<32x128xf32>
    %144 = arith.mulf %91, %143 : vector<32x128xf32>
    %145 = vector.broadcast %142 : vector<32x1xf32> to vector<32x128xf32>
    %146 = arith.mulf %92, %145 : vector<32x128xf32>
    %147 = arith.addf %144, %146 : vector<32x128xf32>
    %148 = arith.addf %25, %93 : vector<32x128xf32>
    %cst_67 = arith.constant dense<0.000000e+00> : vector<32x128xf32>
    %149 = tpu.matmul %6, %148, %cst_67 {dimension_numbers = #tpu.dot_dimension_numbers<[1], [0], [0], [1], [0, 0, 1, 1], [], []>} : vector<32x32xf32>, vector<32x128xf32>, vector<32x128xf32> -> vector<32x128xf32>
    %150 = vector.broadcast %26 : vector<1x128xf32> to vector<32x128xf32>
    %151 = arith.mulf %148, %150 : vector<32x128xf32>
    %152 = vector.broadcast %27 : vector<1x128xf32> to vector<32x128xf32>
    %153 = arith.mulf %149, %152 : vector<32x128xf32>
    %154 = arith.addf %151, %153 : vector<32x128xf32>
    %cst_68 = arith.constant dense<0.000000e+00> : vector<32xf32>
    %155 = vector.multi_reduction <add>, %154, %cst_68 [1] : vector<32x128xf32> to vector<32xf32>
    %156 = vector.shape_cast %155 : vector<32xf32> to vector<32x1xf32>
    %157 = vector.broadcast %31 : f32 to vector<32x1xf32>
    %158 = arith.addf %156, %157 : vector<32x1xf32>
    %cst_69 = arith.constant -1.000000e+30 : f32
    %159 = vector.shape_cast %158 : vector<32x1xf32> to vector<32x1xf32>
    %160 = vector.broadcast %159 : vector<32x1xf32> to vector<32x2xf32>
    %161 = vector.broadcast %cst_69 : f32 to vector<32x2xf32>
    %162 = arith.select %12, %160, %161 : vector<32x2xi1>, vector<32x2xf32>
    %cst_70 = arith.constant dense<0xFF800000> : vector<2xf32>
    %163 = vector.multi_reduction <maximumf>, %162, %cst_70 [0] : vector<32x2xf32> to vector<2xf32>
    %164 = vector.shape_cast %163 : vector<2xf32> to vector<1x2xf32>
    %165 = vector.broadcast %164 : vector<1x2xf32> to vector<32x2xf32>
    %166 = arith.mulf %10, %165 : vector<32x2xf32>
    %cst_71 = arith.constant dense<0.000000e+00> : vector<32xf32>
    %167 = vector.multi_reduction <add>, %166, %cst_71 [1] : vector<32x2xf32> to vector<32xf32>
    %168 = vector.shape_cast %167 : vector<32xf32> to vector<32x1xf32>
    %169 = arith.subf %158, %168 : vector<32x1xf32>
    %170 = math.exp %169 : vector<32x1xf32>
    %cst_72 = arith.constant dense<0.000000e+00> : vector<2x1xf32>
    %171 = tpu.matmul %9, %170, %cst_72 {dimension_numbers = #tpu.dot_dimension_numbers<[1], [0], [0], [1], [0, 0, 1, 1], [], []>} : vector<2x32xf32>, vector<32x1xf32>, vector<2x1xf32> -> vector<2x1xf32>
    %cst_73 = arith.constant dense<0.000000e+00> : vector<32x1xf32>
    %172 = tpu.matmul %10, %171, %cst_73 {dimension_numbers = #tpu.dot_dimension_numbers<[1], [0], [0], [1], [0, 0, 1, 1], [], []>} : vector<32x2xf32>, vector<2x1xf32>, vector<32x1xf32> -> vector<32x1xf32>
    %173 = tpu.reciprocal %172 {approx = true} : vector<32x1xf32> -> vector<32x1xf32>
    %174 = arith.mulf %170, %173 : vector<32x1xf32>
    %175 = vector.broadcast %174 : vector<32x1xf32> to vector<32x128xf32>
    %176 = arith.mulf %148, %175 : vector<32x128xf32>
    %cst_74 = arith.constant dense<0.000000e+00> : vector<2x128xf32>
    %177 = tpu.matmul %9, %176, %cst_74 {dimension_numbers = #tpu.dot_dimension_numbers<[1], [0], [0], [1], [0, 0, 1, 1], [], []>} : vector<2x32xf32>, vector<32x128xf32>, vector<2x128xf32> -> vector<2x128xf32>
    %cst_75 = arith.constant dense<0.000000e+00> : vector<2x128xf32>
    %178 = tpu.matmul %177, %28, %cst_75 {dimension_numbers = #tpu.dot_dimension_numbers<[1], [0], [0], [1], [0, 0, 1, 1], [], []>} : vector<2x128xf32>, vector<128x128xf32>, vector<2x128xf32> -> vector<2x128xf32>
    %179 = vector.broadcast %29 : vector<1x128xf32> to vector<2x128xf32>
    %180 = arith.addf %178, %179 : vector<2x128xf32>
    %181 = math.tanh %180 : vector<2x128xf32>
    %182 = vector.extract_strided_slice %30 {offsets = [2, 0], sizes = [1, 128], strides = [1, 1]} : vector<3x128xf32> to vector<1x128xf32>
    %183 = vector.broadcast %182 : vector<1x128xf32> to vector<2x128xf32>
    %184 = arith.mulf %181, %183 : vector<2x128xf32>
    %cst_76 = arith.constant dense<0.000000e+00> : vector<2xf32>
    %185 = vector.multi_reduction <add>, %184, %cst_76 [1] : vector<2x128xf32> to vector<2xf32>
    %186 = vector.shape_cast %185 : vector<2xf32> to vector<2x1xf32>
    %c2 = arith.constant 2 : index
    %187 = memref.load %arg1[%c2] : memref<3xf32, #tpu.memory_space<smem>>
    %188 = vector.broadcast %187 : f32 to vector<2x1xf32>
    %189 = arith.addf %186, %188 : vector<2x1xf32>
    %190 = arith.maximumf %134, %189 : vector<2x1xf32>
    %191 = arith.subf %134, %190 : vector<2x1xf32>
    %192 = math.exp %191 : vector<2x1xf32>
    %193 = arith.subf %189, %190 : vector<2x1xf32>
    %194 = math.exp %193 : vector<2x1xf32>
    %195 = arith.mulf %140, %192 : vector<2x1xf32>
    %196 = arith.addf %195, %194 : vector<2x1xf32>
    %cst_77 = arith.constant dense<0.000000e+00> : vector<32x1xf32>
    %197 = tpu.matmul %10, %192, %cst_77 {dimension_numbers = #tpu.dot_dimension_numbers<[1], [0], [0], [1], [0, 0, 1, 1], [], []>} : vector<32x2xf32>, vector<2x1xf32>, vector<32x1xf32> -> vector<32x1xf32>
    %cst_78 = arith.constant dense<0.000000e+00> : vector<32x1xf32>
    %198 = tpu.matmul %10, %194, %cst_78 {dimension_numbers = #tpu.dot_dimension_numbers<[1], [0], [0], [1], [0, 0, 1, 1], [], []>} : vector<32x2xf32>, vector<2x1xf32>, vector<32x1xf32> -> vector<32x1xf32>
    %199 = vector.broadcast %197 : vector<32x1xf32> to vector<32x128xf32>
    %200 = arith.mulf %147, %199 : vector<32x128xf32>
    %201 = vector.broadcast %198 : vector<32x1xf32> to vector<32x128xf32>
    %202 = arith.mulf %148, %201 : vector<32x128xf32>
    %203 = arith.addf %200, %202 : vector<32x128xf32>
    %204 = tpu.reciprocal %196 {approx = true} : vector<2x1xf32> -> vector<2x1xf32>
    %cst_79 = arith.constant dense<0.000000e+00> : vector<32x1xf32>
    %205 = tpu.matmul %10, %204, %cst_79 {dimension_numbers = #tpu.dot_dimension_numbers<[1], [0], [0], [1], [0, 0, 1, 1], [], []>} : vector<32x2xf32>, vector<2x1xf32>, vector<32x1xf32> -> vector<32x1xf32>
    %206 = vector.broadcast %205 : vector<32x1xf32> to vector<32x128xf32>
    %207 = arith.mulf %203, %206 : vector<32x128xf32>
    %cst_80 = arith.constant dense<0.000000e+00> : vector<16x128xf32>
    %208 = tpu.matmul %8, %207, %cst_80 {dimension_numbers = #tpu.dot_dimension_numbers<[1], [0], [0], [1], [0, 0, 1, 1], [], []>} : vector<16x32xf32>, vector<32x128xf32>, vector<16x128xf32> -> vector<16x128xf32>
    %209 = arith.addf %0, %208 : vector<16x128xf32>
    %c0_81 = arith.constant 0 : index
    %c0_82 = arith.constant 0 : index
    %210 = vector.load %arg18[%c0_81, %c0_82] : memref<16x128xf32, #tpu.memory_space<vmem>>, vector<16x128xf32>
    tpu.vector_store %arg18[%c0_81, %c0_82], %209 {strides = array<i32>} : memref<16x128xf32, #tpu.memory_space<vmem>>, vector<16x128xf32>,
    return
  }
}

</mosaic_0001>

<llo_original>
// kernel: dmpnn_forward.3
$region0: #{dmpnn_forward.3}
  #allocation0 [shape = 'u32[]', space=smem, size = 0x4, offset = 0x4, fixed_abs, tag = 'smem constant byte address 0x4 - core index']
  #allocation1 [shape = 'u32[144,128]{1,0:T(1,128)}', space=vmem, size = 0x12000, scoped, tag = 'internal scratch']
  %s0 = inlined_call_operand.vmem [shape: f32[4], index: 0, kind: input, shape index: {}]
  %s1 = inlined_call_operand.vmem [shape: f32[16,128], index: 1, kind: input, shape index: {}, may-alias: {1,22}]
  %s2 = inlined_call_operand.vmem [shape: f32[1,128], index: 2, kind: input, shape index: {}]
  %s3 = inlined_call_operand.vmem [shape: f32[1,128], index: 3, kind: input, shape index: {}]
  %s4 = inlined_call_operand.vmem [shape: f32[128,256], index: 4, kind: input, shape index: {}]
  %s5 = inlined_call_operand.vmem [shape: f32[1,256], index: 5, kind: input, shape index: {}]
  %s6 = inlined_call_operand.vmem [shape: f32[1,256], index: 6, kind: input, shape index: {}]
  %s7 = inlined_call_operand.vmem [shape: f32[1,256], index: 7, kind: input, shape index: {}]
  %s8 = inlined_call_operand.vmem [shape: f32[256,256], index: 8, kind: input, shape index: {}]
  %s9 = inlined_call_operand.vmem [shape: f32[1,256], index: 9, kind: input, shape index: {}]
  %s10 = inlined_call_operand.vmem [shape: f32[1,256], index: 10, kind: input, shape index: {}]
  %s11 = inlined_call_operand.vmem [shape: f32[1,256], index: 11, kind: input, shape index: {}]
  %s12 = inlined_call_operand.vmem [shape: f32[256,256], index: 12, kind: input, shape index: {}]
  %s13 = inlined_call_operand.vmem [shape: f32[1,256], index: 13, kind: input, shape index: {}]
  %s14 = inlined_call_operand.vmem [shape: f32[1,256], index: 14, kind: input, shape index: {}]
  %s15 = inlined_call_operand.vmem [shape: f32[1,256], index: 15, kind: input, shape index: {}]
  %s16 = inlined_call_operand.vmem [shape: f32[256,256], index: 16, kind: input, shape index: {}]
  %s17 = inlined_call_operand.vmem [shape: f32[1,256], index: 17, kind: input, shape index: {}]
  %s18 = inlined_call_operand.vmem [shape: f32[1,256], index: 18, kind: input, shape index: {}]
  %s19 = inlined_call_operand.vmem [shape: f32[1,256], index: 19, kind: input, shape index: {}]
  %s20 = inlined_call_operand.vmem [shape: f32[256,128], index: 20, kind: input, shape index: {}]
  %s21 = inlined_call_operand.vmem [shape: f32[1,128], index: 21, kind: input, shape index: {}]
  %s22 = inlined_call_operand.vmem [shape: f32[16,128], index: 22, kind: output, shape index: {}, may-alias: {1,22}]
  %s23 = sld [smem:[#allocation0]]
  $region102: #{dmpnn_forward.3} parent=0
    _
  %s25 = ssub.s32 1, %s23
  %s26 = scalar_select 0, %s25, %s23
  $region1: #{dmpnn_forward.3} parent=0
    #allocation2 [shape = 'u8[512]{0}', space=smem, size = 0x200, scoped, tag = 'input window, operand 0, single buffered']
    #allocation3 [shape = 's32[1]{0}', space=sflag, size = 0x4, scoped, tag = 'scoped memory for dmpnn_forward.3']
    %27 = vsyncpa [#allocation3], 0
    // Predicated region
    $region2: #{dmpnn_forward.3} parent=1 // pred_check
      _
    $region3: #{dmpnn_forward.3} parent=1 // pred_check_branch
      %29 = sbr.rel (0) target = $region5
    $region4: #{dmpnn_forward.3} parent=1 // pred_region
      %s31 = ssub.s32 16, 16
      %32 = vsyncadd [#allocation3], %s31
      %s34 = sshll.u32 %s0, 4
      %s35 = int_to_ptr.vmem [resolvable:$true] %s34
      %37 = dma.vmem_to_smem %s35, 16, [#allocation2], [#allocation3]
    $region5: #{dmpnn_forward.3} parent=1 // pred_fallthru
      _
    // Predicated region
    $region6: #{dmpnn_forward.3} parent=1 // pred_check
      _
    $region7: #{dmpnn_forward.3} parent=1 // pred_check_branch
      %39 = sbr.rel (0) target = $region9
    $region8: #{dmpnn_forward.3} parent=1 // pred_region
      _
    $region9: #{dmpnn_forward.3} parent=1 // pred_fallthru
      _
    // Predicated region
    $region10: #{dmpnn_forward.3} parent=1 // pred_check
      _
    $region11: #{dmpnn_forward.3} parent=1 // pred_check_branch
      %41 = sbr.rel (0) target = $region13
    $region12: #{dmpnn_forward.3} parent=1 // pred_region
      _
    $region13: #{dmpnn_forward.3} parent=1 // pred_fallthru
      _
    // Predicated region
    $region14: #{dmpnn_forward.3} parent=1 // pred_check
      _
    $region15: #{dmpnn_forward.3} parent=1 // pred_check_branch
      %43 = sbr.rel (0) target = $region17
    $region16: #{dmpnn_forward.3} parent=1 // pred_region
      _
    $region17: #{dmpnn_forward.3} parent=1 // pred_fallthru
      _
    // Predicated region
    $region18: #{dmpnn_forward.3} parent=1 // pred_check
      _
    $region19: #{dmpnn_forward.3} parent=1 // pred_check_branch
      %45 = sbr.rel (0) target = $region21
    $region20: #{dmpnn_forward.3} parent=1 // pred_region
      _
    $region21: #{dmpnn_forward.3} parent=1 // pred_fallthru
      _
    // Predicated region
    $region22: #{dmpnn_forward.3} parent=1 // pred_check
      _
    $region23: #{dmpnn_forward.3} parent=1 // pred_check_branch
      %47 = sbr.rel (0) target = $region25
    $region24: #{dmpnn_forward.3} parent=1 // pred_region
      _
    $region25: #{dmpnn_forward.3} parent=1 // pred_fallthru
      _
    // Predicated region
    $region26: #{dmpnn_forward.3} parent=1 // pred_check
      _
    $region27: #{dmpnn_forward.3} parent=1 // pred_check_branch
      %49 = sbr.rel (0) target = $region29
    $region28: #{dmpnn_forward.3} parent=1 // pred_region
      _
    $region29: #{dmpnn_forward.3} parent=1 // pred_fallthru
      _
    // Predicated region
    $region30: #{dmpnn_forward.3} parent=1 // pred_check
      _
    $region31: #{dmpnn_forward.3} parent=1 // pred_check_branch
      %51 = sbr.rel (0) target = $region33
    $region32: #{dmpnn_forward.3} parent=1 // pred_region
      _
    $region33: #{dmpnn_forward.3} parent=1 // pred_fallthru
      _
    // Predicated region
    $region34: #{dmpnn_forward.3} parent=1 // pred_check
      _
    $region35: #{dmpnn_forward.3} parent=1 // pred_check_branch
      %53 = sbr.rel (0) target = $region37
    $region36: #{dmpnn_forward.3} parent=1 // pred_region
      _
    $region37: #{dmpnn_forward.3} parent=1 // pred_fallthru
      _
    // Predicated region
    $region38: #{dmpnn_forward.3} parent=1 // pred_check
      _
    $region39: #{dmpnn_forward.3} parent=1 // pred_check_branch
      %55 = sbr.rel (0) target = $region41
    $region40: #{dmpnn_forward.3} parent=1 // pred_region
      _
    $region41: #{dmpnn_forward.3} parent=1 // pred_fallthru
      _
    // Predicated region
    $region42: #{dmpnn_forward.3} parent=1 // pred_check
      _
    $region43: #{dmpnn_forward.3} parent=1 // pred_check_branch
      %57 = sbr.rel (0) target = $region45
    $region44: #{dmpnn_forward.3} parent=1 // pred_region
      _
    $region45: #{dmpnn_forward.3} parent=1 // pred_fallthru
      _
    // Predicated region
    $region46: #{dmpnn_forward.3} parent=1 // pred_check
      _
    $region47: #{dmpnn_forward.3} parent=1 // pred_check_branch
      %59 = sbr.rel (0) target = $region49
    $region48: #{dmpnn_forward.3} parent=1 // pred_region
      _
    $region49: #{dmpnn_forward.3} parent=1 // pred_fallthru
      _
    // Predicated region
    $region50: #{dmpnn_forward.3} parent=1 // pred_check
      _
    $region51: #{dmpnn_forward.3} parent=1 // pred_check_branch
      %61 = sbr.rel (0) target = $region53
    $region52: #{dmpnn_forward.3} parent=1 // pred_region
      _
    $region53: #{dmpnn_forward.3} parent=1 // pred_fallthru
      _
    // Predicated region
    $region54: #{dmpnn_forward.3} parent=1 // pred_check
      _
    $region55: #{dmpnn_forward.3} parent=1 // pred_check_branch
      %63 = sbr.rel (0) target = $region57
    $region56: #{dmpnn_forward.3} parent=1 // pred_region
      _
    $region57: #{dmpnn_forward.3} parent=1 // pred_fallthru
      _
    // Predicated region
    $region58: #{dmpnn_forward.3} parent=1 // pred_check
      _
    $region59: #{dmpnn_forward.3} parent=1 // pred_check_branch
      %65 = sbr.rel (0) target = $region61
    $region60: #{dmpnn_forward.3} parent=1 // pred_region
      _
    $region61: #{dmpnn_forward.3} parent=1 // pred_fallthru
      _
    // Predicated region
    $region62: #{dmpnn_forward.3} parent=1 // pred_check
      _
    $region63: #{dmpnn_forward.3} parent=1 // pred_check_branch
      %67 = sbr.rel (0) target = $region65
    $region64: #{dmpnn_forward.3} parent=1 // pred_region
      _
    $region65: #{dmpnn_forward.3} parent=1 // pred_fallthru
      _
    // Predicated region
    $region66: #{dmpnn_forward.3} parent=1 // pred_check
      _
    $region67: #{dmpnn_forward.3} parent=1 // pred_check_branch
      %69 = sbr.rel (0) target = $region69
    $region68: #{dmpnn_forward.3} parent=1 // pred_region
      _
    $region69: #{dmpnn_forward.3} parent=1 // pred_fallthru
      _
    // Predicated region
    $region70: #{dmpnn_forward.3} parent=1 // pred_check
      _
    $region71: #{dmpnn_forward.3} parent=1 // pred_check_branch
      %71 = sbr.rel (0) target = $region73
    $region72: #{dmpnn_forward.3} parent=1 // pred_region
      _
    $region73: #{dmpnn_forward.3} parent=1 // pred_fallthru
      _
    // Predicated region
    $region74: #{dmpnn_forward.3} parent=1 // pred_check
      _
    $region75: #{dmpnn_forward.3} parent=1 // pred_check_branch
      %73 = sbr.rel (0) target = $region77
    $region76: #{dmpnn_forward.3} parent=1 // pred_region
      _
    $region77: #{dmpnn_forward.3} parent=1 // pred_fallthru
      _
    // Predicated region
    $region78: #{dmpnn_forward.3} parent=1 // pred_check
      _
    $region79: #{dmpnn_forward.3} parent=1 // pred_check_branch
      %75 = sbr.rel (0) target = $region81
    $region80: #{dmpnn_forward.3} parent=1 // pred_region
      _
    $region81: #{dmpnn_forward.3} parent=1 // pred_fallthru
      _
    // Predicated region
    $region82: #{dmpnn_forward.3} parent=1 // pred_check
      _
    $region83: #{dmpnn_forward.3} parent=1 // pred_check_branch
      %77 = sbr.rel (0) target = $region85
    $region84: #{dmpnn_forward.3} parent=1 // pred_region
      _
    $region85: #{dmpnn_forward.3} parent=1 // pred_fallthru
      _
    // Predicated region
    $region86: #{dmpnn_forward.3} parent=1 // pred_check
      _
    $region87: #{dmpnn_forward.3} parent=1 // pred_check_branch
      %79 = sbr.rel (0) target = $region89
    $region88: #{dmpnn_forward.3} parent=1 // pred_region
      _
    $region89: #{dmpnn_forward.3} parent=1 // pred_fallthru
      _
    // Predicated region
    $region90: #{dmpnn_forward.3} parent=1 // pred_check
      _
    $region91: #{dmpnn_forward.3} parent=1 // pred_check_branch
      %81 = sbr.rel (0) target = $region93
    $region92: #{dmpnn_forward.3} parent=1 // pred_region
      %82 = dma.done [#allocation3], 16
    $region93: #{dmpnn_forward.3} parent=1 // pred_fallthru
      _
    %83 = sfence
    %v84 = vld [vmem:[%s1] sm:$0xff]
    %v85 = vld [vmem:[%s1 + $0x8] sm:$0xff]
    %v86 = vadd.f32 %v84, %v85
    %v87 = vrot.slane %v86, 4
    %v88 = vadd.f32 %v86, %v87
    %v89 = vrot.slane %v88, 2
    %v90 = vadd.f32 %v88, %v89
    %v91 = vrot.slane %v90, 1
    %v92 = vadd.f32 %v90, %v91
    %v93 = vrcp.pop 16.0
    %v94 = vmul.f32 %v92, %v93
    %v95 = vsub.f32 %v84, %v94
    %v96 = vsub.f32 %v85, %v94
    %v97 = vmul.f32 %v95, %v95
    %v98 = vmul.f32 %v96, %v96
    %v99 = vadd.f32 %v97, %v98
    %v100 = vrot.slane %v99, 4
    %v101 = vadd.f32 %v99, %v100
    %v102 = vrot.slane %v101, 2
    %v103 = vadd.f32 %v101, %v102
    %v104 = vrot.slane %v103, 1
    %v105 = vadd.f32 %v103, %v104
    %v106 = vmul.f32 %v105, %v93
    %v107 = vadd.f32 %v106, 1e-05
    %v108 = vrsqrt.pop %v107
    %v109 = vmul.f32 %v95, %v108
    %v110 = vmul.f32 %v96, %v108
    %v111 = vld [vmem:[%s2] sm:$0x1]
    %v113 = vlaneseq
    %v114 = vshrl.u32 %v113, 7
    %v115 = vsub.s32 0, %v114
    %v116 = vrot.slane %v111, %v115
    %v118 = vmul.f32 %v109, %v116
    %v119 = vmul.f32 %v110, %v116
    %v120 = vld [vmem:[%s3] sm:$0x1]
    %v122 = vlaneseq
    %v123 = vshrl.u32 %v122, 7
    %v124 = vsub.s32 0, %v123
    %v125 = vrot.slane %v120, %v124
    %v127 = vadd.f32 %v118, %v125
    %v128 = vadd.f32 %v119, %v125
    %v129 = vld [vmem:[%s4] sm:$0xff]
    %v130 = vld [vmem:[%s4 + $0x8] sm:$0xff]
    %v131 = vld [vmem:[%s4 + $0x10] sm:$0xff]
    %v132 = vld [vmem:[%s4 + $0x18] sm:$0xff]
    %v133 = vld [vmem:[%s4 + $0x20] sm:$0xff]
    %v134 = vld [vmem:[%s4 + $0x28] sm:$0xff]
    %v135 = vld [vmem:[%s4 + $0x30] sm:$0xff]
    %v136 = vld [vmem:[%s4 + $0x38] sm:$0xff]
    %v137 = vld [vmem:[%s4 + $0x40] sm:$0xff]
    %v138 = vld [vmem:[%s4 + $0x48] sm:$0xff]
    %v139 = vld [vmem:[%s4 + $0x50] sm:$0xff]
    %v140 = vld [vmem:[%s4 + $0x58] sm:$0xff]
    %v141 = vld [vmem:[%s4 + $0x60] sm:$0xff]
    %v142 = vld [vmem:[%s4 + $0x68] sm:$0xff]
    %v143 = vld [vmem:[%s4 + $0x70] sm:$0xff]
    %v144 = vld [vmem:[%s4 + $0x78] sm:$0xff]
    %v145 = vld [vmem:[%s4 + $0x80] sm:$0xff]
    %v146 = vld [vmem:[%s4 + $0x88] sm:$0xff]
    %v147 = vld [vmem:[%s4 + $0x90] sm:$0xff]
    %v148 = vld [vmem:[%s4 + $0x98] sm:$0xff]
    %v149 = vld [vmem:[%s4 + $0xa0] sm:$0xff]
    %v150 = vld [vmem:[%s4 + $0xa8] sm:$0xff]
    %v151 = vld [vmem:[%s4 + $0xb0] sm:$0xff]
    %v152 = vld [vmem:[%s4 + $0xb8] sm:$0xff]
    %v153 = vld [vmem:[%s4 + $0xc0] sm:$0xff]
    %v154 = vld [vmem:[%s4 + $0xc8] sm:$0xff]
    %v155 = vld [vmem:[%s4 + $0xd0] sm:$0xff]
    %v156 = vld [vmem:[%s4 + $0xd8] sm:$0xff]
    %v157 = vld [vmem:[%s4 + $0xe0] sm:$0xff]
    %v158 = vld [vmem:[%s4 + $0xe8] sm:$0xff]
    %v159 = vld [vmem:[%s4 + $0xf0] sm:$0xff]
    %v160 = vld [vmem:[%s4 + $0xf8] sm:$0xff]
    %v161 = vld [vmem:[%s5] sm:$0x3]
    %v163 = vlaneseq
    %v164 = vshrl.u32 %v163, 7
    %v165 = vsub.s32 0, %v164
    %v166 = vrot.slane %v161, %v165
    %v167 = vlaneseq
    %v168 = vshrl.u32 %v167, 7
    %v169 = vsub.s32 1, %v168
    %v170 = vrot.slane %v161, %v169
    %173 = vmatprep.subr.mxu0 %v160
    %174 = vmatpush1.msra.mxu0 %v159
    %175 = vmatprep.subr.mxu0 %v158
    %176 = vmatpush1.msra.mxu0 %v157
    %177 = vmatprep.subr.mxu0 %v156
    %178 = vmatpush1.msra.mxu0 %v155
    %179 = vmatprep.subr.mxu0 %v154
    %180 = vmatpush1.msra.mxu0 %v153
    %181 = vmatprep.subr.mxu0 %v152
    %182 = vmatpush1.msra.mxu0 %v151
    %183 = vmatprep.subr.mxu0 %v150
    %184 = vmatpush1.msra.mxu0 %v149
    %185 = vmatprep.subr.mxu0 %v148
    %186 = vmatpush1.msra.mxu0 %v147
    %187 = vmatprep.subr.mxu0 %v146
    %188 = vmatpush1.msra.mxu0 %v145
    %189 = vmatprep.subr.mxu0 %v144
    %190 = vmatpush1.msra.mxu0 %v143
    %191 = vmatprep.subr.mxu0 %v142
    %192 = vmatpush1.msra.mxu0 %v141
    %193 = vmatprep.subr.mxu0 %v140
    %194 = vmatpush1.msra.mxu0 %v139
    %195 = vmatprep.subr.mxu0 %v138
    %196 = vmatpush1.msra.mxu0 %v137
    %197 = vmatprep.subr.mxu0 %v136
    %198 = vmatpush1.msra.mxu0 %v135
    %199 = vmatprep.subr.mxu0 %v134
    %200 = vmatpush1.msra.mxu0 %v133
    %201 = vmatprep.subr.mxu0 %v132
    %202 = vmatpush1.msra.mxu0 %v131
    %203 = vmatprep.subr.mxu0 %v130
    %204 = vmatpush1.msra.mxu0 %v129
    %205 = vmatprep.subr.mxu0 0.0
    %206 = vmatpush2.msra.mxu0 0.0
    %207 = vmatprep.subr.mxu0 0.0
    %208 = vmatpush2.msra.mxu0 0.0
    %209 = vmatprep.subr.mxu0 0.0
    %210 = vmatpush2.msra.mxu0 0.0
    %211 = vmatprep.subr.mxu0 0.0
    %212 = vmatpush2.msra.mxu0 0.0
    %213 = vmatprep.subr.mxu0 0.0
    %214 = vmatpush2.msra.mxu0 0.0
    %215 = vmatprep.subr.mxu0 0.0
    %216 = vmatpush2.msra.mxu0 0.0
    %217 = vmatprep.subr.mxu0 0.0
    %218 = vmatpush2.msra.mxu0 0.0
    %219 = vmatprep.subr.mxu0 0.0
    %220 = vmatpush2.msra.mxu0 0.0
    %221 = vmatprep.subr.mxu0 0.0
    %222 = vmatpush2.msra.mxu0 0.0
    %223 = vmatprep.subr.mxu0 0.0
    %224 = vmatpush2.msra.mxu0 0.0
    %225 = vmatprep.subr.mxu0 0.0
    %226 = vmatpush2.msra.mxu0 0.0
    %227 = vmatprep.subr.mxu0 0.0
    %228 = vmatpush2.msra.mxu0 0.0
    %229 = vmatprep.subr.mxu0 0.0
    %230 = vmatpush2.msra.mxu0 0.0
    %231 = vmatprep.subr.mxu0 0.0
    %232 = vmatpush2.msra.mxu0 0.0
    %233 = vmatprep.subr.mxu0 0.0
    %234 = vmatpush2.msra.mxu0 0.0
    %235 = vmatprep.subr.mxu0 0.0
    %236 = vmatpush2.msra.mxu0 0.0
    %237 = vmatprep.mubr.f32.mxu0 0.0
    %238 = vmatmul.mubr.f32.gmra.mxu0 %v127
    %v239 = vpop.f32.mrf.mxu0
    %v240 = vadd.f32 %v166, %v239
    %v241 = vpop.f32.mrf.mxu0
    %v242 = vadd.f32 %v170, %v241
    %243 = vmatprep.mubr.f32.mxu0 0.0
    %244 = vmatmul.mubr.f32.gmra.mxu0 %v128
    %v245 = vpop.f32.mrf.mxu0
    %v246 = vadd.f32 %v166, %v245
    %v247 = vpop.f32.mrf.mxu0
    %v248 = vadd.f32 %v170, %v247
    %249 = vdwg.mxu0
    %v250 = vadd.f32 %v240, %v246
    %v251 = vrot.slane %v250, 4
    %v252 = vadd.f32 %v250, %v251
    %v253 = vrot.slane %v252, 2
    %v254 = vadd.f32 %v252, %v253
    %v255 = vrot.slane %v254, 1
    %v256 = vadd.f32 %v254, %v255
    %v257 = vadd.f32 %v242, %v248
    %v258 = vrot.slane %v257, 4
    %v259 = vadd.f32 %v257, %v258
    %v260 = vrot.slane %v259, 2
    %v261 = vadd.f32 %v259, %v260
    %v262 = vrot.slane %v261, 1
    %v263 = vadd.f32 %v261, %v262
    %v264 = vmul.f32 %v256, %v93
    %v265 = vmul.f32 %v263, %v93
    %v266 = vsub.f32 %v240, %v264
    %v267 = vsub.f32 %v242, %v265
    %v268 = vsub.f32 %v246, %v264
    %v269 = vsub.f32 %v248, %v265
    %v270 = vmul.f32 %v266, %v266
    %v271 = vmul.f32 %v267, %v267
    %v272 = vmul.f32 %v268, %v268
    %v273 = vmul.f32 %v269, %v269
    %v274 = vadd.f32 %v270, %v272
    %v275 = vrot.slane %v274, 4
    %v276 = vadd.f32 %v274, %v275
    %v277 = vrot.slane %v276, 2
    %v278 = vadd.f32 %v276, %v277
    %v279 = vrot.slane %v278, 1
    %v280 = vadd.f32 %v278, %v279
    %v281 = vadd.f32 %v271, %v273
    %v282 = vrot.slane %v281, 4
    %v283 = vadd.f32 %v281, %v282
    %v284 = vrot.slane %v283, 2
    %v285 = vadd.f32 %v283, %v284
    %v286 = vrot.slane %v285, 1
    %v287 = vadd.f32 %v285, %v286
    %v288 = vmul.f32 %v280, %v93
    %v289 = vmul.f32 %v287, %v93
    %v290 = vadd.f32 %v288, 1e-05
    %v291 = vadd.f32 %v289, 1e-05
    %v292 = vrsqrt.pop %v290
    %v293 = vrsqrt.pop %v291
    %v294 = vmul.f32 %v266, %v292
    %v295 = vmul.f32 %v267, %v293
    %v296 = vmul.f32 %v268, %v292
    %v297 = vmul.f32 %v269, %v293
    %v298 = vld [vmem:[%s6] sm:$0x3]
    %v300 = vlaneseq
    %v301 = vshrl.u32 %v300, 7
    %v302 = vsub.s32 0, %v301
    %v303 = vrot.slane %v298, %v302
    %v304 = vlaneseq
    %v305 = vshrl.u32 %v304, 7
    %v306 = vsub.s32 1, %v305
    %v307 = vrot.slane %v298, %v306
    %v310 = vmul.f32 %v294, %v303
    %v311 = vmul.f32 %v295, %v307
    %v312 = vmul.f32 %v296, %v303
    %v313 = vmul.f32 %v297, %v307
    %v314 = vld [vmem:[%s7] sm:$0x3]
    %v316 = vlaneseq
    %v317 = vshrl.u32 %v316, 7
    %v318 = vsub.s32 0, %v317
    %v319 = vrot.slane %v314, %v318
    %v320 = vlaneseq
    %v321 = vshrl.u32 %v320, 7
    %v322 = vsub.s32 1, %v321
    %v323 = vrot.slane %v314, %v322
    %v326 = vadd.f32 %v310, %v319
    %v327 = vadd.f32 %v311, %v323
    %v328 = vadd.f32 %v312, %v319
    %v329 = vadd.f32 %v313, %v323
    %s330 = sld [smem:[#allocation2]]
    %vm331 = vcmp.ge.f32.partialorder %v326, 0.0
    %vm332 = vcmp.ge.f32.partialorder %v327, 0.0
    %vm333 = vcmp.ge.f32.partialorder %v328, 0.0
    %vm334 = vcmp.ge.f32.partialorder %v329, 0.0
    %v335 = vstv %s330
    %v336 = vmul.f32 %v335, %v326
    %v337 = vmul.f32 %v335, %v327
    %v338 = vmul.f32 %v335, %v328
    %v339 = vmul.f32 %v335, %v329
    %v340 = vsel %vm331, %v326, %v336
    %v341 = vsel %vm332, %v327, %v337
    %v342 = vsel %vm333, %v328, %v338
    %v343 = vsel %vm334, %v329, %v339
    %v344 = vld [vmem:[%s8] sm:$0xff]
    %v345 = vld [vmem:[%s8 + $0x8] sm:$0xff]
    %v346 = vld [vmem:[%s8 + $0x10] sm:$0xff]
    %v347 = vld [vmem:[%s8 + $0x18] sm:$0xff]
    %v348 = vld [vmem:[%s8 + $0x20] sm:$0xff]
    %v349 = vld [vmem:[%s8 + $0x28] sm:$0xff]
    %v350 = vld [vmem:[%s8 + $0x30] sm:$0xff]
    %v351 = vld [vmem:[%s8 + $0x38] sm:$0xff]
    %v352 = vld [vmem:[%s8 + $0x40] sm:$0xff]
    %v353 = vld [vmem:[%s8 + $0x48] sm:$0xff]
    %v354 = vld [vmem:[%s8 + $0x50] sm:$0xff]
    %v355 = vld [vmem:[%s8 + $0x58] sm:$0xff]
    %v356 = vld [vmem:[%s8 + $0x60] sm:$0xff]
    %v357 = vld [vmem:[%s8 + $0x68] sm:$0xff]
    %v358 = vld [vmem:[%s8 + $0x70] sm:$0xff]
    %v359 = vld [vmem:[%s8 + $0x78] sm:$0xff]
    %v360 = vld [vmem:[%s8 + $0x80] sm:$0xff]
    %v361 = vld [vmem:[%s8 + $0x88] sm:$0xff]
    %v362 = vld [vmem:[%s8 + $0x90] sm:$0xff]
    %v363 = vld [vmem:[%s8 + $0x98] sm:$0xff]
    %v364 = vld [vmem:[%s8 + $0xa0] sm:$0xff]
    %v365 = vld [vmem:[%s8 + $0xa8] sm:$0xff]
    %v366 = vld [vmem:[%s8 + $0xb0] sm:$0xff]
    %v367 = vld [vmem:[%s8 + $0xb8] sm:$0xff]
    %v368 = vld [vmem:[%s8 + $0xc0] sm:$0xff]
    %v369 = vld [vmem:[%s8 + $0xc8] sm:$0xff]
    %v370 = vld [vmem:[%s8 + $0xd0] sm:$0xff]
    %v371 = vld [vmem:[%s8 + $0xd8] sm:$0xff]
    %v372 = vld [vmem:[%s8 + $0xe0] sm:$0xff]
    %v373 = vld [vmem:[%s8 + $0xe8] sm:$0xff]
    %v374 = vld [vmem:[%s8 + $0xf0] sm:$0xff]
    %v375 = vld [vmem:[%s8 + $0xf8] sm:$0xff]
    %v376 = vld [vmem:[%s8 + $0x100] sm:$0xff]
    %v377 = vld [vmem:[%s8 + $0x108] sm:$0xff]
    %v378 = vld [vmem:[%s8 + $0x110] sm:$0xff]
    %v379 = vld [vmem:[%s8 + $0x118] sm:$0xff]
    %v380 = vld [vmem:[%s8 + $0x120] sm:$0xff]
    %v381 = vld [vmem:[%s8 + $0x128] sm:$0xff]
    %v382 = vld [vmem:[%s8 + $0x130] sm:$0xff]
    %v383 = vld [vmem:[%s8 + $0x138] sm:$0xff]
    %v384 = vld [vmem:[%s8 + $0x140] sm:$0xff]
    %v385 = vld [vmem:[%s8 + $0x148] sm:$0xff]
    %v386 = vld [vmem:[%s8 + $0x150] sm:$0xff]
    %v387 = vld [vmem:[%s8 + $0x158] sm:$0xff]
    %v388 = vld [vmem:[%s8 + $0x160] sm:$0xff]
    %v389 = vld [vmem:[%s8 + $0x168] sm:$0xff]
    %v390 = vld [vmem:[%s8 + $0x170] sm:$0xff]
    %v391 = vld [vmem:[%s8 + $0x178] sm:$0xff]
    %v392 = vld [vmem:[%s8 + $0x180] sm:$0xff]
    %v393 = vld [vmem:[%s8 + $0x188] sm:$0xff]
    %v394 = vld [vmem:[%s8 + $0x190] sm:$0xff]
    %v395 = vld [vmem:[%s8 + $0x198] sm:$0xff]
    %v396 = vld [vmem:[%s8 + $0x1a0] sm:$0xff]
    %v397 = vld [vmem:[%s8 + $0x1a8] sm:$0xff]
    %v398 = vld [vmem:[%s8 + $0x1b0] sm:$0xff]
    %v399 = vld [vmem:[%s8 + $0x1b8] sm:$0xff]
    %v400 = vld [vmem:[%s8 + $0x1c0] sm:$0xff]
    %v401 = vld [vmem:[%s8 + $0x1c8] sm:$0xff]
    %v402 = vld [vmem:[%s8 + $0x1d0] sm:$0xff]
    %v403 = vld [vmem:[%s8 + $0x1d8] sm:$0xff]
    %v404 = vld [vmem:[%s8 + $0x1e0] sm:$0xff]
    %v405 = vld [vmem:[%s8 + $0x1e8] sm:$0xff]
    %v406 = vld [vmem:[%s8 + $0x1f0] sm:$0xff]
    %v407 = vld [vmem:[%s8 + $0x1f8] sm:$0xff]
    %v408 = vld [vmem:[%s9] sm:$0x3]
    %v410 = vlaneseq
    %v411 = vshrl.u32 %v410, 7
    %v412 = vsub.s32 0, %v411
    %v413 = vrot.slane %v408, %v412
    %v414 = vlaneseq
    %v415 = vshrl.u32 %v414, 7
    %v416 = vsub.s32 1, %v415
    %v417 = vrot.slane %v408, %v416
    %420 = vmatprep.subr.mxu0 %v375
    %421 = vmatpush1.msra.mxu0 %v374
    %422 = vmatprep.subr.mxu0 %v373
    %423 = vmatpush1.msra.mxu0 %v372
    %424 = vmatprep.subr.mxu0 %v371
    %425 = vmatpush1.msra.mxu0 %v370
    %426 = vmatprep.subr.mxu0 %v369
    %427 = vmatpush1.msra.mxu0 %v368
    %428 = vmatprep.subr.mxu0 %v367
    %429 = vmatpush1.msra.mxu0 %v366
    %430 = vmatprep.subr.mxu0 %v365
    %431 = vmatpush1.msra.mxu0 %v364
    %432 = vmatprep.subr.mxu0 %v363
    %433 = vmatpush1.msra.mxu0 %v362
    %434 = vmatprep.subr.mxu0 %v361
    %435 = vmatpush1.msra.mxu0 %v360
    %436 = vmatprep.subr.mxu0 %v359
    %437 = vmatpush1.msra.mxu0 %v358
    %438 = vmatprep.subr.mxu0 %v357
    %439 = vmatpush1.msra.mxu0 %v356
    %440 = vmatprep.subr.mxu0 %v355
    %441 = vmatpush1.msra.mxu0 %v354
    %442 = vmatprep.subr.mxu0 %v353
    %443 = vmatpush1.msra.mxu0 %v352
    %444 = vmatprep.subr.mxu0 %v351
    %445 = vmatpush1.msra.mxu0 %v350
    %446 = vmatprep.subr.mxu0 %v349
    %447 = vmatpush1.msra.mxu0 %v348
    %448 = vmatprep.subr.mxu0 %v347
    %449 = vmatpush1.msra.mxu0 %v346
    %450 = vmatprep.subr.mxu0 %v345
    %451 = vmatpush1.msra.mxu0 %v344
    %452 = vmatprep.subr.mxu0 %v407
    %453 = vmatpush2.msra.mxu0 %v406
    %454 = vmatprep.subr.mxu0 %v405
    %455 = vmatpush2.msra.mxu0 %v404
    %456 = vmatprep.subr.mxu0 %v403
    %457 = vmatpush2.msra.mxu0 %v402
    %458 = vmatprep.subr.mxu0 %v401
    %459 = vmatpush2.msra.mxu0 %v400
    %460 = vmatprep.subr.mxu0 %v399
    %461 = vmatpush2.msra.mxu0 %v398
    %462 = vmatprep.subr.mxu0 %v397
    %463 = vmatpush2.msra.mxu0 %v396
    %464 = vmatprep.subr.mxu0 %v395
    %465 = vmatpush2.msra.mxu0 %v394
    %466 = vmatprep.subr.mxu0 %v393
    %467 = vmatpush2.msra.mxu0 %v392
    %468 = vmatprep.subr.mxu0 %v391
    %469 = vmatpush2.msra.mxu0 %v390
    %470 = vmatprep.subr.mxu0 %v389
    %471 = vmatpush2.msra.mxu0 %v388
    %472 = vmatprep.subr.mxu0 %v387
    %473 = vmatpush2.msra.mxu0 %v386
    %474 = vmatprep.subr.mxu0 %v385
    %475 = vmatpush2.msra.mxu0 %v384
    %476 = vmatprep.subr.mxu0 %v383
    %477 = vmatpush2.msra.mxu0 %v382
    %478 = vmatprep.subr.mxu0 %v381
    %479 = vmatpush2.msra.mxu0 %v380
    %480 = vmatprep.subr.mxu0 %v379
    %481 = vmatpush2.msra.mxu0 %v378
    %482 = vmatprep.subr.mxu0 %v377
    %483 = vmatpush2.msra.mxu0 %v376
    %484 = vmatprep.mubr.f32.mxu0 %v341
    %485 = vmatmul.mubr.f32.gmra.mxu0 %v340
    %v486 = vpop.f32.mrf.mxu0
    %v487 = vadd.f32 %v413, %v486
    %v488 = vpop.f32.mrf.mxu0
    %v489 = vadd.f32 %v417, %v488
    %490 = vmatprep.mubr.f32.mxu0 %v343
    %491 = vmatmul.mubr.f32.gmra.mxu0 %v342
    %v492 = vpop.f32.mrf.mxu0
    %v493 = vadd.f32 %v413, %v492
    %v494 = vpop.f32.mrf.mxu0
    %v495 = vadd.f32 %v417, %v494
    %496 = vdwg.mxu0
    %v497 = vadd.f32 %v487, %v493
    %v498 = vrot.slane %v497, 4
    %v499 = vadd.f32 %v497, %v498
    %v500 = vrot.slane %v499, 2
    %v501 = vadd.f32 %v499, %v500
    %v502 = vrot.slane %v501, 1
    %v503 = vadd.f32 %v501, %v502
    %v504 = vadd.f32 %v489, %v495
    %v505 = vrot.slane %v504, 4
    %v506 = vadd.f32 %v504, %v505
    %v507 = vrot.slane %v506, 2
    %v508 = vadd.f32 %v506, %v507
    %v509 = vrot.slane %v508, 1
    %v510 = vadd.f32 %v508, %v509
    %v511 = vmul.f32 %v503, %v93
    %v512 = vmul.f32 %v510, %v93
    %v513 = vsub.f32 %v487, %v511
    %v514 = vsub.f32 %v489, %v512
    %v515 = vsub.f32 %v493, %v511
    %v516 = vsub.f32 %v495, %v512
    %v517 = vmul.f32 %v513, %v513
    %v518 = vmul.f32 %v514, %v514
    %v519 = vmul.f32 %v515, %v515
    %v520 = vmul.f32 %v516, %v516
    %v521 = vadd.f32 %v517, %v519
    %v522 = vrot.slane %v521, 4
    %v523 = vadd.f32 %v521, %v522
    %v524 = vrot.slane %v523, 2
    %v525 = vadd.f32 %v523, %v524
    %v526 = vrot.slane %v525, 1
    %v527 = vadd.f32 %v525, %v526
    %v528 = vadd.f32 %v518, %v520
    %v529 = vrot.slane %v528, 4
    %v530 = vadd.f32 %v528, %v529
    %v531 = vrot.slane %v530, 2
    %v532 = vadd.f32 %v530, %v531
    %v533 = vrot.slane %v532, 1
    %v534 = vadd.f32 %v532, %v533
    %v535 = vmul.f32 %v527, %v93
    %v536 = vmul.f32 %v534, %v93
    %v537 = vadd.f32 %v535, 1e-05
    %v538 = vadd.f32 %v536, 1e-05
    %v539 = vrsqrt.pop %v537
    %v540 = vrsqrt.pop %v538
    %v541 = vmul.f32 %v513, %v539
    %v542 = vmul.f32 %v514, %v540
    %v543 = vmul.f32 %v515, %v539
    %v544 = vmul.f32 %v516, %v540
    %v545 = vld [vmem:[%s10] sm:$0x3]
    %v547 = vlaneseq
    %v548 = vshrl.u32 %v547, 7
    %v549 = vsub.s32 0, %v548
    %v550 = vrot.slane %v545, %v549
    %v551 = vlaneseq
    %v552 = vshrl.u32 %v551, 7
    %v553 = vsub.s32 1, %v552
    %v554 = vrot.slane %v545, %v553
    %v557 = vmul.f32 %v541, %v550
    %v558 = vmul.f32 %v542, %v554
    %v559 = vmul.f32 %v543, %v550
    %v560 = vmul.f32 %v544, %v554
    %v561 = vld [vmem:[%s11] sm:$0x3]
    %v563 = vlaneseq
    %v564 = vshrl.u32 %v563, 7
    %v565 = vsub.s32 0, %v564
    %v566 = vrot.slane %v561, %v565
    %v567 = vlaneseq
    %v568 = vshrl.u32 %v567, 7
    %v569 = vsub.s32 1, %v568
    %v570 = vrot.slane %v561, %v569
    %v573 = vadd.f32 %v557, %v566
    %v574 = vadd.f32 %v558, %v570
    %v575 = vadd.f32 %v559, %v566
    %v576 = vadd.f32 %v560, %v570
    %s577 = sld [smem:[#allocation2 + $0x1]]
    %vm578 = vcmp.ge.f32.partialorder %v573, 0.0
    %vm579 = vcmp.ge.f32.partialorder %v574, 0.0
    %vm580 = vcmp.ge.f32.partialorder %v575, 0.0
    %vm581 = vcmp.ge.f32.partialorder %v576, 0.0
    %v582 = vstv %s577
    %v583 = vmul.f32 %v582, %v573
    %v584 = vmul.f32 %v582, %v574
    %v585 = vmul.f32 %v582, %v575
    %v586 = vmul.f32 %v582, %v576
    %v587 = vsel %vm578, %v573, %v583
    %v588 = vsel %vm579, %v574, %v584
    %v589 = vsel %vm580, %v575, %v585
    %v590 = vsel %vm581, %v576, %v586
    %v591 = vld [vmem:[%s12] sm:$0xff]
    %v592 = vld [vmem:[%s12 + $0x8] sm:$0xff]
    %v593 = vld [vmem:[%s12 + $0x10] sm:$0xff]
    %v594 = vld [vmem:[%s12 + $0x18] sm:$0xff]
    %v595 = vld [vmem:[%s12 + $0x20] sm:$0xff]
    %v596 = vld [vmem:[%s12 + $0x28] sm:$0xff]
    %v597 = vld [vmem:[%s12 + $0x30] sm:$0xff]
    %v598 = vld [vmem:[%s12 + $0x38] sm:$0xff]
    %v599 = vld [vmem:[%s12 + $0x40] sm:$0xff]
    %v600 = vld [vmem:[%s12 + $0x48] sm:$0xff]
    %v601 = vld [vmem:[%s12 + $0x50] sm:$0xff]
    %v602 = vld [vmem:[%s12 + $0x58] sm:$0xff]
    %v603 = vld [vmem:[%s12 + $0x60] sm:$0xff]
    %v604 = vld [vmem:[%s12 + $0x68] sm:$0xff]
    %v605 = vld [vmem:[%s12 + $0x70] sm:$0xff]
    %v606 = vld [vmem:[%s12 + $0x78] sm:$0xff]
    %v607 = vld [vmem:[%s12 + $0x80] sm:$0xff]
    %v608 = vld [vmem:[%s12 + $0x88] sm:$0xff]
    %v609 = vld [vmem:[%s12 + $0x90] sm:$0xff]
    %v610 = vld [vmem:[%s12 + $0x98] sm:$0xff]
    %v611 = vld [vmem:[%s12 + $0xa0] sm:$0xff]
    %v612 = vld [vmem:[%s12 + $0xa8] sm:$0xff]
    %v613 = vld [vmem:[%s12 + $0xb0] sm:$0xff]
    %v614 = vld [vmem:[%s12 + $0xb8] sm:$0xff]
    %v615 = vld [vmem:[%s12 + $0xc0] sm:$0xff]
    %v616 = vld [vmem:[%s12 + $0xc8] sm:$0xff]
    %v617 = vld [vmem:[%s12 + $0xd0] sm:$0xff]
    %v618 = vld [vmem:[%s12 + $0xd8] sm:$0xff]
    %v619 = vld [vmem:[%s12 + $0xe0] sm:$0xff]
    %v620 = vld [vmem:[%s12 + $0xe8] sm:$0xff]
    %v621 = vld [vmem:[%s12 + $0xf0] sm:$0xff]
    %v622 = vld [vmem:[%s12 + $0xf8] sm:$0xff]
    %v623 = vld [vmem:[%s12 + $0x100] sm:$0xff]
    %v624 = vld [vmem:[%s12 + $0x108] sm:$0xff]
    %v625 = vld [vmem:[%s12 + $0x110] sm:$0xff]
    %v626 = vld [vmem:[%s12 + $0x118] sm:$0xff]
    %v627 = vld [vmem:[%s12 + $0x120] sm:$0xff]
    %v628 = vld [vmem:[%s12 + $0x128] sm:$0xff]
    %v629 = vld [vmem:[%s12 + $0x130] sm:$0xff]
    %v630 = vld [vmem:[%s12 + $0x138] sm:$0xff]
    %v631 = vld [vmem:[%s12 + $0x140] sm:$0xff]
    %v632 = vld [vmem:[%s12 + $0x148] sm:$0xff]
    %v633 = vld [vmem:[%s12 + $0x150] sm:$0xff]
    %v634 = vld [vmem:[%s12 + $0x158] sm:$0xff]
    %v635 = vld [vmem:[%s12 + $0x160] sm:$0xff]
    %v636 = vld [vmem:[%s12 + $0x168] sm:$0xff]
    %v637 = vld [vmem:[%s12 + $0x170] sm:$0xff]
    %v638 = vld [vmem:[%s12 + $0x178] sm:$0xff]
    %v639 = vld [vmem:[%s12 + $0x180] sm:$0xff]
    %v640 = vld [vmem:[%s12 + $0x188] sm:$0xff]
    %v641 = vld [vmem:[%s12 + $0x190] sm:$0xff]
    %v642 = vld [vmem:[%s12 + $0x198] sm:$0xff]
    %v643 = vld [vmem:[%s12 + $0x1a0] sm:$0xff]
    %v644 = vld [vmem:[%s12 + $0x1a8] sm:$0xff]
    %v645 = vld [vmem:[%s12 + $0x1b0] sm:$0xff]
    %v646 = vld [vmem:[%s12 + $0x1b8] sm:$0xff]
    %v647 = vld [vmem:[%s12 + $0x1c0] sm:$0xff]
    %v648 = vld [vmem:[%s12 + $0x1c8] sm:$0xff]
    %v649 = vld [vmem:[%s12 + $0x1d0] sm:$0xff]
    %v650 = vld [vmem:[%s12 + $0x1d8] sm:$0xff]
    %v651 = vld [vmem:[%s12 + $0x1e0] sm:$0xff]
    %v652 = vld [vmem:[%s12 + $0x1e8] sm:$0xff]
    %v653 = vld [vmem:[%s12 + $0x1f0] sm:$0xff]
    %v654 = vld [vmem:[%s12 + $0x1f8] sm:$0xff]
    %v655 = vld [vmem:[%s13] sm:$0x3]
    %v657 = vlaneseq
    %v658 = vshrl.u32 %v657, 7
    %v659 = vsub.s32 0, %v658
    %v660 = vrot.slane %v655, %v659
    %v661 = vlaneseq
    %v662 = vshrl.u32 %v661, 7
    %v663 = vsub.s32 1, %v662
    %v664 = vrot.slane %v655, %v663
    %667 = vmatprep.subr.mxu0 %v622
    %668 = vmatpush1.msra.mxu0 %v621
    %669 = vmatprep.subr.mxu0 %v620
    %670 = vmatpush1.msra.mxu0 %v619
    %671 = vmatprep.subr.mxu0 %v618
    %672 = vmatpush1.msra.mxu0 %v617
    %673 = vmatprep.subr.mxu0 %v616
    %674 = vmatpush1.msra.mxu0 %v615
    %675 = vmatprep.subr.mxu0 %v614
    %676 = vmatpush1.msra.mxu0 %v613
    %677 = vmatprep.subr.mxu0 %v612
    %678 = vmatpush1.msra.mxu0 %v611
    %679 = vmatprep.subr.mxu0 %v610
    %680 = vmatpush1.msra.mxu0 %v609
    %681 = vmatprep.subr.mxu0 %v608
    %682 = vmatpush1.msra.mxu0 %v607
    %683 = vmatprep.subr.mxu0 %v606
    %684 = vmatpush1.msra.mxu0 %v605
    %685 = vmatprep.subr.mxu0 %v604
    %686 = vmatpush1.msra.mxu0 %v603
    %687 = vmatprep.subr.mxu0 %v602
    %688 = vmatpush1.msra.mxu0 %v601
    %689 = vmatprep.subr.mxu0 %v600
    %690 = vmatpush1.msra.mxu0 %v599
    %691 = vmatprep.subr.mxu0 %v598
    %692 = vmatpush1.msra.mxu0 %v597
    %693 = vmatprep.subr.mxu0 %v596
    %694 = vmatpush1.msra.mxu0 %v595
    %695 = vmatprep.subr.mxu0 %v594
    %696 = vmatpush1.msra.mxu0 %v593
    %697 = vmatprep.subr.mxu0 %v592
    %698 = vmatpush1.msra.mxu0 %v591
    %699 = vmatprep.subr.mxu0 %v654
    %700 = vmatpush2.msra.mxu0 %v653
    %701 = vmatprep.subr.mxu0 %v652
    %702 = vmatpush2.msra.mxu0 %v651
    %703 = vmatprep.subr.mxu0 %v650
    %704 = vmatpush2.msra.mxu0 %v649
    %705 = vmatprep.subr.mxu0 %v648
    %706 = vmatpush2.msra.mxu0 %v647
    %707 = vmatprep.subr.mxu0 %v646
    %708 = vmatpush2.msra.mxu0 %v645
    %709 = vmatprep.subr.mxu0 %v644
    %710 = vmatpush2.msra.mxu0 %v643
    %711 = vmatprep.subr.mxu0 %v642
    %712 = vmatpush2.msra.mxu0 %v641
    %713 = vmatprep.subr.mxu0 %v640
    %714 = vmatpush2.msra.mxu0 %v639
    %715 = vmatprep.subr.mxu0 %v638
    %716 = vmatpush2.msra.mxu0 %v637
    %717 = vmatprep.subr.mxu0 %v636
    %718 = vmatpush2.msra.mxu0 %v635
    %719 = vmatprep.subr.mxu0 %v634
    %720 = vmatpush2.msra.mxu0 %v633
    %721 = vmatprep.subr.mxu0 %v632
    %722 = vmatpush2.msra.mxu0 %v631
    %723 = vmatprep.subr.mxu0 %v630
    %724 = vmatpush2.msra.mxu0 %v629
    %725 = vmatprep.subr.mxu0 %v628
    %726 = vmatpush2.msra.mxu0 %v627
    %727 = vmatprep.subr.mxu0 %v626
    %728 = vmatpush2.msra.mxu0 %v625
    %729 = vmatprep.subr.mxu0 %v624
    %730 = vmatpush2.msra.mxu0 %v623
    %731 = vmatprep.mubr.f32.mxu0 %v588
    %732 = vmatmul.mubr.f32.gmra.mxu0 %v587
    %v733 = vpop.f32.mrf.mxu0
    %v734 = vadd.f32 %v660, %v733
    %v735 = vpop.f32.mrf.mxu0
    %v736 = vadd.f32 %v664, %v735
    %737 = vmatprep.mubr.f32.mxu0 %v590
    %738 = vmatmul.mubr.f32.gmra.mxu0 %v589
    %v739 = vpop.f32.mrf.mxu0
    %v740 = vadd.f32 %v660, %v739
    %v741 = vpop.f32.mrf.mxu0
    %v742 = vadd.f32 %v664, %v741
    %743 = vdwg.mxu0
    %v744 = vadd.f32 %v734, %v240
    %v745 = vadd.f32 %v736, %v242
    %v746 = vadd.f32 %v740, %v246
    %v747 = vadd.f32 %v742, %v248
    %v748 = vmul.f32 %v744, 0.5
    %v749 = vmul.f32 %v745, 0.5
    %v750 = vmul.f32 %v746, 0.5
    %v751 = vmul.f32 %v747, 0.5
    %v752 = vadd.f32 %v748, %v750
    %v753 = vrot.slane %v752, 4
    %v754 = vadd.f32 %v752, %v753
    %v755 = vrot.slane %v754, 2
    %v756 = vadd.f32 %v754, %v755
    %v757 = vrot.slane %v756, 1
    %v758 = vadd.f32 %v756, %v757
    %v759 = vadd.f32 %v749, %v751
    %v760 = vrot.slane %v759, 4
    %v761 = vadd.f32 %v759, %v760
    %v762 = vrot.slane %v761, 2
    %v763 = vadd.f32 %v761, %v762
    %v764 = vrot.slane %v763, 1
    %v765 = vadd.f32 %v763, %v764
    %v766 = vmul.f32 %v758, %v93
    %v767 = vmul.f32 %v765, %v93
    %v768 = vsub.f32 %v748, %v766
    %v769 = vsub.f32 %v749, %v767
    %v770 = vsub.f32 %v750, %v766
    %v771 = vsub.f32 %v751, %v767
    %v772 = vmul.f32 %v768, %v768
    %v773 = vmul.f32 %v769, %v769
    %v774 = vmul.f32 %v770, %v770
    %v775 = vmul.f32 %v771, %v771
    %v776 = vadd.f32 %v772, %v774
    %v777 = vrot.slane %v776, 4
    %v778 = vadd.f32 %v776, %v777
    %v779 = vrot.slane %v778, 2
    %v780 = vadd.f32 %v778, %v779
    %v781 = vrot.slane %v780, 1
    %v782 = vadd.f32 %v780, %v781
    %v783 = vadd.f32 %v773, %v775
    %v784 = vrot.slane %v783, 4
    %v785 = vadd.f32 %v783, %v784
    %v786 = vrot.slane %v785, 2
    %v787 = vadd.f32 %v785, %v786
    %v788 = vrot.slane %v787, 1
    %v789 = vadd.f32 %v787, %v788
    %v790 = vmul.f32 %v782, %v93
    %v791 = vmul.f32 %v789, %v93
    %v792 = vadd.f32 %v790, 1e-05
    %v793 = vadd.f32 %v791, 1e-05
    %v794 = vrsqrt.pop %v792
    %v795 = vrsqrt.pop %v793
    %v796 = vmul.f32 %v768, %v794
    %v797 = vmul.f32 %v769, %v795
    %v798 = vmul.f32 %v770, %v794
    %v799 = vmul.f32 %v771, %v795
    %v800 = vld [vmem:[%s14] sm:$0x3]
    %v802 = vlaneseq
    %v803 = vshrl.u32 %v802, 7
    %v804 = vsub.s32 0, %v803
    %v805 = vrot.slane %v800, %v804
    %v806 = vlaneseq
    %v807 = vshrl.u32 %v806, 7
    %v808 = vsub.s32 1, %v807
    %v809 = vrot.slane %v800, %v808
    %v812 = vmul.f32 %v796, %v805
    %v813 = vmul.f32 %v797, %v809
    %v814 = vmul.f32 %v798, %v805
    %v815 = vmul.f32 %v799, %v809
    %v816 = vld [vmem:[%s15] sm:$0x3]
    %v818 = vlaneseq
    %v819 = vshrl.u32 %v818, 7
    %v820 = vsub.s32 0, %v819
    %v821 = vrot.slane %v816, %v820
    %v822 = vlaneseq
    %v823 = vshrl.u32 %v822, 7
    %v824 = vsub.s32 1, %v823
    %v825 = vrot.slane %v816, %v824
    %v828 = vadd.f32 %v812, %v821
    %v829 = vadd.f32 %v813, %v825
    %v830 = vadd.f32 %v814, %v821
    %v831 = vadd.f32 %v815, %v825
    %s832 = sld [smem:[#allocation2 + $0x2]]
    %vm833 = vcmp.ge.f32.partialorder %v828, 0.0
    %vm834 = vcmp.ge.f32.partialorder %v829, 0.0
    %vm835 = vcmp.ge.f32.partialorder %v830, 0.0
    %vm836 = vcmp.ge.f32.partialorder %v831, 0.0
    %v837 = vstv %s832
    %v838 = vmul.f32 %v837, %v828
    %v839 = vmul.f32 %v837, %v829
    %v840 = vmul.f32 %v837, %v830
    %v841 = vmul.f32 %v837, %v831
    %v842 = vsel %vm833, %v828, %v838
    %v843 = vsel %vm834, %v829, %v839
    %v844 = vsel %vm835, %v830, %v840
    %v845 = vsel %vm836, %v831, %v841
    %v846 = vld [vmem:[%s16] sm:$0xff]
    %v847 = vld [vmem:[%s16 + $0x8] sm:$0xff]
    %v848 = vld [vmem:[%s16 + $0x10] sm:$0xff]
    %v849 = vld [vmem:[%s16 + $0x18] sm:$0xff]
    %v850 = vld [vmem:[%s16 + $0x20] sm:$0xff]
    %v851 = vld [vmem:[%s16 + $0x28] sm:$0xff]
    %v852 = vld [vmem:[%s16 + $0x30] sm:$0xff]
    %v853 = vld [vmem:[%s16 + $0x38] sm:$0xff]
    %v854 = vld [vmem:[%s16 + $0x40] sm:$0xff]
    %v855 = vld [vmem:[%s16 + $0x48] sm:$0xff]
    %v856 = vld [vmem:[%s16 + $0x50] sm:$0xff]
    %v857 = vld [vmem:[%s16 + $0x58] sm:$0xff]
    %v858 = vld [vmem:[%s16 + $0x60] sm:$0xff]
    %v859 = vld [vmem:[%s16 + $0x68] sm:$0xff]
    %v860 = vld [vmem:[%s16 + $0x70] sm:$0xff]
    %v861 = vld [vmem:[%s16 + $0x78] sm:$0xff]
    %v862 = vld [vmem:[%s16 + $0x80] sm:$0xff]
    %v863 = vld [vmem:[%s16 + $0x88] sm:$0xff]
    %v864 = vld [vmem:[%s16 + $0x90] sm:$0xff]
    %v865 = vld [vmem:[%s16 + $0x98] sm:$0xff]
    %v866 = vld [vmem:[%s16 + $0xa0] sm:$0xff]
    %v867 = vld [vmem:[%s16 + $0xa8] sm:$0xff]
    %v868 = vld [vmem:[%s16 + $0xb0] sm:$0xff]
    %v869 = vld [vmem:[%s16 + $0xb8] sm:$0xff]
    %v870 = vld [vmem:[%s16 + $0xc0] sm:$0xff]
    %v871 = vld [vmem:[%s16 + $0xc8] sm:$0xff]
    %v872 = vld [vmem:[%s16 + $0xd0] sm:$0xff]
    %v873 = vld [vmem:[%s16 + $0xd8] sm:$0xff]
    %v874 = vld [vmem:[%s16 + $0xe0] sm:$0xff]
    %v875 = vld [vmem:[%s16 + $0xe8] sm:$0xff]
    %v876 = vld [vmem:[%s16 + $0xf0] sm:$0xff]
    %v877 = vld [vmem:[%s16 + $0xf8] sm:$0xff]
    %v878 = vld [vmem:[%s16 + $0x100] sm:$0xff]
    %v879 = vld [vmem:[%s16 + $0x108] sm:$0xff]
    %v880 = vld [vmem:[%s16 + $0x110] sm:$0xff]
    %v881 = vld [vmem:[%s16 + $0x118] sm:$0xff]
    %v882 = vld [vmem:[%s16 + $0x120] sm:$0xff]
    %v883 = vld [vmem:[%s16 + $0x128] sm:$0xff]
    %v884 = vld [vmem:[%s16 + $0x130] sm:$0xff]
    %v885 = vld [vmem:[%s16 + $0x138] sm:$0xff]
    %v886 = vld [vmem:[%s16 + $0x140] sm:$0xff]
    %v887 = vld [vmem:[%s16 + $0x148] sm:$0xff]
    %v888 = vld [vmem:[%s16 + $0x150] sm:$0xff]
    %v889 = vld [vmem:[%s16 + $0x158] sm:$0xff]
    %v890 = vld [vmem:[%s16 + $0x160] sm:$0xff]
    %v891 = vld [vmem:[%s16 + $0x168] sm:$0xff]
    %v892 = vld [vmem:[%s16 + $0x170] sm:$0xff]
    %v893 = vld [vmem:[%s16 + $0x178] sm:$0xff]
    %v894 = vld [vmem:[%s16 + $0x180] sm:$0xff]
    %v895 = vld [vmem:[%s16 + $0x188] sm:$0xff]
    %v896 = vld [vmem:[%s16 + $0x190] sm:$0xff]
    %v897 = vld [vmem:[%s16 + $0x198] sm:$0xff]
    %v898 = vld [vmem:[%s16 + $0x1a0] sm:$0xff]
    %v899 = vld [vmem:[%s16 + $0x1a8] sm:$0xff]
    %v900 = vld [vmem:[%s16 + $0x1b0] sm:$0xff]
    %v901 = vld [vmem:[%s16 + $0x1b8] sm:$0xff]
    %v902 = vld [vmem:[%s16 + $0x1c0] sm:$0xff]
    %v903 = vld [vmem:[%s16 + $0x1c8] sm:$0xff]
    %v904 = vld [vmem:[%s16 + $0x1d0] sm:$0xff]
    %v905 = vld [vmem:[%s16 + $0x1d8] sm:$0xff]
    %v906 = vld [vmem:[%s16 + $0x1e0] sm:$0xff]
    %v907 = vld [vmem:[%s16 + $0x1e8] sm:$0xff]
    %v908 = vld [vmem:[%s16 + $0x1f0] sm:$0xff]
    %v909 = vld [vmem:[%s16 + $0x1f8] sm:$0xff]
    %v910 = vld [vmem:[%s17] sm:$0x3]
    %v912 = vlaneseq
    %v913 = vshrl.u32 %v912, 7
    %v914 = vsub.s32 0, %v913
    %v915 = vrot.slane %v910, %v914
    %v916 = vlaneseq
    %v917 = vshrl.u32 %v916, 7
    %v918 = vsub.s32 1, %v917
    %v919 = vrot.slane %v910, %v918
    %922 = vmatprep.subr.mxu0 %v877
    %923 = vmatpush1.msra.mxu0 %v876
    %924 = vmatprep.subr.mxu0 %v875
    %925 = vmatpush1.msra.mxu0 %v874
    %926 = vmatprep.subr.mxu0 %v873
    %927 = vmatpush1.msra.mxu0 %v872
    %928 = vmatprep.subr.mxu0 %v871
    %929 = vmatpush1.msra.mxu0 %v870
    %930 = vmatprep.subr.mxu0 %v869
    %931 = vmatpush1.msra.mxu0 %v868
    %932 = vmatprep.subr.mxu0 %v867
    %933 = vmatpush1.msra.mxu0 %v866
    %934 = vmatprep.subr.mxu0 %v865
    %935 = vmatpush1.msra.mxu0 %v864
    %936 = vmatprep.subr.mxu0 %v863
    %937 = vmatpush1.msra.mxu0 %v862
    %938 = vmatprep.subr.mxu0 %v861
    %939 = vmatpush1.msra.mxu0 %v860
    %940 = vmatprep.subr.mxu0 %v859
    %941 = vmatpush1.msra.mxu0 %v858
    %942 = vmatprep.subr.mxu0 %v857
    %943 = vmatpush1.msra.mxu0 %v856
    %944 = vmatprep.subr.mxu0 %v855
    %945 = vmatpush1.msra.mxu0 %v854
    %946 = vmatprep.subr.mxu0 %v853
    %947 = vmatpush1.msra.mxu0 %v852
    %948 = vmatprep.subr.mxu0 %v851
    %949 = vmatpush1.msra.mxu0 %v850
    %950 = vmatprep.subr.mxu0 %v849
    %951 = vmatpush1.msra.mxu0 %v848
    %952 = vmatprep.subr.mxu0 %v847
    %953 = vmatpush1.msra.mxu0 %v846
    %954 = vmatprep.subr.mxu0 %v909
    %955 = vmatpush2.msra.mxu0 %v908
    %956 = vmatprep.subr.mxu0 %v907
    %957 = vmatpush2.msra.mxu0 %v906
    %958 = vmatprep.subr.mxu0 %v905
    %959 = vmatpush2.msra.mxu0 %v904
    %960 = vmatprep.subr.mxu0 %v903
    %961 = vmatpush2.msra.mxu0 %v902
    %962 = vmatprep.subr.mxu0 %v901
    %963 = vmatpush2.msra.mxu0 %v900
    %964 = vmatprep.subr.mxu0 %v899
    %965 = vmatpush2.msra.mxu0 %v898
    %966 = vmatprep.subr.mxu0 %v897
    %967 = vmatpush2.msra.mxu0 %v896
    %968 = vmatprep.subr.mxu0 %v895
    %969 = vmatpush2.msra.mxu0 %v894
    %970 = vmatprep.subr.mxu0 %v893
    %971 = vmatpush2.msra.mxu0 %v892
    %972 = vmatprep.subr.mxu0 %v891
    %973 = vmatpush2.msra.mxu0 %v890
    %974 = vmatprep.subr.mxu0 %v889
    %975 = vmatpush2.msra.mxu0 %v888
    %976 = vmatprep.subr.mxu0 %v887
    %977 = vmatpush2.msra.mxu0 %v886
    %978 = vmatprep.subr.mxu0 %v885
    %979 = vmatpush2.msra.mxu0 %v884
    %980 = vmatprep.subr.mxu0 %v883
    %981 = vmatpush2.msra.mxu0 %v882
    %982 = vmatprep.subr.mxu0 %v881
    %983 = vmatpush2.msra.mxu0 %v880
    %984 = vmatprep.subr.mxu0 %v879
    %985 = vmatpush2.msra.mxu0 %v878
    %986 = vmatprep.mubr.f32.mxu0 %v843
    %987 = vmatmul.mubr.f32.gmra.mxu0 %v842
    %v988 = vpop.f32.mrf.mxu0
    %v989 = vadd.f32 %v915, %v988
    %v990 = vpop.f32.mrf.mxu0
    %v991 = vadd.f32 %v919, %v990
    %992 = vmatprep.mubr.f32.mxu0 %v845
    %993 = vmatmul.mubr.f32.gmra.mxu0 %v844
    %v994 = vpop.f32.mrf.mxu0
    %v995 = vadd.f32 %v915, %v994
    %v996 = vpop.f32.mrf.mxu0
    %v997 = vadd.f32 %v919, %v996
    %998 = vdwg.mxu0
    %v999 = vadd.f32 %v989, %v748
    %v1000 = vadd.f32 %v991, %v749
    %v1001 = vadd.f32 %v995, %v750
    %v1002 = vadd.f32 %v997, %v751
    %v1003 = vmul.f32 %v999, 0.5
    %v1004 = vmul.f32 %v1000, 0.5
    %v1005 = vmul.f32 %v1001, 0.5
    %v1006 = vmul.f32 %v1002, 0.5
    %v1007 = vadd.f32 %v1003, %v1005
    %v1008 = vrot.slane %v1007, 4
    %v1009 = vadd.f32 %v1007, %v1008
    %v1010 = vrot.slane %v1009, 2
    %v1011 = vadd.f32 %v1009, %v1010
    %v1012 = vrot.slane %v1011, 1
    %v1013 = vadd.f32 %v1011, %v1012
    %v1014 = vadd.f32 %v1004, %v1006
    %v1015 = vrot.slane %v1014, 4
    %v1016 = vadd.f32 %v1014, %v1015
    %v1017 = vrot.slane %v1016, 2
    %v1018 = vadd.f32 %v1016, %v1017
    %v1019 = vrot.slane %v1018, 1
    %v1020 = vadd.f32 %v1018, %v1019
    %v1021 = vmul.f32 %v1013, %v93
    %v1022 = vmul.f32 %v1020, %v93
    %v1023 = vsub.f32 %v1003, %v1021
    %v1024 = vsub.f32 %v1004, %v1022
    %v1025 = vsub.f32 %v1005, %v1021
    %v1026 = vsub.f32 %v1006, %v1022
    %v1027 = vmul.f32 %v1023, %v1023
    %v1028 = vmul.f32 %v1024, %v1024
    %v1029 = vmul.f32 %v1025, %v1025
    %v1030 = vmul.f32 %v1026, %v1026
    %v1031 = vadd.f32 %v1027, %v1029
    %v1032 = vrot.slane %v1031, 4
    %v1033 = vadd.f32 %v1031, %v1032
    %v1034 = vrot.slane %v1033, 2
    %v1035 = vadd.f32 %v1033, %v1034
    %v1036 = vrot.slane %v1035, 1
    %v1037 = vadd.f32 %v1035, %v1036
    %v1038 = vadd.f32 %v1028, %v1030
    %v1039 = vrot.slane %v1038, 4
    %v1040 = vadd.f32 %v1038, %v1039
    %v1041 = vrot.slane %v1040, 2
    %v1042 = vadd.f32 %v1040, %v1041
    %v1043 = vrot.slane %v1042, 1
    %v1044 = vadd.f32 %v1042, %v1043
    %v1045 = vmul.f32 %v1037, %v93
    %v1046 = vmul.f32 %v1044, %v93
    %v1047 = vadd.f32 %v1045, 1e-05
    %v1048 = vadd.f32 %v1046, 1e-05
    %v1049 = vrsqrt.pop %v1047
    %v1050 = vrsqrt.pop %v1048
    %v1051 = vmul.f32 %v1023, %v1049
    %v1052 = vmul.f32 %v1024, %v1050
    %v1053 = vmul.f32 %v1025, %v1049
    %v1054 = vmul.f32 %v1026, %v1050
    %v1055 = vld [vmem:[%s18] sm:$0x3]
    %v1057 = vlaneseq
    %v1058 = vshrl.u32 %v1057, 7
    %v1059 = vsub.s32 0, %v1058
    %v1060 = vrot.slane %v1055, %v1059
    %v1061 = vlaneseq
    %v1062 = vshrl.u32 %v1061, 7
    %v1063 = vsub.s32 1, %v1062
    %v1064 = vrot.slane %v1055, %v1063
    %v1067 = vmul.f32 %v1051, %v1060
    %v1068 = vmul.f32 %v1052, %v1064
    %v1069 = vmul.f32 %v1053, %v1060
    %v1070 = vmul.f32 %v1054, %v1064
    %v1071 = vld [vmem:[%s19] sm:$0x3]
    %v1073 = vlaneseq
    %v1074 = vshrl.u32 %v1073, 7
    %v1075 = vsub.s32 0, %v1074
    %v1076 = vrot.slane %v1071, %v1075
    %v1077 = vlaneseq
    %v1078 = vshrl.u32 %v1077, 7
    %v1079 = vsub.s32 1, %v1078
    %v1080 = vrot.slane %v1071, %v1079
    %v1083 = vadd.f32 %v1067, %v1076
    %v1084 = vadd.f32 %v1068, %v1080
    %v1085 = vadd.f32 %v1069, %v1076
    %v1086 = vadd.f32 %v1070, %v1080
    %s1087 = sld [smem:[#allocation2 + $0x3]]
    %vm1088 = vcmp.ge.f32.partialorder %v1083, 0.0
    %vm1089 = vcmp.ge.f32.partialorder %v1084, 0.0
    %vm1090 = vcmp.ge.f32.partialorder %v1085, 0.0
    %vm1091 = vcmp.ge.f32.partialorder %v1086, 0.0
    %v1092 = vstv %s1087
    %v1093 = vmul.f32 %v1092, %v1083
    %v1094 = vmul.f32 %v1092, %v1084
    %v1095 = vmul.f32 %v1092, %v1085
    %v1096 = vmul.f32 %v1092, %v1086
    %v1097 = vsel %vm1088, %v1083, %v1093
    %v1098 = vsel %vm1089, %v1084, %v1094
    %v1099 = vsel %vm1090, %v1085, %v1095
    %v1100 = vsel %vm1091, %v1086, %v1096
    %v1101 = vld [vmem:[%s20] sm:$0xff]
    %v1102 = vld [vmem:[%s20 + $0x8] sm:$0xff]
    %v1103 = vld [vmem:[%s20 + $0x10] sm:$0xff]
    %v1104 = vld [vmem:[%s20 + $0x18] sm:$0xff]
    %v1105 = vld [vmem:[%s20 + $0x20] sm:$0xff]
    %v1106 = vld [vmem:[%s20 + $0x28] sm:$0xff]
    %v1107 = vld [vmem:[%s20 + $0x30] sm:$0xff]
    %v1108 = vld [vmem:[%s20 + $0x38] sm:$0xff]
    %v1109 = vld [vmem:[%s20 + $0x40] sm:$0xff]
    %v1110 = vld [vmem:[%s20 + $0x48] sm:$0xff]
    %v1111 = vld [vmem:[%s20 + $0x50] sm:$0xff]
    %v1112 = vld [vmem:[%s20 + $0x58] sm:$0xff]
    %v1113 = vld [vmem:[%s20 + $0x60] sm:$0xff]
    %v1114 = vld [vmem:[%s20 + $0x68] sm:$0xff]
    %v1115 = vld [vmem:[%s20 + $0x70] sm:$0xff]
    %v1116 = vld [vmem:[%s20 + $0x78] sm:$0xff]
    %v1117 = vld [vmem:[%s20 + $0x80] sm:$0xff]
    %v1118 = vld [vmem:[%s20 + $0x88] sm:$0xff]
    %v1119 = vld [vmem:[%s20 + $0x90] sm:$0xff]
    %v1120 = vld [vmem:[%s20 + $0x98] sm:$0xff]
    %v1121 = vld [vmem:[%s20 + $0xa0] sm:$0xff]
    %v1122 = vld [vmem:[%s20 + $0xa8] sm:$0xff]
    %v1123 = vld [vmem:[%s20 + $0xb0] sm:$0xff]
    %v1124 = vld [vmem:[%s20 + $0xb8] sm:$0xff]
    %v1125 = vld [vmem:[%s20 + $0xc0] sm:$0xff]
    %v1126 = vld [vmem:[%s20 + $0xc8] sm:$0xff]
    %v1127 = vld [vmem:[%s20 + $0xd0] sm:$0xff]
    %v1128 = vld [vmem:[%s20 + $0xd8] sm:$0xff]
    %v1129 = vld [vmem:[%s20 + $0xe0] sm:$0xff]
    %v1130 = vld [vmem:[%s20 + $0xe8] sm:$0xff]
    %v1131 = vld [vmem:[%s20 + $0xf0] sm:$0xff]
    %v1132 = vld [vmem:[%s20 + $0xf8] sm:$0xff]
    %v1133 = vld [vmem:[%s21] sm:$0x1]
    %v1135 = vlaneseq
    %v1136 = vshrl.u32 %v1135, 7
    %v1137 = vsub.s32 0, %v1136
    %v1138 = vrot.slane %v1133, %v1137
    %1140 = vmatprep.subr.mxu0 0.0
    %1141 = vmatpush1.msra.mxu0 %v1116
    %1142 = vmatprep.subr.mxu0 0.0
    %1143 = vmatpush1.msra.mxu0 %v1115
    %1144 = vmatprep.subr.mxu0 0.0
    %1145 = vmatpush1.msra.mxu0 %v1114
    %1146 = vmatprep.subr.mxu0 0.0
    %1147 = vmatpush1.msra.mxu0 %v1113
    %1148 = vmatprep.subr.mxu0 0.0
    %1149 = vmatpush1.msra.mxu0 %v1112
    %1150 = vmatprep.subr.mxu0 0.0
    %1151 = vmatpush1.msra.mxu0 %v1111
    %1152 = vmatprep.subr.mxu0 0.0
    %1153 = vmatpush1.msra.mxu0 %v1110
    %1154 = vmatprep.subr.mxu0 0.0
    %1155 = vmatpush1.msra.mxu0 %v1109
    %1156 = vmatprep.subr.mxu0 0.0
    %1157 = vmatpush1.msra.mxu0 %v1108
    %1158 = vmatprep.subr.mxu0 0.0
    %1159 = vmatpush1.msra.mxu0 %v1107
    %1160 = vmatprep.subr.mxu0 0.0
    %1161 = vmatpush1.msra.mxu0 %v1106
    %1162 = vmatprep.subr.mxu0 0.0
    %1163 = vmatpush1.msra.mxu0 %v1105
    %1164 = vmatprep.subr.mxu0 0.0
    %1165 = vmatpush1.msra.mxu0 %v1104
    %1166 = vmatprep.subr.mxu0 0.0
    %1167 = vmatpush1.msra.mxu0 %v1103
    %1168 = vmatprep.subr.mxu0 0.0
    %1169 = vmatpush1.msra.mxu0 %v1102
    %1170 = vmatprep.subr.mxu0 0.0
    %1171 = vmatpush1.msra.mxu0 %v1101
    %1172 = vmatprep.subr.mxu0 0.0
    %1173 = vmatpush2.msra.mxu0 %v1132
    %1174 = vmatprep.subr.mxu0 0.0
    %1175 = vmatpush2.msra.mxu0 %v1131
    %1176 = vmatprep.subr.mxu0 0.0
    %1177 = vmatpush2.msra.mxu0 %v1130
    %1178 = vmatprep.subr.mxu0 0.0
    %1179 = vmatpush2.msra.mxu0 %v1129
    %1180 = vmatprep.subr.mxu0 0.0
    %1181 = vmatpush2.msra.mxu0 %v1128
    %1182 = vmatprep.subr.mxu0 0.0
    %1183 = vmatpush2.msra.mxu0 %v1127
    %1184 = vmatprep.subr.mxu0 0.0
    %1185 = vmatpush2.msra.mxu0 %v1126
    %1186 = vmatprep.subr.mxu0 0.0
    %1187 = vmatpush2.msra.mxu0 %v1125
    %1188 = vmatprep.subr.mxu0 0.0
    %1189 = vmatpush2.msra.mxu0 %v1124
    %1190 = vmatprep.subr.mxu0 0.0
    %1191 = vmatpush2.msra.mxu0 %v1123
    %1192 = vmatprep.subr.mxu0 0.0
    %1193 = vmatpush2.msra.mxu0 %v1122
    %1194 = vmatprep.subr.mxu0 0.0
    %1195 = vmatpush2.msra.mxu0 %v1121
    %1196 = vmatprep.subr.mxu0 0.0
    %1197 = vmatpush2.msra.mxu0 %v1120
    %1198 = vmatprep.subr.mxu0 0.0
    %1199 = vmatpush2.msra.mxu0 %v1119
    %1200 = vmatprep.subr.mxu0 0.0
    %1201 = vmatpush2.msra.mxu0 %v1118
    %1202 = vmatprep.subr.mxu0 0.0
    %1203 = vmatpush2.msra.mxu0 %v1117
    %1204 = vmatprep.mubr.f32.mxu0 %v1098
    %1205 = vmatmul.mubr.f32.gmra.mxu0 %v1097
    %v1206 = vpop.f32.mrf.mxu0
    %v1207 = vadd.f32 %v1138, %v1206
    %v1208 = vpop.f32.mrf.mxu0
    %1209 = vmatprep.mubr.f32.mxu0 %v1100
    %1210 = vmatmul.mubr.f32.gmra.mxu0 %v1099
    %v1211 = vpop.f32.mrf.mxu0
    %v1212 = vadd.f32 %v1138, %v1211
    %v1213 = vpop.f32.mrf.mxu0
    %1214 = vdwg.mxu0
    %1215 = vst [vmem:[%s22] sm:$0xff] %v1207
    %1216 = vst [vmem:[%s22 + $0x8] sm:$0xff] %v1212
    // Predicated region
    $region94: #{dmpnn_forward.3} parent=1 // pred_check
      _
    $region95: #{dmpnn_forward.3} parent=1 // pred_check_branch
      %1218 = sbr.rel (0) target = $region97
    $region96: #{dmpnn_forward.3} parent=1 // pred_region
      _
    $region97: #{dmpnn_forward.3} parent=1 // pred_fallthru
      _
    // Predicated region
    $region98: #{dmpnn_forward.3} parent=1 // pred_check
      _
    $region99: #{dmpnn_forward.3} parent=1 // pred_check_branch
      %1220 = sbr.rel (0) target = $region101
    $region100: #{dmpnn_forward.3} parent=1 // pred_region
      _
    $region101: #{dmpnn_forward.3} parent=1 // pred_fallthru
      _
    %1221 = vsyncpa [#allocation3], 1

// kernel: dmpnn_forward.2
$region0: #{dmpnn_forward.2}
  #allocation0 [shape = 'u32[]', space=smem, size = 0x4, offset = 0x4, fixed_abs, tag = 'smem constant byte address 0x4 - core index']
  #allocation1 [shape = 'u32[144,128]{1,0:T(1,128)}', space=vmem, size = 0x12000, scoped, tag = 'internal scratch']
  #allocation2 [shape = 'f32[1]{0:T(128)S(6)}', space=smem, size = 0x200, scoped, tag = 'scoped memory for dmpnn_forward.2']
  %s0 = inlined_call_operand.<no memory space> [shape: f32[1], index: 0, kind: input, shape index: {}]
  %s1 = inlined_call_operand.vmem [shape: f32[3], index: 1, kind: input, shape index: {}]
  %s2 = inlined_call_operand.vmem [shape: f32[16,128], index: 2, kind: input, shape index: {}, may-alias: {2,18}]
  %s3 = inlined_call_operand.vmem [shape: f32[32,128], index: 3, kind: input, shape index: {}]
  %s4 = inlined_call_operand.vmem [shape: f32[128,128], index: 4, kind: input, shape index: {}]
  %s5 = inlined_call_operand.vmem [shape: f32[128,128], index: 5, kind: input, shape index: {}]
  %s6 = inlined_call_operand.vmem [shape: f32[128,128], index: 6, kind: input, shape index: {}]
  %s7 = inlined_call_operand.vmem [shape: bf16[32,16], index: 7, kind: input, shape index: {}]
  %s8 = inlined_call_operand.vmem [shape: bf16[32,16], index: 8, kind: input, shape index: {}]
  %s9 = inlined_call_operand.vmem [shape: bf16[32,32], index: 9, kind: input, shape index: {}]
  %s10 = inlined_call_operand.vmem [shape: f32[2,32], index: 10, kind: input, shape index: {}]
  %s11 = inlined_call_operand.vmem [shape: f32[32,2], index: 11, kind: input, shape index: {}]
  %s12 = inlined_call_operand.vmem [shape: f32[1,128], index: 12, kind: input, shape index: {}]
  %s13 = inlined_call_operand.vmem [shape: f32[1,128], index: 13, kind: input, shape index: {}]
  %s14 = inlined_call_operand.vmem [shape: f32[128,128], index: 14, kind: input, shape index: {}]
  %s15 = inlined_call_operand.vmem [shape: f32[1,128], index: 15, kind: input, shape index: {}]
  %s16 = inlined_call_operand.vmem [shape: f32[3,128], index: 16, kind: input, shape index: {}]
  %s17 = inlined_call_operand.vmem [shape: bf16[16,32], index: 17, kind: input, shape index: {}]
  %s18 = inlined_call_operand.vmem [shape: f32[16,128], index: 18, kind: output, shape index: {}, may-alias: {2,18}]
  %s19 = sld [smem:[#allocation0]]
  $region86: #{dmpnn_forward.2} parent=0
    _
  %s21 = ssub.s32 1, %s19
  %s22 = scalar_select 0, %s21, %s19
  %23 = sst [smem:[#allocation2]] %s0
  $region1: #{dmpnn_forward.2} parent=0
    #allocation3 [shape = 'u8[512]{0}', space=smem, size = 0x200, scoped, tag = 'input window, operand 1, single buffered']
    #allocation4 [shape = 's32[1]{0}', space=sflag, size = 0x4, scoped, tag = 'scoped memory for dmpnn_forward.2']
    %24 = vsyncpa [#allocation4], 0
    // Predicated region
    $region2: #{dmpnn_forward.2} parent=1 // pred_check
      _
    $region3: #{dmpnn_forward.2} parent=1 // pred_check_branch
      %26 = sbr.rel (0) target = $region5
    $region4: #{dmpnn_forward.2} parent=1 // pred_region
      _
    $region5: #{dmpnn_forward.2} parent=1 // pred_fallthru
      _
    // Predicated region
    $region6: #{dmpnn_forward.2} parent=1 // pred_check
      _
    $region7: #{dmpnn_forward.2} parent=1 // pred_check_branch
      %28 = sbr.rel (0) target = $region9
    $region8: #{dmpnn_forward.2} parent=1 // pred_region
      %s30 = ssub.s32 16, 16
      %31 = vsyncadd [#allocation4], %s30
      %s33 = sshll.u32 %s1, 4
      %s34 = int_to_ptr.vmem [resolvable:$true] %s33
      %36 = dma.vmem_to_smem %s34, 16, [#allocation3], [#allocation4]
    $region9: #{dmpnn_forward.2} parent=1 // pred_fallthru
      _
    // Predicated region
    $region10: #{dmpnn_forward.2} parent=1 // pred_check
      _
    $region11: #{dmpnn_forward.2} parent=1 // pred_check_branch
      %38 = sbr.rel (0) target = $region13
    $region12: #{dmpnn_forward.2} parent=1 // pred_region
      _
    $region13: #{dmpnn_forward.2} parent=1 // pred_fallthru
      _
    // Predicated region
    $region14: #{dmpnn_forward.2} parent=1 // pred_check
      _
    $region15: #{dmpnn_forward.2} parent=1 // pred_check_branch
      %40 = sbr.rel (0) target = $region17
    $region16: #{dmpnn_forward.2} parent=1 // pred_region
      _
    $region17: #{dmpnn_forward.2} parent=1 // pred_fallthru
      _
    // Predicated region
    $region18: #{dmpnn_forward.2} parent=1 // pred_check
      _
    $region19: #{dmpnn_forward.2} parent=1 // pred_check_branch
      %42 = sbr.rel (0) target = $region21
    $region20: #{dmpnn_forward.2} parent=1 // pred_region
      _
    $region21: #{dmpnn_forward.2} parent=1 // pred_fallthru
      _
    // Predicated region
    $region22: #{dmpnn_forward.2} parent=1 // pred_check
      _
    $region23: #{dmpnn_forward.2} parent=1 // pred_check_branch
      %44 = sbr.rel (0) target = $region25
    $region24: #{dmpnn_forward.2} parent=1 // pred_region
      _
    $region25: #{dmpnn_forward.2} parent=1 // pred_fallthru
      _
    // Predicated region
    $region26: #{dmpnn_forward.2} parent=1 // pred_check
      _
    $region27: #{dmpnn_forward.2} parent=1 // pred_check_branch
      %46 = sbr.rel (0) target = $region29
    $region28: #{dmpnn_forward.2} parent=1 // pred_region
      _
    $region29: #{dmpnn_forward.2} parent=1 // pred_fallthru
      _
    // Predicated region
    $region30: #{dmpnn_forward.2} parent=1 // pred_check
      _
    $region31: #{dmpnn_forward.2} parent=1 // pred_check_branch
      %48 = sbr.rel (0) target = $region33
    $region32: #{dmpnn_forward.2} parent=1 // pred_region
      _
    $region33: #{dmpnn_forward.2} parent=1 // pred_fallthru
      _
    // Predicated region
    $region34: #{dmpnn_forward.2} parent=1 // pred_check
      _
    $region35: #{dmpnn_forward.2} parent=1 // pred_check_branch
      %50 = sbr.rel (0) target = $region37
    $region36: #{dmpnn_forward.2} parent=1 // pred_region
      _
    $region37: #{dmpnn_forward.2} parent=1 // pred_fallthru
      _
    // Predicated region
    $region38: #{dmpnn_forward.2} parent=1 // pred_check
      _
    $region39: #{dmpnn_forward.2} parent=1 // pred_check_branch
      %52 = sbr.rel (0) target = $region41
    $region40: #{dmpnn_forward.2} parent=1 // pred_region
      _
    $region41: #{dmpnn_forward.2} parent=1 // pred_fallthru
      _
    // Predicated region
    $region42: #{dmpnn_forward.2} parent=1 // pred_check
      _
    $region43: #{dmpnn_forward.2} parent=1 // pred_check_branch
      %54 = sbr.rel (0) target = $region45
    $region44: #{dmpnn_forward.2} parent=1 // pred_region
      _
    $region45: #{dmpnn_forward.2} parent=1 // pred_fallthru
      _
    // Predicated region
    $region46: #{dmpnn_forward.2} parent=1 // pred_check
      _
    $region47: #{dmpnn_forward.2} parent=1 // pred_check_branch
      %56 = sbr.rel (0) target = $region49
    $region48: #{dmpnn_forward.2} parent=1 // pred_region
      _
    $region49: #{dmpnn_forward.2} parent=1 // pred_fallthru
      _
    // Predicated region
    $region50: #{dmpnn_forward.2} parent=1 // pred_check
      _
    $region51: #{dmpnn_forward.2} parent=1 // pred_check_branch
      %58 = sbr.rel (0) target = $region53
    $region52: #{dmpnn_forward.2} parent=1 // pred_region
      _
    $region53: #{dmpnn_forward.2} parent=1 // pred_fallthru
      _
    // Predicated region
    $region54: #{dmpnn_forward.2} parent=1 // pred_check
      _
    $region55: #{dmpnn_forward.2} parent=1 // pred_check_branch
      %60 = sbr.rel (0) target = $region57
    $region56: #{dmpnn_forward.2} parent=1 // pred_region
      _
    $region57: #{dmpnn_forward.2} parent=1 // pred_fallthru
      _
    // Predicated region
    $region58: #{dmpnn_forward.2} parent=1 // pred_check
      _
    $region59: #{dmpnn_forward.2} parent=1 // pred_check_branch
      %62 = sbr.rel (0) target = $region61
    $region60: #{dmpnn_forward.2} parent=1 // pred_region
      _
    $region61: #{dmpnn_forward.2} parent=1 // pred_fallthru
      _
    // Predicated region
    $region62: #{dmpnn_forward.2} parent=1 // pred_check
      _
    $region63: #{dmpnn_forward.2} parent=1 // pred_check_branch
      %64 = sbr.rel (0) target = $region65
    $region64: #{dmpnn_forward.2} parent=1 // pred_region
      _
    $region65: #{dmpnn_forward.2} parent=1 // pred_fallthru
      _
    // Predicated region
    $region66: #{dmpnn_forward.2} parent=1 // pred_check
      _
    $region67: #{dmpnn_forward.2} parent=1 // pred_check_branch
      %66 = sbr.rel (0) target = $region69
    $region68: #{dmpnn_forward.2} parent=1 // pred_region
      _
    $region69: #{dmpnn_forward.2} parent=1 // pred_fallthru
      _
    // Predicated region
    $region70: #{dmpnn_forward.2} parent=1 // pred_check
      _
    $region71: #{dmpnn_forward.2} parent=1 // pred_check_branch
      %68 = sbr.rel (0) target = $region73
    $region72: #{dmpnn_forward.2} parent=1 // pred_region
      _
    $region73: #{dmpnn_forward.2} parent=1 // pred_fallthru
      _
    // Predicated region
    $region74: #{dmpnn_forward.2} parent=1 // pred_check
      _
    $region75: #{dmpnn_forward.2} parent=1 // pred_check_branch
      %70 = sbr.rel (0) target = $region77
    $region76: #{dmpnn_forward.2} parent=1 // pred_region
      %71 = dma.done [#allocation4], 16
    $region77: #{dmpnn_forward.2} parent=1 // pred_fallthru
      _
    %72 = sfence
    %v73 = vld [vmem:[%s2] sm:$0xff]
    %v74 = vld [vmem:[%s2 + $0x8] sm:$0xff]
    %v75 = vld [vmem:[%s7] sm:$0xf]
    %v76 = vld [vmem:[%s7 + $0x4] sm:$0xf]
    %v77 = vld [vmem:[%s7 + $0x8] sm:$0xf]
    %v78 = vld [vmem:[%s7 + $0xc] sm:$0xf]
    %v79 = vunpack.c.l.bf16 %v75
    %v80 = vunpack.c.l.bf16 %v76
    %v81 = vunpack.c.l.bf16 %v77
    %v82 = vunpack.c.l.bf16 %v78
    %v83 = vld [vmem:[%s8] sm:$0xf]
    %v84 = vld [vmem:[%s8 + $0x4] sm:$0xf]
    %v85 = vld [vmem:[%s8 + $0x8] sm:$0xf]
    %v86 = vld [vmem:[%s8 + $0xc] sm:$0xf]
    %v87 = vunpack.c.l.bf16 %v83
    %v88 = vunpack.c.l.bf16 %v84
    %v89 = vunpack.c.l.bf16 %v85
    %v90 = vunpack.c.l.bf16 %v86
    %v91 = vld [vmem:[%s9] sm:$0xf]
    %v92 = vld [vmem:[%s9 + $0x4] sm:$0xf]
    %v93 = vld [vmem:[%s9 + $0x8] sm:$0xf]
    %v94 = vld [vmem:[%s9 + $0xc] sm:$0xf]
    %v95 = vunpack.c.l.bf16 %v91
    %v96 = vunpack.c.l.bf16 %v92
    %v97 = vunpack.c.l.bf16 %v93
    %v98 = vunpack.c.l.bf16 %v94
    %v99 = vld [vmem:[%s17] sm:$0xf]
    %v100 = vld [vmem:[%s17 + $0x4] sm:$0xf]
    %v101 = vunpack.c.l.bf16 %v99
    %v102 = vunpack.c.l.bf16 %v100
    %v103 = vld [vmem:[%s10] sm:$0x3]
    %v104 = vld [vmem:[%s11] sm:$0xff]
    %v105 = vld [vmem:[%s11 + $0x8] sm:$0xff]
    %v106 = vld [vmem:[%s11 + $0x10] sm:$0xff]
    %v107 = vld [vmem:[%s11 + $0x18] sm:$0xff]
    %vm108 = vcmp.gt.f32.partialorder %v104, 0.5
    %vm109 = vcmp.gt.f32.partialorder %v105, 0.5
    %vm110 = vcmp.gt.f32.partialorder %v106, 0.5
    %vm111 = vcmp.gt.f32.partialorder %v107, 0.5
    %v112 = vld [vmem:[%s4] sm:$0xff]
    %v113 = vld [vmem:[%s4 + $0x8] sm:$0xff]
    %v114 = vld [vmem:[%s4 + $0x10] sm:$0xff]
    %v115 = vld [vmem:[%s4 + $0x18] sm:$0xff]
    %v116 = vld [vmem:[%s4 + $0x20] sm:$0xff]
    %v117 = vld [vmem:[%s4 + $0x28] sm:$0xff]
    %v118 = vld [vmem:[%s4 + $0x30] sm:$0xff]
    %v119 = vld [vmem:[%s4 + $0x38] sm:$0xff]
    %v120 = vld [vmem:[%s4 + $0x40] sm:$0xff]
    %v121 = vld [vmem:[%s4 + $0x48] sm:$0xff]
    %v122 = vld [vmem:[%s4 + $0x50] sm:$0xff]
    %v123 = vld [vmem:[%s4 + $0x58] sm:$0xff]
    %v124 = vld [vmem:[%s4 + $0x60] sm:$0xff]
    %v125 = vld [vmem:[%s4 + $0x68] sm:$0xff]
    %v126 = vld [vmem:[%s4 + $0x70] sm:$0xff]
    %v127 = vld [vmem:[%s4 + $0x78] sm:$0xff]
    %128 = vmatprep.subr.mxu0 0.0
    %129 = vmatpush1.msra.mxu0 %v127
    %130 = vmatprep.subr.mxu0 0.0
    %131 = vmatpush1.msra.mxu0 %v126
    %132 = vmatprep.subr.mxu0 0.0
    %133 = vmatpush1.msra.mxu0 %v125
    %134 = vmatprep.subr.mxu0 0.0
    %135 = vmatpush1.msra.mxu0 %v124
    %136 = vmatprep.subr.mxu0 0.0
    %137 = vmatpush1.msra.mxu0 %v123
    %138 = vmatprep.subr.mxu0 0.0
    %139 = vmatpush1.msra.mxu0 %v122
    %140 = vmatprep.subr.mxu0 0.0
    %141 = vmatpush1.msra.mxu0 %v121
    %142 = vmatprep.subr.mxu0 0.0
    %143 = vmatpush1.msra.mxu0 %v120
    %144 = vmatprep.subr.mxu0 0.0
    %145 = vmatpush1.msra.mxu0 %v119
    %146 = vmatprep.subr.mxu0 0.0
    %147 = vmatpush1.msra.mxu0 %v118
    %148 = vmatprep.subr.mxu0 0.0
    %149 = vmatpush1.msra.mxu0 %v117
    %150 = vmatprep.subr.mxu0 0.0
    %151 = vmatpush1.msra.mxu0 %v116
    %152 = vmatprep.subr.mxu0 0.0
    %153 = vmatpush1.msra.mxu0 %v115
    %154 = vmatprep.subr.mxu0 0.0
    %155 = vmatpush1.msra.mxu0 %v114
    %156 = vmatprep.subr.mxu0 0.0
    %157 = vmatpush1.msra.mxu0 %v113
    %158 = vmatprep.subr.mxu0 0.0
    %159 = vmatpush1.msra.mxu0 %v112
    %160 = vmatprep.subr.mxu0 0.0
    %161 = vmatpush2.msra.mxu0 0.0
    %162 = vmatprep.subr.mxu0 0.0
    %163 = vmatpush2.msra.mxu0 0.0
    %164 = vmatprep.subr.mxu0 0.0
    %165 = vmatpush2.msra.mxu0 0.0
    %166 = vmatprep.subr.mxu0 0.0
    %167 = vmatpush2.msra.mxu0 0.0
    %168 = vmatprep.subr.mxu0 0.0
    %169 = vmatpush2.msra.mxu0 0.0
    %170 = vmatprep.subr.mxu0 0.0
    %171 = vmatpush2.msra.mxu0 0.0
    %172 = vmatprep.subr.mxu0 0.0
    %173 = vmatpush2.msra.mxu0 0.0
    %174 = vmatprep.subr.mxu0 0.0
    %175 = vmatpush2.msra.mxu0 0.0
    %176 = vmatprep.subr.mxu0 0.0
    %177 = vmatpush2.msra.mxu0 0.0
    %178 = vmatprep.subr.mxu0 0.0
    %179 = vmatpush2.msra.mxu0 0.0
    %180 = vmatprep.subr.mxu0 0.0
    %181 = vmatpush2.msra.mxu0 0.0
    %182 = vmatprep.subr.mxu0 0.0
    %183 = vmatpush2.msra.mxu0 0.0
    %184 = vmatprep.subr.mxu0 0.0
    %185 = vmatpush2.msra.mxu0 0.0
    %186 = vmatprep.subr.mxu0 0.0
    %187 = vmatpush2.msra.mxu0 0.0
    %188 = vmatprep.subr.mxu0 0.0
    %189 = vmatpush2.msra.mxu0 0.0
    %190 = vmatprep.subr.mxu0 0.0
    %191 = vmatpush2.msra.mxu0 0.0
    %192 = vmatprep.mubr.f32.mxu0 0.0
    %193 = vmatmul.mubr.f32.gmra.mxu0 %v73
    %v194 = vpop.f32.mrf.mxu0
    %v195 = vadd.f32 0.0, %v194
    %v196 = vpop.f32.mrf.mxu0
    %197 = vmatprep.mubr.f32.mxu0 0.0
    %198 = vmatmul.mubr.f32.gmra.mxu0 %v74
    %v199 = vpop.f32.mrf.mxu0
    %v200 = vadd.f32 0.0, %v199
    %v201 = vpop.f32.mrf.mxu0
    %202 = vdwg.mxu0
    %v203 = vld [vmem:[%s5] sm:$0xff]
    %v204 = vld [vmem:[%s5 + $0x8] sm:$0xff]
    %v205 = vld [vmem:[%s5 + $0x10] sm:$0xff]
    %v206 = vld [vmem:[%s5 + $0x18] sm:$0xff]
    %v207 = vld [vmem:[%s5 + $0x20] sm:$0xff]
    %v208 = vld [vmem:[%s5 + $0x28] sm:$0xff]
    %v209 = vld [vmem:[%s5 + $0x30] sm:$0xff]
    %v210 = vld [vmem:[%s5 + $0x38] sm:$0xff]
    %v211 = vld [vmem:[%s5 + $0x40] sm:$0xff]
    %v212 = vld [vmem:[%s5 + $0x48] sm:$0xff]
    %v213 = vld [vmem:[%s5 + $0x50] sm:$0xff]
    %v214 = vld [vmem:[%s5 + $0x58] sm:$0xff]
    %v215 = vld [vmem:[%s5 + $0x60] sm:$0xff]
    %v216 = vld [vmem:[%s5 + $0x68] sm:$0xff]
    %v217 = vld [vmem:[%s5 + $0x70] sm:$0xff]
    %v218 = vld [vmem:[%s5 + $0x78] sm:$0xff]
    %219 = vmatprep.subr.mxu0 0.0
    %220 = vmatpush1.msra.mxu0 %v218
    %221 = vmatprep.subr.mxu0 0.0
    %222 = vmatpush1.msra.mxu0 %v217
    %223 = vmatprep.subr.mxu0 0.0
    %224 = vmatpush1.msra.mxu0 %v216
    %225 = vmatprep.subr.mxu0 0.0
    %226 = vmatpush1.msra.mxu0 %v215
    %227 = vmatprep.subr.mxu0 0.0
    %228 = vmatpush1.msra.mxu0 %v214
    %229 = vmatprep.subr.mxu0 0.0
    %230 = vmatpush1.msra.mxu0 %v213
    %231 = vmatprep.subr.mxu0 0.0
    %232 = vmatpush1.msra.mxu0 %v212
    %233 = vmatprep.subr.mxu0 0.0
    %234 = vmatpush1.msra.mxu0 %v211
    %235 = vmatprep.subr.mxu0 0.0
    %236 = vmatpush1.msra.mxu0 %v210
    %237 = vmatprep.subr.mxu0 0.0
    %238 = vmatpush1.msra.mxu0 %v209
    %239 = vmatprep.subr.mxu0 0.0
    %240 = vmatpush1.msra.mxu0 %v208
    %241 = vmatprep.subr.mxu0 0.0
    %242 = vmatpush1.msra.mxu0 %v207
    %243 = vmatprep.subr.mxu0 0.0
    %244 = vmatpush1.msra.mxu0 %v206
    %245 = vmatprep.subr.mxu0 0.0
    %246 = vmatpush1.msra.mxu0 %v205
    %247 = vmatprep.subr.mxu0 0.0
    %248 = vmatpush1.msra.mxu0 %v204
    %249 = vmatprep.subr.mxu0 0.0
    %250 = vmatpush1.msra.mxu0 %v203
    %251 = vmatprep.subr.mxu0 0.0
    %252 = vmatpush2.msra.mxu0 0.0
    %253 = vmatprep.subr.mxu0 0.0
    %254 = vmatpush2.msra.mxu0 0.0
    %255 = vmatprep.subr.mxu0 0.0
    %256 = vmatpush2.msra.mxu0 0.0
    %257 = vmatprep.subr.mxu0 0.0
    %258 = vmatpush2.msra.mxu0 0.0
    %259 = vmatprep.subr.mxu0 0.0
    %260 = vmatpush2.msra.mxu0 0.0
    %261 = vmatprep.subr.mxu0 0.0
    %262 = vmatpush2.msra.mxu0 0.0
    %263 = vmatprep.subr.mxu0 0.0
    %264 = vmatpush2.msra.mxu0 0.0
    %265 = vmatprep.subr.mxu0 0.0
    %266 = vmatpush2.msra.mxu0 0.0
    %267 = vmatprep.subr.mxu0 0.0
    %268 = vmatpush2.msra.mxu0 0.0
    %269 = vmatprep.subr.mxu0 0.0
    %270 = vmatpush2.msra.mxu0 0.0
    %271 = vmatprep.subr.mxu0 0.0
    %272 = vmatpush2.msra.mxu0 0.0
    %273 = vmatprep.subr.mxu0 0.0
    %274 = vmatpush2.msra.mxu0 0.0
    %275 = vmatprep.subr.mxu0 0.0
    %276 = vmatpush2.msra.mxu0 0.0
    %277 = vmatprep.subr.mxu0 0.0
    %278 = vmatpush2.msra.mxu0 0.0
    %279 = vmatprep.subr.mxu0 0.0
    %280 = vmatpush2.msra.mxu0 0.0
    %281 = vmatprep.subr.mxu0 0.0
    %282 = vmatpush2.msra.mxu0 0.0
    %283 = vmatprep.mubr.f32.mxu0 0.0
    %284 = vmatmul.mubr.f32.gmra.mxu0 %v73
    %v285 = vpop.f32.mrf.mxu0
    %v286 = vadd.f32 0.0, %v285
    %v287 = vpop.f32.mrf.mxu0
    %288 = vmatprep.mubr.f32.mxu0 0.0
    %289 = vmatmul.mubr.f32.gmra.mxu0 %v74
    %v290 = vpop.f32.mrf.mxu0
    %v291 = vadd.f32 0.0, %v290
    %v292 = vpop.f32.mrf.mxu0
    %293 = vdwg.mxu0
    %v294 = vld [vmem:[%s3] sm:$0xff]
    %v295 = vld [vmem:[%s3 + $0x8] sm:$0xff]
    %v296 = vld [vmem:[%s3 + $0x10] sm:$0xff]
    %v297 = vld [vmem:[%s3 + $0x18] sm:$0xff]
    %v298 = vld [vmem:[%s6] sm:$0xff]
    %v299 = vld [vmem:[%s6 + $0x8] sm:$0xff]
    %v300 = vld [vmem:[%s6 + $0x10] sm:$0xff]
    %v301 = vld [vmem:[%s6 + $0x18] sm:$0xff]
    %v302 = vld [vmem:[%s6 + $0x20] sm:$0xff]
    %v303 = vld [vmem:[%s6 + $0x28] sm:$0xff]
    %v304 = vld [vmem:[%s6 + $0x30] sm:$0xff]
    %v305 = vld [vmem:[%s6 + $0x38] sm:$0xff]
    %v306 = vld [vmem:[%s6 + $0x40] sm:$0xff]
    %v307 = vld [vmem:[%s6 + $0x48] sm:$0xff]
    %v308 = vld [vmem:[%s6 + $0x50] sm:$0xff]
    %v309 = vld [vmem:[%s6 + $0x58] sm:$0xff]
    %v310 = vld [vmem:[%s6 + $0x60] sm:$0xff]
    %v311 = vld [vmem:[%s6 + $0x68] sm:$0xff]
    %v312 = vld [vmem:[%s6 + $0x70] sm:$0xff]
    %v313 = vld [vmem:[%s6 + $0x78] sm:$0xff]
    %314 = vmatprep.subr.mxu0 0.0
    %315 = vmatpush1.msra.mxu0 %v313
    %316 = vmatprep.subr.mxu0 0.0
    %317 = vmatpush1.msra.mxu0 %v312
    %318 = vmatprep.subr.mxu0 0.0
    %319 = vmatpush1.msra.mxu0 %v311
    %320 = vmatprep.subr.mxu0 0.0
    %321 = vmatpush1.msra.mxu0 %v310
    %322 = vmatprep.subr.mxu0 0.0
    %323 = vmatpush1.msra.mxu0 %v309
    %324 = vmatprep.subr.mxu0 0.0
    %325 = vmatpush1.msra.mxu0 %v308
    %326 = vmatprep.subr.mxu0 0.0
    %327 = vmatpush1.msra.mxu0 %v307
    %328 = vmatprep.subr.mxu0 0.0
    %329 = vmatpush1.msra.mxu0 %v306
    %330 = vmatprep.subr.mxu0 0.0
    %331 = vmatpush1.msra.mxu0 %v305
    %332 = vmatprep.subr.mxu0 0.0
    %333 = vmatpush1.msra.mxu0 %v304
    %334 = vmatprep.subr.mxu0 0.0
    %335 = vmatpush1.msra.mxu0 %v303
    %336 = vmatprep.subr.mxu0 0.0
    %337 = vmatpush1.msra.mxu0 %v302
    %338 = vmatprep.subr.mxu0 0.0
    %339 = vmatpush1.msra.mxu0 %v301
    %340 = vmatprep.subr.mxu0 0.0
    %341 = vmatpush1.msra.mxu0 %v300
    %342 = vmatprep.subr.mxu0 0.0
    %343 = vmatpush1.msra.mxu0 %v299
    %344 = vmatprep.subr.mxu0 0.0
    %345 = vmatpush1.msra.mxu0 %v298
    %346 = vmatprep.subr.mxu0 0.0
    %347 = vmatpush2.msra.mxu0 0.0
    %348 = vmatprep.subr.mxu0 0.0
    %349 = vmatpush2.msra.mxu0 0.0
    %350 = vmatprep.subr.mxu0 0.0
    %351 = vmatpush2.msra.mxu0 0.0
    %352 = vmatprep.subr.mxu0 0.0
    %353 = vmatpush2.msra.mxu0 0.0
    %354 = vmatprep.subr.mxu0 0.0
    %355 = vmatpush2.msra.mxu0 0.0
    %356 = vmatprep.subr.mxu0 0.0
    %357 = vmatpush2.msra.mxu0 0.0
    %358 = vmatprep.subr.mxu0 0.0
    %359 = vmatpush2.msra.mxu0 0.0
    %360 = vmatprep.subr.mxu0 0.0
    %361 = vmatpush2.msra.mxu0 0.0
    %362 = vmatprep.subr.mxu0 0.0
    %363 = vmatpush2.msra.mxu0 0.0
    %364 = vmatprep.subr.mxu0 0.0
    %365 = vmatpush2.msra.mxu0 0.0
    %366 = vmatprep.subr.mxu0 0.0
    %367 = vmatpush2.msra.mxu0 0.0
    %368 = vmatprep.subr.mxu0 0.0
    %369 = vmatpush2.msra.mxu0 0.0
    %370 = vmatprep.subr.mxu0 0.0
    %371 = vmatpush2.msra.mxu0 0.0
    %372 = vmatprep.subr.mxu0 0.0
    %373 = vmatpush2.msra.mxu0 0.0
    %374 = vmatprep.subr.mxu0 0.0
    %375 = vmatpush2.msra.mxu0 0.0
    %376 = vmatprep.subr.mxu0 0.0
    %377 = vmatpush2.msra.mxu0 0.0
    %378 = vmatprep.mubr.f32.mxu0 0.0
    %379 = vmatmul.mubr.f32.gmra.mxu0 %v294
    %v380 = vpop.f32.mrf.mxu0
    %v381 = vadd.f32 0.0, %v380
    %v382 = vpop.f32.mrf.mxu0
    %383 = vmatprep.mubr.f32.mxu0 0.0
    %384 = vmatmul.mubr.f32.gmra.mxu0 %v295
    %v385 = vpop.f32.mrf.mxu0
    %v386 = vadd.f32 0.0, %v385
    %v387 = vpop.f32.mrf.mxu0
    %388 = vmatprep.mubr.f32.mxu0 0.0
    %389 = vmatmul.mubr.f32.gmra.mxu0 %v296
    %v390 = vpop.f32.mrf.mxu0
    %v391 = vadd.f32 0.0, %v390
    %v392 = vpop.f32.mrf.mxu0
    %393 = vmatprep.mubr.f32.mxu0 0.0
    %394 = vmatmul.mubr.f32.gmra.mxu0 %v297
    %v395 = vpop.f32.mrf.mxu0
    %v396 = vadd.f32 0.0, %v395
    %v397 = vpop.f32.mrf.mxu0
    %398 = vdwg.mxu0
    %vm399 = vcmask 130048
    %v401 = vsel %vm399, %v87, 0
    %v404 = vsel %vm399, %v88, 0
    %v407 = vsel %vm399, %v89, 0
    %v410 = vsel %vm399, %v90, 0
    %412 = vmatprep.subr.mxu0 0.0
    %413 = vmatpush1.msra.mxu0 0.0
    %414 = vmatprep.subr.mxu0 0.0
    %415 = vmatpush1.msra.mxu0 0.0
    %416 = vmatprep.subr.mxu0 0.0
    %417 = vmatpush1.msra.mxu0 0.0
    %418 = vmatprep.subr.mxu0 0.0
    %419 = vmatpush1.msra.mxu0 0.0
    %420 = vmatprep.subr.mxu0 0.0
    %421 = vmatpush1.msra.mxu0 0.0
    %422 = vmatprep.subr.mxu0 0.0
    %423 = vmatpush1.msra.mxu0 0.0
    %424 = vmatprep.subr.mxu0 0.0
    %425 = vmatpush1.msra.mxu0 0.0
    %426 = vmatprep.subr.mxu0 0.0
    %427 = vmatpush1.msra.mxu0 0.0
    %428 = vmatprep.subr.mxu0 0.0
    %429 = vmatpush1.msra.mxu0 0.0
    %430 = vmatprep.subr.mxu0 0.0
    %431 = vmatpush1.msra.mxu0 0.0
    %432 = vmatprep.subr.mxu0 0.0
    %433 = vmatpush1.msra.mxu0 0.0
    %434 = vmatprep.subr.mxu0 0.0
    %435 = vmatpush1.msra.mxu0 0.0
    %436 = vmatprep.subr.mxu0 0.0
    %437 = vmatpush1.msra.mxu0 0.0
    %438 = vmatprep.subr.mxu0 0.0
    %439 = vmatpush1.msra.mxu0 0.0
    %440 = vmatprep.subr.mxu0 0.0
    %441 = vmatpush1.msra.mxu0 %v291
    %442 = vmatprep.subr.mxu0 0.0
    %443 = vmatpush1.msra.mxu0 %v286
    %444 = vmatprep.subr.mxu0 0.0
    %445 = vmatpush2.msra.mxu0 0.0
    %446 = vmatprep.subr.mxu0 0.0
    %447 = vmatpush2.msra.mxu0 0.0
    %448 = vmatprep.subr.mxu0 0.0
    %449 = vmatpush2.msra.mxu0 0.0
    %450 = vmatprep.subr.mxu0 0.0
    %451 = vmatpush2.msra.mxu0 0.0
    %452 = vmatprep.subr.mxu0 0.0
    %453 = vmatpush2.msra.mxu0 0.0
    %454 = vmatprep.subr.mxu0 0.0
    %455 = vmatpush2.msra.mxu0 0.0
    %456 = vmatprep.subr.mxu0 0.0
    %457 = vmatpush2.msra.mxu0 0.0
    %458 = vmatprep.subr.mxu0 0.0
    %459 = vmatpush2.msra.mxu0 0.0
    %460 = vmatprep.subr.mxu0 0.0
    %461 = vmatpush2.msra.mxu0 0.0
    %462 = vmatprep.subr.mxu0 0.0
    %463 = vmatpush2.msra.mxu0 0.0
    %464 = vmatprep.subr.mxu0 0.0
    %465 = vmatpush2.msra.mxu0 0.0
    %466 = vmatprep.subr.mxu0 0.0
    %467 = vmatpush2.msra.mxu0 0.0
    %468 = vmatprep.subr.mxu0 0.0
    %469 = vmatpush2.msra.mxu0 0.0
    %470 = vmatprep.subr.mxu0 0.0
    %471 = vmatpush2.msra.mxu0 0.0
    %472 = vmatprep.subr.mxu0 0.0
    %473 = vmatpush2.msra.mxu0 0.0
    %474 = vmatprep.subr.mxu0 0.0
    %475 = vmatpush2.msra.mxu0 0.0
    %476 = vmatprep.mubr.f32.mxu0 0.0
    %477 = vmatmul.mubr.f32.gmra.mxu0 %v401
    %v478 = vpop.f32.mrf.mxu0
    %v479 = vadd.f32 0.0, %v478
    %v480 = vpop.f32.mrf.mxu0
    %481 = vmatprep.mubr.f32.mxu0 0.0
    %482 = vmatmul.mubr.f32.gmra.mxu0 %v404
    %v483 = vpop.f32.mrf.mxu0
    %v484 = vadd.f32 0.0, %v483
    %v485 = vpop.f32.mrf.mxu0
    %486 = vmatprep.mubr.f32.mxu0 0.0
    %487 = vmatmul.mubr.f32.gmra.mxu0 %v407
    %v488 = vpop.f32.mrf.mxu0
    %v489 = vadd.f32 0.0, %v488
    %v490 = vpop.f32.mrf.mxu0
    %491 = vmatprep.mubr.f32.mxu0 0.0
    %492 = vmatmul.mubr.f32.gmra.mxu0 %v410
    %v493 = vpop.f32.mrf.mxu0
    %v494 = vadd.f32 0.0, %v493
    %v495 = vpop.f32.mrf.mxu0
    %496 = vdwg.mxu0
    %v498 = vsel %vm399, %v79, 0
    %v501 = vsel %vm399, %v80, 0
    %v504 = vsel %vm399, %v81, 0
    %v507 = vsel %vm399, %v82, 0
    %509 = vmatprep.subr.mxu0 0.0
    %510 = vmatpush1.msra.mxu0 0.0
    %511 = vmatprep.subr.mxu0 0.0
    %512 = vmatpush1.msra.mxu0 0.0
    %513 = vmatprep.subr.mxu0 0.0
    %514 = vmatpush1.msra.mxu0 0.0
    %515 = vmatprep.subr.mxu0 0.0
    %516 = vmatpush1.msra.mxu0 0.0
    %517 = vmatprep.subr.mxu0 0.0
    %518 = vmatpush1.msra.mxu0 0.0
    %519 = vmatprep.subr.mxu0 0.0
    %520 = vmatpush1.msra.mxu0 0.0
    %521 = vmatprep.subr.mxu0 0.0
    %522 = vmatpush1.msra.mxu0 0.0
    %523 = vmatprep.subr.mxu0 0.0
    %524 = vmatpush1.msra.mxu0 0.0
    %525 = vmatprep.subr.mxu0 0.0
    %526 = vmatpush1.msra.mxu0 0.0
    %527 = vmatprep.subr.mxu0 0.0
    %528 = vmatpush1.msra.mxu0 0.0
    %529 = vmatprep.subr.mxu0 0.0
    %530 = vmatpush1.msra.mxu0 0.0
    %531 = vmatprep.subr.mxu0 0.0
    %532 = vmatpush1.msra.mxu0 0.0
    %533 = vmatprep.subr.mxu0 0.0
    %534 = vmatpush1.msra.mxu0 0.0
    %535 = vmatprep.subr.mxu0 0.0
    %536 = vmatpush1.msra.mxu0 0.0
    %537 = vmatprep.subr.mxu0 0.0
    %538 = vmatpush1.msra.mxu0 %v200
    %539 = vmatprep.subr.mxu0 0.0
    %540 = vmatpush1.msra.mxu0 %v195
    %541 = vmatprep.subr.mxu0 0.0
    %542 = vmatpush2.msra.mxu0 0.0
    %543 = vmatprep.subr.mxu0 0.0
    %544 = vmatpush2.msra.mxu0 0.0
    %545 = vmatprep.subr.mxu0 0.0
    %546 = vmatpush2.msra.mxu0 0.0
    %547 = vmatprep.subr.mxu0 0.0
    %548 = vmatpush2.msra.mxu0 0.0
    %549 = vmatprep.subr.mxu0 0.0
    %550 = vmatpush2.msra.mxu0 0.0
    %551 = vmatprep.subr.mxu0 0.0
    %552 = vmatpush2.msra.mxu0 0.0
    %553 = vmatprep.subr.mxu0 0.0
    %554 = vmatpush2.msra.mxu0 0.0
    %555 = vmatprep.subr.mxu0 0.0
    %556 = vmatpush2.msra.mxu0 0.0
    %557 = vmatprep.subr.mxu0 0.0
    %558 = vmatpush2.msra.mxu0 0.0
    %559 = vmatprep.subr.mxu0 0.0
    %560 = vmatpush2.msra.mxu0 0.0
    %561 = vmatprep.subr.mxu0 0.0
    %562 = vmatpush2.msra.mxu0 0.0
    %563 = vmatprep.subr.mxu0 0.0
    %564 = vmatpush2.msra.mxu0 0.0
    %565 = vmatprep.subr.mxu0 0.0
    %566 = vmatpush2.msra.mxu0 0.0
    %567 = vmatprep.subr.mxu0 0.0
    %568 = vmatpush2.msra.mxu0 0.0
    %569 = vmatprep.subr.mxu0 0.0
    %570 = vmatpush2.msra.mxu0 0.0
    %571 = vmatprep.subr.mxu0 0.0
    %572 = vmatpush2.msra.mxu0 0.0
    %573 = vmatprep.mubr.f32.mxu0 0.0
    %574 = vmatmul.mubr.f32.gmra.mxu0 %v498
    %v575 = vpop.f32.mrf.mxu0
    %v576 = vadd.f32 %v479, %v575
    %v577 = vpop.f32.mrf.mxu0
    %578 = vmatprep.mubr.f32.mxu0 0.0
    %579 = vmatmul.mubr.f32.gmra.mxu0 %v501
    %v580 = vpop.f32.mrf.mxu0
    %v581 = vadd.f32 %v484, %v580
    %v582 = vpop.f32.mrf.mxu0
    %583 = vmatprep.mubr.f32.mxu0 0.0
    %584 = vmatmul.mubr.f32.gmra.mxu0 %v504
    %v585 = vpop.f32.mrf.mxu0
    %v586 = vadd.f32 %v489, %v585
    %v587 = vpop.f32.mrf.mxu0
    %588 = vmatprep.mubr.f32.mxu0 0.0
    %589 = vmatmul.mubr.f32.gmra.mxu0 %v507
    %v590 = vpop.f32.mrf.mxu0
    %v591 = vadd.f32 %v494, %v590
    %v592 = vpop.f32.mrf.mxu0
    %593 = vdwg.mxu0
    %v594 = vadd.f32 %v576, %v381
    %v595 = vadd.f32 %v581, %v386
    %v596 = vadd.f32 %v586, %v391
    %v597 = vadd.f32 %v591, %v396
    %v598 = vmul.f32 %v594, 0.33333334
    %v599 = vmul.f32 %v595, 0.33333334
    %v600 = vmul.f32 %v596, 0.33333334
    %v601 = vmul.f32 %v597, 0.33333334
    %v602 = vld [vmem:[%s12] sm:$0x1]
    %v603 = vld [vmem:[%s13] sm:$0x1]
    %v604 = vld [vmem:[%s14] sm:$0xff]
    %v605 = vld [vmem:[%s14 + $0x8] sm:$0xff]
    %v606 = vld [vmem:[%s14 + $0x10] sm:$0xff]
    %v607 = vld [vmem:[%s14 + $0x18] sm:$0xff]
    %v608 = vld [vmem:[%s14 + $0x20] sm:$0xff]
    %v609 = vld [vmem:[%s14 + $0x28] sm:$0xff]
    %v610 = vld [vmem:[%s14 + $0x30] sm:$0xff]
    %v611 = vld [vmem:[%s14 + $0x38] sm:$0xff]
    %v612 = vld [vmem:[%s14 + $0x40] sm:$0xff]
    %v613 = vld [vmem:[%s14 + $0x48] sm:$0xff]
    %v614 = vld [vmem:[%s14 + $0x50] sm:$0xff]
    %v615 = vld [vmem:[%s14 + $0x58] sm:$0xff]
    %v616 = vld [vmem:[%s14 + $0x60] sm:$0xff]
    %v617 = vld [vmem:[%s14 + $0x68] sm:$0xff]
    %v618 = vld [vmem:[%s14 + $0x70] sm:$0xff]
    %v619 = vld [vmem:[%s14 + $0x78] sm:$0xff]
    %v620 = vld [vmem:[%s15] sm:$0x1]
    %v621 = vld [vmem:[%s16] sm:$0x7]
    %s622 = sld [smem:[#allocation2]]
    %vm623 = vcmask 261120
    %v625 = vsel %vm623, %v95, 0
    %v628 = vsel %vm623, %v96, 0
    %v631 = vsel %vm623, %v97, 0
    %v634 = vsel %vm623, %v98, 0
    %636 = vmatprep.subr.mxu0 0.0
    %637 = vmatpush1.msra.mxu0 0.0
    %638 = vmatprep.subr.mxu0 0.0
    %639 = vmatpush1.msra.mxu0 0.0
    %640 = vmatprep.subr.mxu0 0.0
    %641 = vmatpush1.msra.mxu0 0.0
    %642 = vmatprep.subr.mxu0 0.0
    %643 = vmatpush1.msra.mxu0 0.0
    %644 = vmatprep.subr.mxu0 0.0
    %645 = vmatpush1.msra.mxu0 0.0
    %646 = vmatprep.subr.mxu0 0.0
    %647 = vmatpush1.msra.mxu0 0.0
    %648 = vmatprep.subr.mxu0 0.0
    %649 = vmatpush1.msra.mxu0 0.0
    %650 = vmatprep.subr.mxu0 0.0
    %651 = vmatpush1.msra.mxu0 0.0
    %652 = vmatprep.subr.mxu0 0.0
    %653 = vmatpush1.msra.mxu0 0.0
    %654 = vmatprep.subr.mxu0 0.0
    %655 = vmatpush1.msra.mxu0 0.0
    %656 = vmatprep.subr.mxu0 0.0
    %657 = vmatpush1.msra.mxu0 0.0
    %658 = vmatprep.subr.mxu0 0.0
    %659 = vmatpush1.msra.mxu0 0.0
    %660 = vmatprep.subr.mxu0 0.0
    %661 = vmatpush1.msra.mxu0 %v601
    %662 = vmatprep.subr.mxu0 0.0
    %663 = vmatpush1.msra.mxu0 %v600
    %664 = vmatprep.subr.mxu0 0.0
    %665 = vmatpush1.msra.mxu0 %v599
    %666 = vmatprep.subr.mxu0 0.0
    %667 = vmatpush1.msra.mxu0 %v598
    %668 = vmatprep.subr.mxu0 0.0
    %669 = vmatpush2.msra.mxu0 0.0
    %670 = vmatprep.subr.mxu0 0.0
    %671 = vmatpush2.msra.mxu0 0.0
    %672 = vmatprep.subr.mxu0 0.0
    %673 = vmatpush2.msra.mxu0 0.0
    %674 = vmatprep.subr.mxu0 0.0
    %675 = vmatpush2.msra.mxu0 0.0
    %676 = vmatprep.subr.mxu0 0.0
    %677 = vmatpush2.msra.mxu0 0.0
    %678 = vmatprep.subr.mxu0 0.0
    %679 = vmatpush2.msra.mxu0 0.0
    %680 = vmatprep.subr.mxu0 0.0
    %681 = vmatpush2.msra.mxu0 0.0
    %682 = vmatprep.subr.mxu0 0.0
    %683 = vmatpush2.msra.mxu0 0.0
    %684 = vmatprep.subr.mxu0 0.0
    %685 = vmatpush2.msra.mxu0 0.0
    %686 = vmatprep.subr.mxu0 0.0
    %687 = vmatpush2.msra.mxu0 0.0
    %688 = vmatprep.subr.mxu0 0.0
    %689 = vmatpush2.msra.mxu0 0.0
    %690 = vmatprep.subr.mxu0 0.0
    %691 = vmatpush2.msra.mxu0 0.0
    %692 = vmatprep.subr.mxu0 0.0
    %693 = vmatpush2.msra.mxu0 0.0
    %694 = vmatprep.subr.mxu0 0.0
    %695 = vmatpush2.msra.mxu0 0.0
    %696 = vmatprep.subr.mxu0 0.0
    %697 = vmatpush2.msra.mxu0 0.0
    %698 = vmatprep.subr.mxu0 0.0
    %699 = vmatpush2.msra.mxu0 0.0
    %700 = vmatprep.mubr.f32.mxu0 0.0
    %701 = vmatmul.mubr.f32.gmra.mxu0 %v625
    %v702 = vpop.f32.mrf.mxu0
    %v703 = vadd.f32 0.0, %v702
    %v704 = vpop.f32.mrf.mxu0
    %705 = vmatprep.mubr.f32.mxu0 0.0
    %706 = vmatmul.mubr.f32.gmra.mxu0 %v628
    %v707 = vpop.f32.mrf.mxu0
    %v708 = vadd.f32 0.0, %v707
    %v709 = vpop.f32.mrf.mxu0
    %710 = vmatprep.mubr.f32.mxu0 0.0
    %711 = vmatmul.mubr.f32.gmra.mxu0 %v631
    %v712 = vpop.f32.mrf.mxu0
    %v713 = vadd.f32 0.0, %v712
    %v714 = vpop.f32.mrf.mxu0
    %715 = vmatprep.mubr.f32.mxu0 0.0
    %716 = vmatmul.mubr.f32.gmra.mxu0 %v634
    %v717 = vpop.f32.mrf.mxu0
    %v718 = vadd.f32 0.0, %v717
    %v719 = vpop.f32.mrf.mxu0
    %720 = vdwg.mxu0
    %v721 = vadd.f32 %v598, %v703
    %v722 = vadd.f32 %v599, %v708
    %v723 = vadd.f32 %v600, %v713
    %v724 = vadd.f32 %v601, %v718
    %725 = vmatprep.subr.mxu0 0.0
    %726 = vmatpush1.msra.mxu0 0.0
    %727 = vmatprep.subr.mxu0 0.0
    %728 = vmatpush1.msra.mxu0 0.0
    %729 = vmatprep.subr.mxu0 0.0
    %730 = vmatpush1.msra.mxu0 0.0
    %731 = vmatprep.subr.mxu0 0.0
    %732 = vmatpush1.msra.mxu0 0.0
    %733 = vmatprep.subr.mxu0 0.0
    %734 = vmatpush1.msra.mxu0 0.0
    %735 = vmatprep.subr.mxu0 0.0
    %736 = vmatpush1.msra.mxu0 0.0
    %737 = vmatprep.subr.mxu0 0.0
    %738 = vmatpush1.msra.mxu0 0.0
    %739 = vmatprep.subr.mxu0 0.0
    %740 = vmatpush1.msra.mxu0 0.0
    %741 = vmatprep.subr.mxu0 0.0
    %742 = vmatpush1.msra.mxu0 0.0
    %743 = vmatprep.subr.mxu0 0.0
    %744 = vmatpush1.msra.mxu0 0.0
    %745 = vmatprep.subr.mxu0 0.0
    %746 = vmatpush1.msra.mxu0 0.0
    %747 = vmatprep.subr.mxu0 0.0
    %748 = vmatpush1.msra.mxu0 0.0
    %749 = vmatprep.subr.mxu0 0.0
    %750 = vmatpush1.msra.mxu0 %v724
    %751 = vmatprep.subr.mxu0 0.0
    %752 = vmatpush1.msra.mxu0 %v723
    %753 = vmatprep.subr.mxu0 0.0
    %754 = vmatpush1.msra.mxu0 %v722
    %755 = vmatprep.subr.mxu0 0.0
    %756 = vmatpush1.msra.mxu0 %v721
    %757 = vmatprep.subr.mxu0 0.0
    %758 = vmatpush2.msra.mxu0 0.0
    %759 = vmatprep.subr.mxu0 0.0
    %760 = vmatpush2.msra.mxu0 0.0
    %761 = vmatprep.subr.mxu0 0.0
    %762 = vmatpush2.msra.mxu0 0.0
    %763 = vmatprep.subr.mxu0 0.0
    %764 = vmatpush2.msra.mxu0 0.0
    %765 = vmatprep.subr.mxu0 0.0
    %766 = vmatpush2.msra.mxu0 0.0
    %767 = vmatprep.subr.mxu0 0.0
    %768 = vmatpush2.msra.mxu0 0.0
    %769 = vmatprep.subr.mxu0 0.0
    %770 = vmatpush2.msra.mxu0 0.0
    %771 = vmatprep.subr.mxu0 0.0
    %772 = vmatpush2.msra.mxu0 0.0
    %773 = vmatprep.subr.mxu0 0.0
    %774 = vmatpush2.msra.mxu0 0.0
    %775 = vmatprep.subr.mxu0 0.0
    %776 = vmatpush2.msra.mxu0 0.0
    %777 = vmatprep.subr.mxu0 0.0
    %778 = vmatpush2.msra.mxu0 0.0
    %779 = vmatprep.subr.mxu0 0.0
    %780 = vmatpush2.msra.mxu0 0.0
    %781 = vmatprep.subr.mxu0 0.0
    %782 = vmatpush2.msra.mxu0 0.0
    %783 = vmatprep.subr.mxu0 0.0
    %784 = vmatpush2.msra.mxu0 0.0
    %785 = vmatprep.subr.mxu0 0.0
    %786 = vmatpush2.msra.mxu0 0.0
    %787 = vmatprep.subr.mxu0 0.0
    %788 = vmatpush2.msra.mxu0 0.0
    %789 = vmatprep.mubr.f32.mxu0 0.0
    %790 = vmatmul.mubr.f32.gmra.mxu0 %v625
    %v791 = vpop.f32.mrf.mxu0
    %v792 = vadd.f32 0.0, %v791
    %v793 = vpop.f32.mrf.mxu0
    %794 = vmatprep.mubr.f32.mxu0 0.0
    %795 = vmatmul.mubr.f32.gmra.mxu0 %v628
    %v796 = vpop.f32.mrf.mxu0
    %v797 = vadd.f32 0.0, %v796
    %v798 = vpop.f32.mrf.mxu0
    %799 = vmatprep.mubr.f32.mxu0 0.0
    %800 = vmatmul.mubr.f32.gmra.mxu0 %v631
    %v801 = vpop.f32.mrf.mxu0
    %v802 = vadd.f32 0.0, %v801
    %v803 = vpop.f32.mrf.mxu0
    %804 = vmatprep.mubr.f32.mxu0 0.0
    %805 = vmatmul.mubr.f32.gmra.mxu0 %v634
    %v806 = vpop.f32.mrf.mxu0
    %v807 = vadd.f32 0.0, %v806
    %v808 = vpop.f32.mrf.mxu0
    %809 = vdwg.mxu0
    %v811 = vlaneseq
    %v812 = vshrl.u32 %v811, 7
    %v813 = vsub.s32 0, %v812
    %v814 = vrot.slane %v602, %v813
    %v816 = vmul.f32 %v721, %v814
    %v817 = vmul.f32 %v722, %v814
    %v818 = vmul.f32 %v723, %v814
    %v819 = vmul.f32 %v724, %v814
    %v821 = vlaneseq
    %v822 = vshrl.u32 %v821, 7
    %v823 = vsub.s32 0, %v822
    %v824 = vrot.slane %v603, %v823
    %v826 = vmul.f32 %v792, %v824
    %v827 = vmul.f32 %v797, %v824
    %v828 = vmul.f32 %v802, %v824
    %v829 = vmul.f32 %v807, %v824
    %v830 = vadd.f32 %v816, %v826
    %v831 = vadd.f32 %v817, %v827
    %v832 = vadd.f32 %v818, %v828
    %v833 = vadd.f32 %v819, %v829
    %834 = vadd.xlane.f32.xlu0 %v830
    %v835 = vpop.xlane.xlu0 %834
    %836 = vadd.xlane.f32.xlu0 %v831
    %v837 = vpop.xlane.xlu0 %836
    %838 = vadd.xlane.f32.xlu0 %v832
    %v839 = vpop.xlane.xlu0 %838
    %840 = vadd.xlane.f32.xlu0 %v833
    %v841 = vpop.xlane.xlu0 %840
    %v842 = vstv %s622
    %v843 = vadd.f32 %v835, %v842
    %v844 = vadd.f32 %v837, %v842
    %v845 = vadd.f32 %v839, %v842
    %v846 = vadd.f32 %v841, %v842
    %v847 = vsel %vm108, %v843, -1e+30
    %v848 = vsel %vm109, %v844, -1e+30
    %v849 = vsel %vm110, %v845, -1e+30
    %v850 = vsel %vm111, %v846, -1e+30
    %vm851 = vcmask 15360
    %v852 = vsel %vm851, %v847, -inf
    %v853 = vsel %vm851, %v848, -inf
    %v854 = vsel %vm851, %v849, -inf
    %v855 = vsel %vm851, %v850, -inf
    %v856 = vmax.f32 %v852, %v853
    %v857 = vmax.f32 %v854, %v855
    %v858 = vmax.f32 %v856, %v857
    %v859 = vrot.slane %v858, 4
    %v860 = vmax.f32 %v858, %v859
    %v861 = vrot.slane %v860, 2
    %v862 = vmax.f32 %v860, %v861
    %v863 = vrot.slane %v862, 1
    %v864 = vmax.f32 %v862, %v863
    %v865 = vmul.f32 %v104, %v864
    %v866 = vmul.f32 %v105, %v864
    %v867 = vmul.f32 %v106, %v864
    %v868 = vmul.f32 %v107, %v864
    %v869 = vsel %vm851, %v865, 0.0
    %870 = vadd.xlane.f32.xlu0 %v869
    %v871 = vpop.xlane.xlu0 %870
    %v872 = vsel %vm851, %v866, 0.0
    %873 = vadd.xlane.f32.xlu0 %v872
    %v874 = vpop.xlane.xlu0 %873
    %v875 = vsel %vm851, %v867, 0.0
    %876 = vadd.xlane.f32.xlu0 %v875
    %v877 = vpop.xlane.xlu0 %876
    %v878 = vsel %vm851, %v868, 0.0
    %879 = vadd.xlane.f32.xlu0 %v878
    %v880 = vpop.xlane.xlu0 %879
    %v881 = vsub.f32 %v843, %v871
    %v882 = vsub.f32 %v844, %v874
    %v883 = vsub.f32 %v845, %v877
    %v884 = vsub.f32 %v846, %v880
    %v885 = vmul.f32 %v881, 1.442695
    %v886 = vpow.pop %v885
    %v887 = vmul.f32 %v882, 1.442695
    %v888 = vpow.pop %v887
    %v889 = vmul.f32 %v883, 1.442695
    %v890 = vpow.pop %v889
    %v891 = vmul.f32 %v884, 1.442695
    %v892 = vpow.pop %v891
    %v894 = vsel %vm623, %v103, 0
    %896 = vmatprep.subr.mxu0 0.0
    %897 = vmatpush1.msra.mxu0 0.0
    %898 = vmatprep.subr.mxu0 0.0
    %899 = vmatpush1.msra.mxu0 0.0
    %900 = vmatprep.subr.mxu0 0.0
    %901 = vmatpush1.msra.mxu0 0.0
    %902 = vmatprep.subr.mxu0 0.0
    %903 = vmatpush1.msra.mxu0 0.0
    %904 = vmatprep.subr.mxu0 0.0
    %905 = vmatpush1.msra.mxu0 0.0
    %906 = vmatprep.subr.mxu0 0.0
    %907 = vmatpush1.msra.mxu0 0.0
    %908 = vmatprep.subr.mxu0 0.0
    %909 = vmatpush1.msra.mxu0 0.0
    %910 = vmatprep.subr.mxu0 0.0
    %911 = vmatpush1.msra.mxu0 0.0
    %912 = vmatprep.subr.mxu0 0.0
    %913 = vmatpush1.msra.mxu0 0.0
    %914 = vmatprep.subr.mxu0 0.0
    %915 = vmatpush1.msra.mxu0 0.0
    %916 = vmatprep.subr.mxu0 0.0
    %917 = vmatpush1.msra.mxu0 0.0
    %918 = vmatprep.subr.mxu0 0.0
    %919 = vmatpush1.msra.mxu0 0.0
    %920 = vmatprep.subr.mxu0 0.0
    %921 = vmatpush1.msra.mxu0 %v892
    %922 = vmatprep.subr.mxu0 0.0
    %923 = vmatpush1.msra.mxu0 %v890
    %924 = vmatprep.subr.mxu0 0.0
    %925 = vmatpush1.msra.mxu0 %v888
    %926 = vmatprep.subr.mxu0 0.0
    %927 = vmatpush1.msra.mxu0 %v886
    %928 = vmatprep.subr.mxu0 0.0
    %929 = vmatpush2.msra.mxu0 0.0
    %930 = vmatprep.subr.mxu0 0.0
    %931 = vmatpush2.msra.mxu0 0.0
    %932 = vmatprep.subr.mxu0 0.0
    %933 = vmatpush2.msra.mxu0 0.0
    %934 = vmatprep.subr.mxu0 0.0
    %935 = vmatpush2.msra.mxu0 0.0
    %936 = vmatprep.subr.mxu0 0.0
    %937 = vmatpush2.msra.mxu0 0.0
    %938 = vmatprep.subr.mxu0 0.0
    %939 = vmatpush2.msra.mxu0 0.0
    %940 = vmatprep.subr.mxu0 0.0
    %941 = vmatpush2.msra.mxu0 0.0
    %942 = vmatprep.subr.mxu0 0.0
    %943 = vmatpush2.msra.mxu0 0.0
    %944 = vmatprep.subr.mxu0 0.0
    %945 = vmatpush2.msra.mxu0 0.0
    %946 = vmatprep.subr.mxu0 0.0
    %947 = vmatpush2.msra.mxu0 0.0
    %948 = vmatprep.subr.mxu0 0.0
    %949 = vmatpush2.msra.mxu0 0.0
    %950 = vmatprep.subr.mxu0 0.0
    %951 = vmatpush2.msra.mxu0 0.0
    %952 = vmatprep.subr.mxu0 0.0
    %953 = vmatpush2.msra.mxu0 0.0
    %954 = vmatprep.subr.mxu0 0.0
    %955 = vmatpush2.msra.mxu0 0.0
    %956 = vmatprep.subr.mxu0 0.0
    %957 = vmatpush2.msra.mxu0 0.0
    %958 = vmatprep.subr.mxu0 0.0
    %959 = vmatpush2.msra.mxu0 0.0
    %960 = vmatprep.mubr.f32.mxu0 0.0
    %961 = vmatmul.mubr.f32.gmra.mxu0 %v894
    %v962 = vpop.f32.mrf.mxu0
    %v963 = vadd.f32 0.0, %v962
    %v964 = vpop.f32.mrf.mxu0
    %965 = vdwg.mxu0
    %v967 = vsel %vm851, %v104, 0
    %v970 = vsel %vm851, %v105, 0
    %v973 = vsel %vm851, %v106, 0
    %v976 = vsel %vm851, %v107, 0
    %vm978 = vcmask 1041408
    %v980 = vsel %vm978, %v963, 0
    %982 = vmatprep.subr.mxu0 0.0
    %983 = vmatpush1.msra.mxu0 0.0
    %984 = vmatprep.subr.mxu0 0.0
    %985 = vmatpush1.msra.mxu0 0.0
    %986 = vmatprep.subr.mxu0 0.0
    %987 = vmatpush1.msra.mxu0 0.0
    %988 = vmatprep.subr.mxu0 0.0
    %989 = vmatpush1.msra.mxu0 0.0
    %990 = vmatprep.subr.mxu0 0.0
    %991 = vmatpush1.msra.mxu0 0.0
    %992 = vmatprep.subr.mxu0 0.0
    %993 = vmatpush1.msra.mxu0 0.0
    %994 = vmatprep.subr.mxu0 0.0
    %995 = vmatpush1.msra.mxu0 0.0
    %996 = vmatprep.subr.mxu0 0.0
    %997 = vmatpush1.msra.mxu0 0.0
    %998 = vmatprep.subr.mxu0 0.0
    %999 = vmatpush1.msra.mxu0 0.0
    %1000 = vmatprep.subr.mxu0 0.0
    %1001 = vmatpush1.msra.mxu0 0.0
    %1002 = vmatprep.subr.mxu0 0.0
    %1003 = vmatpush1.msra.mxu0 0.0
    %1004 = vmatprep.subr.mxu0 0.0
    %1005 = vmatpush1.msra.mxu0 0.0
    %1006 = vmatprep.subr.mxu0 0.0
    %1007 = vmatpush1.msra.mxu0 0.0
    %1008 = vmatprep.subr.mxu0 0.0
    %1009 = vmatpush1.msra.mxu0 0.0
    %1010 = vmatprep.subr.mxu0 0.0
    %1011 = vmatpush1.msra.mxu0 0.0
    %1012 = vmatprep.subr.mxu0 0.0
    %1013 = vmatpush1.msra.mxu0 %v980
    %1014 = vmatprep.subr.mxu0 0.0
    %1015 = vmatpush2.msra.mxu0 0.0
    %1016 = vmatprep.subr.mxu0 0.0
    %1017 = vmatpush2.msra.mxu0 0.0
    %1018 = vmatprep.subr.mxu0 0.0
    %1019 = vmatpush2.msra.mxu0 0.0
    %1020 = vmatprep.subr.mxu0 0.0
    %1021 = vmatpush2.msra.mxu0 0.0
    %1022 = vmatprep.subr.mxu0 0.0
    %1023 = vmatpush2.msra.mxu0 0.0
    %1024 = vmatprep.subr.mxu0 0.0
    %1025 = vmatpush2.msra.mxu0 0.0
    %1026 = vmatprep.subr.mxu0 0.0
    %1027 = vmatpush2.msra.mxu0 0.0
    %1028 = vmatprep.subr.mxu0 0.0
    %1029 = vmatpush2.msra.mxu0 0.0
    %1030 = vmatprep.subr.mxu0 0.0
    %1031 = vmatpush2.msra.mxu0 0.0
    %1032 = vmatprep.subr.mxu0 0.0
    %1033 = vmatpush2.msra.mxu0 0.0
    %1034 = vmatprep.subr.mxu0 0.0
    %1035 = vmatpush2.msra.mxu0 0.0
    %1036 = vmatprep.subr.mxu0 0.0
    %1037 = vmatpush2.msra.mxu0 0.0
    %1038 = vmatprep.subr.mxu0 0.0
    %1039 = vmatpush2.msra.mxu0 0.0
    %1040 = vmatprep.subr.mxu0 0.0
    %1041 = vmatpush2.msra.mxu0 0.0
    %1042 = vmatprep.subr.mxu0 0.0
    %1043 = vmatpush2.msra.mxu0 0.0
    %1044 = vmatprep.subr.mxu0 0.0
    %1045 = vmatpush2.msra.mxu0 0.0
    %1046 = vmatprep.mubr.f32.mxu0 0.0
    %1047 = vmatmul.mubr.f32.gmra.mxu0 %v967
    %v1048 = vpop.f32.mrf.mxu0
    %v1049 = vadd.f32 0.0, %v1048
    %v1050 = vpop.f32.mrf.mxu0
    %1051 = vmatprep.mubr.f32.mxu0 0.0
    %1052 = vmatmul.mubr.f32.gmra.mxu0 %v970
    %v1053 = vpop.f32.mrf.mxu0
    %v1054 = vadd.f32 0.0, %v1053
    %v1055 = vpop.f32.mrf.mxu0
    %1056 = vmatprep.mubr.f32.mxu0 0.0
    %1057 = vmatmul.mubr.f32.gmra.mxu0 %v973
    %v1058 = vpop.f32.mrf.mxu0
    %v1059 = vadd.f32 0.0, %v1058
    %v1060 = vpop.f32.mrf.mxu0
    %1061 = vmatprep.mubr.f32.mxu0 0.0
    %1062 = vmatmul.mubr.f32.gmra.mxu0 %v976
    %v1063 = vpop.f32.mrf.mxu0
    %v1064 = vadd.f32 0.0, %v1063
    %v1065 = vpop.f32.mrf.mxu0
    %1066 = vdwg.mxu0
    %v1067 = vrcp.pop %v1049
    %v1068 = vrcp.pop %v1054
    %v1069 = vrcp.pop %v1059
    %v1070 = vrcp.pop %v1064
    %v1071 = vmul.f32 %v886, %v1067
    %v1072 = vmul.f32 %v888, %v1068
    %v1073 = vmul.f32 %v890, %v1069
    %v1074 = vmul.f32 %v892, %v1070
    %1076 = vset.pattern.permute.xlu0 0
    %1077 = vperm.xlu0 %1076, %v1071
    %v1078 = vpop.permute.xlu0 %1077
    %1081 = vset.pattern.permute.xlu0 0
    %1082 = vperm.xlu0 %1081, %v1072
    %v1083 = vpop.permute.xlu0 %1082
    %1086 = vset.pattern.permute.xlu0 0
    %1087 = vperm.xlu0 %1086, %v1073
    %v1088 = vpop.permute.xlu0 %1087
    %1091 = vset.pattern.permute.xlu0 0
    %1092 = vperm.xlu0 %1091, %v1074
    %v1093 = vpop.permute.xlu0 %1092
    %v1095 = vmul.f32 %v721, %v1078
    %v1096 = vmul.f32 %v722, %v1083
    %v1097 = vmul.f32 %v723, %v1088
    %v1098 = vmul.f32 %v724, %v1093
    %1099 = vmatprep.subr.mxu0 0.0
    %1100 = vmatpush1.msra.mxu0 0.0
    %1101 = vmatprep.subr.mxu0 0.0
    %1102 = vmatpush1.msra.mxu0 0.0
    %1103 = vmatprep.subr.mxu0 0.0
    %1104 = vmatpush1.msra.mxu0 0.0
    %1105 = vmatprep.subr.mxu0 0.0
    %1106 = vmatpush1.msra.mxu0 0.0
    %1107 = vmatprep.subr.mxu0 0.0
    %1108 = vmatpush1.msra.mxu0 0.0
    %1109 = vmatprep.subr.mxu0 0.0
    %1110 = vmatpush1.msra.mxu0 0.0
    %1111 = vmatprep.subr.mxu0 0.0
    %1112 = vmatpush1.msra.mxu0 0.0
    %1113 = vmatprep.subr.mxu0 0.0
    %1114 = vmatpush1.msra.mxu0 0.0
    %1115 = vmatprep.subr.mxu0 0.0
    %1116 = vmatpush1.msra.mxu0 0.0
    %1117 = vmatprep.subr.mxu0 0.0
    %1118 = vmatpush1.msra.mxu0 0.0
    %1119 = vmatprep.subr.mxu0 0.0
    %1120 = vmatpush1.msra.mxu0 0.0
    %1121 = vmatprep.subr.mxu0 0.0
    %1122 = vmatpush1.msra.mxu0 0.0
    %1123 = vmatprep.subr.mxu0 0.0
    %1124 = vmatpush1.msra.mxu0 %v1098
    %1125 = vmatprep.subr.mxu0 0.0
    %1126 = vmatpush1.msra.mxu0 %v1097
    %1127 = vmatprep.subr.mxu0 0.0
    %1128 = vmatpush1.msra.mxu0 %v1096
    %1129 = vmatprep.subr.mxu0 0.0
    %1130 = vmatpush1.msra.mxu0 %v1095
    %1131 = vmatprep.subr.mxu0 0.0
    %1132 = vmatpush2.msra.mxu0 0.0
    %1133 = vmatprep.subr.mxu0 0.0
    %1134 = vmatpush2.msra.mxu0 0.0
    %1135 = vmatprep.subr.mxu0 0.0
    %1136 = vmatpush2.msra.mxu0 0.0
    %1137 = vmatprep.subr.mxu0 0.0
    %1138 = vmatpush2.msra.mxu0 0.0
    %1139 = vmatprep.subr.mxu0 0.0
    %1140 = vmatpush2.msra.mxu0 0.0
    %1141 = vmatprep.subr.mxu0 0.0
    %1142 = vmatpush2.msra.mxu0 0.0
    %1143 = vmatprep.subr.mxu0 0.0
    %1144 = vmatpush2.msra.mxu0 0.0
    %1145 = vmatprep.subr.mxu0 0.0
    %1146 = vmatpush2.msra.mxu0 0.0
    %1147 = vmatprep.subr.mxu0 0.0
    %1148 = vmatpush2.msra.mxu0 0.0
    %1149 = vmatprep.subr.mxu0 0.0
    %1150 = vmatpush2.msra.mxu0 0.0
    %1151 = vmatprep.subr.mxu0 0.0
    %1152 = vmatpush2.msra.mxu0 0.0
    %1153 = vmatprep.subr.mxu0 0.0
    %1154 = vmatpush2.msra.mxu0 0.0
    %1155 = vmatprep.subr.mxu0 0.0
    %1156 = vmatpush2.msra.mxu0 0.0
    %1157 = vmatprep.subr.mxu0 0.0
    %1158 = vmatpush2.msra.mxu0 0.0
    %1159 = vmatprep.subr.mxu0 0.0
    %1160 = vmatpush2.msra.mxu0 0.0
    %1161 = vmatprep.subr.mxu0 0.0
    %1162 = vmatpush2.msra.mxu0 0.0
    %1163 = vmatprep.mubr.f32.mxu0 0.0
    %1164 = vmatmul.mubr.f32.gmra.mxu0 %v894
    %v1165 = vpop.f32.mrf.mxu0
    %v1166 = vadd.f32 0.0, %v1165
    %v1167 = vpop.f32.mrf.mxu0
    %1168 = vdwg.mxu0
    %v1170 = vlaneseq
    %v1171 = vshrl.u32 %v1170, 7
    %v1172 = vsub.s32 0, %v1171
    %v1173 = vrot.slane %v620, %v1172
    %1175 = vmatprep.subr.mxu0 0.0
    %1176 = vmatpush1.msra.mxu0 %v619
    %1177 = vmatprep.subr.mxu0 0.0
    %1178 = vmatpush1.msra.mxu0 %v618
    %1179 = vmatprep.subr.mxu0 0.0
    %1180 = vmatpush1.msra.mxu0 %v617
    %1181 = vmatprep.subr.mxu0 0.0
    %1182 = vmatpush1.msra.mxu0 %v616
    %1183 = vmatprep.subr.mxu0 0.0
    %1184 = vmatpush1.msra.mxu0 %v615
    %1185 = vmatprep.subr.mxu0 0.0
    %1186 = vmatpush1.msra.mxu0 %v614
    %1187 = vmatprep.subr.mxu0 0.0
    %1188 = vmatpush1.msra.mxu0 %v613
    %1189 = vmatprep.subr.mxu0 0.0
    %1190 = vmatpush1.msra.mxu0 %v612
    %1191 = vmatprep.subr.mxu0 0.0
    %1192 = vmatpush1.msra.mxu0 %v611
    %1193 = vmatprep.subr.mxu0 0.0
    %1194 = vmatpush1.msra.mxu0 %v610
    %1195 = vmatprep.subr.mxu0 0.0
    %1196 = vmatpush1.msra.mxu0 %v609
    %1197 = vmatprep.subr.mxu0 0.0
    %1198 = vmatpush1.msra.mxu0 %v608
    %1199 = vmatprep.subr.mxu0 0.0
    %1200 = vmatpush1.msra.mxu0 %v607
    %1201 = vmatprep.subr.mxu0 0.0
    %1202 = vmatpush1.msra.mxu0 %v606
    %1203 = vmatprep.subr.mxu0 0.0
    %1204 = vmatpush1.msra.mxu0 %v605
    %1205 = vmatprep.subr.mxu0 0.0
    %1206 = vmatpush1.msra.mxu0 %v604
    %1207 = vmatprep.subr.mxu0 0.0
    %1208 = vmatpush2.msra.mxu0 0.0
    %1209 = vmatprep.subr.mxu0 0.0
    %1210 = vmatpush2.msra.mxu0 0.0
    %1211 = vmatprep.subr.mxu0 0.0
    %1212 = vmatpush2.msra.mxu0 0.0
    %1213 = vmatprep.subr.mxu0 0.0
    %1214 = vmatpush2.msra.mxu0 0.0
    %1215 = vmatprep.subr.mxu0 0.0
    %1216 = vmatpush2.msra.mxu0 0.0
    %1217 = vmatprep.subr.mxu0 0.0
    %1218 = vmatpush2.msra.mxu0 0.0
    %1219 = vmatprep.subr.mxu0 0.0
    %1220 = vmatpush2.msra.mxu0 0.0
    %1221 = vmatprep.subr.mxu0 0.0
    %1222 = vmatpush2.msra.mxu0 0.0
    %1223 = vmatprep.subr.mxu0 0.0
    %1224 = vmatpush2.msra.mxu0 0.0
    %1225 = vmatprep.subr.mxu0 0.0
    %1226 = vmatpush2.msra.mxu0 0.0
    %1227 = vmatprep.subr.mxu0 0.0
    %1228 = vmatpush2.msra.mxu0 0.0
    %1229 = vmatprep.subr.mxu0 0.0
    %1230 = vmatpush2.msra.mxu0 0.0
    %1231 = vmatprep.subr.mxu0 0.0
    %1232 = vmatpush2.msra.mxu0 0.0
    %1233 = vmatprep.subr.mxu0 0.0
    %1234 = vmatpush2.msra.mxu0 0.0
    %1235 = vmatprep.subr.mxu0 0.0
    %1236 = vmatpush2.msra.mxu0 0.0
    %1237 = vmatprep.subr.mxu0 0.0
    %1238 = vmatpush2.msra.mxu0 0.0
    %1239 = vmatprep.mubr.f32.mxu0 0.0
    %1240 = vmatmul.mubr.f32.gmra.mxu0 %v1166
    %v1241 = vpop.f32.mrf.mxu0
    %v1242 = vadd.f32 %v1173, %v1241
    %v1243 = vpop.f32.mrf.mxu0
    %1244 = vdwg.mxu0
    %v1245 = vtanh.pop %v1242
    %v1246 = vlaneseq
    %v1247 = vshrl.u32 %v1246, 7
    %v1248 = vsub.s32 0, %v1247
    %v1249 = vrot.slane %v621, %v1248
    %v1250 = vmul.f32 %v1245, %v1249
    %v1251 = vsel %vm978, %v1250, 0.0
    %1252 = vadd.xlane.f32.xlu0 %v1251
    %v1253 = vpop.xlane.xlu0 %1252
    %s1254 = sld [smem:[#allocation3]]
    %v1255 = vstv %s1254
    %v1256 = vadd.f32 %v1253, %v1255
    %v1257 = vmax.f32 %v1256, -1e+30
    %v1258 = vsub.f32 -1e+30, %v1257
    %v1259 = vmul.f32 %v1258, 1.442695
    %v1260 = vpow.pop %v1259
    %v1261 = vsub.f32 %v1256, %v1257
    %v1262 = vmul.f32 %v1261, 1.442695
    %v1263 = vpow.pop %v1262
    %v1264 = vmul.f32 %v1260, 0.0
    %v1265 = vadd.f32 %v1264, %v1263
    %v1267 = vsel %vm978, %v1260, 0
    %1269 = vmatprep.subr.mxu0 0.0
    %1270 = vmatpush1.msra.mxu0 0.0
    %1271 = vmatprep.subr.mxu0 0.0
    %1272 = vmatpush1.msra.mxu0 0.0
    %1273 = vmatprep.subr.mxu0 0.0
    %1274 = vmatpush1.msra.mxu0 0.0
    %1275 = vmatprep.subr.mxu0 0.0
    %1276 = vmatpush1.msra.mxu0 0.0
    %1277 = vmatprep.subr.mxu0 0.0
    %1278 = vmatpush1.msra.mxu0 0.0
    %1279 = vmatprep.subr.mxu0 0.0
    %1280 = vmatpush1.msra.mxu0 0.0
    %1281 = vmatprep.subr.mxu0 0.0
    %1282 = vmatpush1.msra.mxu0 0.0
    %1283 = vmatprep.subr.mxu0 0.0
    %1284 = vmatpush1.msra.mxu0 0.0
    %1285 = vmatprep.subr.mxu0 0.0
    %1286 = vmatpush1.msra.mxu0 0.0
    %1287 = vmatprep.subr.mxu0 0.0
    %1288 = vmatpush1.msra.mxu0 0.0
    %1289 = vmatprep.subr.mxu0 0.0
    %1290 = vmatpush1.msra.mxu0 0.0
    %1291 = vmatprep.subr.mxu0 0.0
    %1292 = vmatpush1.msra.mxu0 0.0
    %1293 = vmatprep.subr.mxu0 0.0
    %1294 = vmatpush1.msra.mxu0 0.0
    %1295 = vmatprep.subr.mxu0 0.0
    %1296 = vmatpush1.msra.mxu0 0.0
    %1297 = vmatprep.subr.mxu0 0.0
    %1298 = vmatpush1.msra.mxu0 0.0
    %1299 = vmatprep.subr.mxu0 0.0
    %1300 = vmatpush1.msra.mxu0 %v1267
    %1301 = vmatprep.subr.mxu0 0.0
    %1302 = vmatpush2.msra.mxu0 0.0
    %1303 = vmatprep.subr.mxu0 0.0
    %1304 = vmatpush2.msra.mxu0 0.0
    %1305 = vmatprep.subr.mxu0 0.0
    %1306 = vmatpush2.msra.mxu0 0.0
    %1307 = vmatprep.subr.mxu0 0.0
    %1308 = vmatpush2.msra.mxu0 0.0
    %1309 = vmatprep.subr.mxu0 0.0
    %1310 = vmatpush2.msra.mxu0 0.0
    %1311 = vmatprep.subr.mxu0 0.0
    %1312 = vmatpush2.msra.mxu0 0.0
    %1313 = vmatprep.subr.mxu0 0.0
    %1314 = vmatpush2.msra.mxu0 0.0
    %1315 = vmatprep.subr.mxu0 0.0
    %1316 = vmatpush2.msra.mxu0 0.0
    %1317 = vmatprep.subr.mxu0 0.0
    %1318 = vmatpush2.msra.mxu0 0.0
    %1319 = vmatprep.subr.mxu0 0.0
    %1320 = vmatpush2.msra.mxu0 0.0
    %1321 = vmatprep.subr.mxu0 0.0
    %1322 = vmatpush2.msra.mxu0 0.0
    %1323 = vmatprep.subr.mxu0 0.0
    %1324 = vmatpush2.msra.mxu0 0.0
    %1325 = vmatprep.subr.mxu0 0.0
    %1326 = vmatpush2.msra.mxu0 0.0
    %1327 = vmatprep.subr.mxu0 0.0
    %1328 = vmatpush2.msra.mxu0 0.0
    %1329 = vmatprep.subr.mxu0 0.0
    %1330 = vmatpush2.msra.mxu0 0.0
    %1331 = vmatprep.subr.mxu0 0.0
    %1332 = vmatpush2.msra.mxu0 0.0
    %1333 = vmatprep.mubr.f32.mxu0 0.0
    %1334 = vmatmul.mubr.f32.gmra.mxu0 %v967
    %v1335 = vpop.f32.mrf.mxu0
    %v1336 = vadd.f32 0.0, %v1335
    %v1337 = vpop.f32.mrf.mxu0
    %1338 = vmatprep.mubr.f32.mxu0 0.0
    %1339 = vmatmul.mubr.f32.gmra.mxu0 %v970
    %v1340 = vpop.f32.mrf.mxu0
    %v1341 = vadd.f32 0.0, %v1340
    %v1342 = vpop.f32.mrf.mxu0
    %1343 = vmatprep.mubr.f32.mxu0 0.0
    %1344 = vmatmul.mubr.f32.gmra.mxu0 %v973
    %v1345 = vpop.f32.mrf.mxu0
    %v1346 = vadd.f32 0.0, %v1345
    %v1347 = vpop.f32.mrf.mxu0
    %1348 = vmatprep.mubr.f32.mxu0 0.0
    %1349 = vmatmul.mubr.f32.gmra.mxu0 %v976
    %v1350 = vpop.f32.mrf.mxu0
    %v1351 = vadd.f32 0.0, %v1350
    %v1352 = vpop.f32.mrf.mxu0
    %1353 = vdwg.mxu0
    %v1355 = vsel %vm978, %v1263, 0
    %1357 = vmatprep.subr.mxu0 0.0
    %1358 = vmatpush1.msra.mxu0 0.0
    %1359 = vmatprep.subr.mxu0 0.0
    %1360 = vmatpush1.msra.mxu0 0.0
    %1361 = vmatprep.subr.mxu0 0.0
    %1362 = vmatpush1.msra.mxu0 0.0
    %1363 = vmatprep.subr.mxu0 0.0
    %1364 = vmatpush1.msra.mxu0 0.0
    %1365 = vmatprep.subr.mxu0 0.0
    %1366 = vmatpush1.msra.mxu0 0.0
    %1367 = vmatprep.subr.mxu0 0.0
    %1368 = vmatpush1.msra.mxu0 0.0
    %1369 = vmatprep.subr.mxu0 0.0
    %1370 = vmatpush1.msra.mxu0 0.0
    %1371 = vmatprep.subr.mxu0 0.0
    %1372 = vmatpush1.msra.mxu0 0.0
    %1373 = vmatprep.subr.mxu0 0.0
    %1374 = vmatpush1.msra.mxu0 0.0
    %1375 = vmatprep.subr.mxu0 0.0
    %1376 = vmatpush1.msra.mxu0 0.0
    %1377 = vmatprep.subr.mxu0 0.0
    %1378 = vmatpush1.msra.mxu0 0.0
    %1379 = vmatprep.subr.mxu0 0.0
    %1380 = vmatpush1.msra.mxu0 0.0
    %1381 = vmatprep.subr.mxu0 0.0
    %1382 = vmatpush1.msra.mxu0 0.0
    %1383 = vmatprep.subr.mxu0 0.0
    %1384 = vmatpush1.msra.mxu0 0.0
    %1385 = vmatprep.subr.mxu0 0.0
    %1386 = vmatpush1.msra.mxu0 0.0
    %1387 = vmatprep.subr.mxu0 0.0
    %1388 = vmatpush1.msra.mxu0 %v1355
    %1389 = vmatprep.subr.mxu0 0.0
    %1390 = vmatpush2.msra.mxu0 0.0
    %1391 = vmatprep.subr.mxu0 0.0
    %1392 = vmatpush2.msra.mxu0 0.0
    %1393 = vmatprep.subr.mxu0 0.0
    %1394 = vmatpush2.msra.mxu0 0.0
    %1395 = vmatprep.subr.mxu0 0.0
    %1396 = vmatpush2.msra.mxu0 0.0
    %1397 = vmatprep.subr.mxu0 0.0
    %1398 = vmatpush2.msra.mxu0 0.0
    %1399 = vmatprep.subr.mxu0 0.0
    %1400 = vmatpush2.msra.mxu0 0.0
    %1401 = vmatprep.subr.mxu0 0.0
    %1402 = vmatpush2.msra.mxu0 0.0
    %1403 = vmatprep.subr.mxu0 0.0
    %1404 = vmatpush2.msra.mxu0 0.0
    %1405 = vmatprep.subr.mxu0 0.0
    %1406 = vmatpush2.msra.mxu0 0.0
    %1407 = vmatprep.subr.mxu0 0.0
    %1408 = vmatpush2.msra.mxu0 0.0
    %1409 = vmatprep.subr.mxu0 0.0
    %1410 = vmatpush2.msra.mxu0 0.0
    %1411 = vmatprep.subr.mxu0 0.0
    %1412 = vmatpush2.msra.mxu0 0.0
    %1413 = vmatprep.subr.mxu0 0.0
    %1414 = vmatpush2.msra.mxu0 0.0
    %1415 = vmatprep.subr.mxu0 0.0
    %1416 = vmatpush2.msra.mxu0 0.0
    %1417 = vmatprep.subr.mxu0 0.0
    %1418 = vmatpush2.msra.mxu0 0.0
    %1419 = vmatprep.subr.mxu0 0.0
    %1420 = vmatpush2.msra.mxu0 0.0
    %1421 = vmatprep.mubr.f32.mxu0 0.0
    %1422 = vmatmul.mubr.f32.gmra.mxu0 %v967
    %v1423 = vpop.f32.mrf.mxu0
    %v1424 = vadd.f32 0.0, %v1423
    %v1425 = vpop.f32.mrf.mxu0
    %1426 = vmatprep.mubr.f32.mxu0 0.0
    %1427 = vmatmul.mubr.f32.gmra.mxu0 %v970
    %v1428 = vpop.f32.mrf.mxu0
    %v1429 = vadd.f32 0.0, %v1428
    %v1430 = vpop.f32.mrf.mxu0
    %1431 = vmatprep.mubr.f32.mxu0 0.0
    %1432 = vmatmul.mubr.f32.gmra.mxu0 %v973
    %v1433 = vpop.f32.mrf.mxu0
    %v1434 = vadd.f32 0.0, %v1433
    %v1435 = vpop.f32.mrf.mxu0
    %1436 = vmatprep.mubr.f32.mxu0 0.0
    %1437 = vmatmul.mubr.f32.gmra.mxu0 %v976
    %v1438 = vpop.f32.mrf.mxu0
    %v1439 = vadd.f32 0.0, %v1438
    %v1440 = vpop.f32.mrf.mxu0
    %1441 = vdwg.mxu0
    %1443 = vset.pattern.permute.xlu0 0
    %1444 = vperm.xlu0 %1443, %v1336
    %v1445 = vpop.permute.xlu0 %1444
    %1448 = vset.pattern.permute.xlu0 0
    %1449 = vperm.xlu0 %1448, %v1341
    %v1450 = vpop.permute.xlu0 %1449
    %1453 = vset.pattern.permute.xlu0 0
    %1454 = vperm.xlu0 %1453, %v1346
    %v1455 = vpop.permute.xlu0 %1454
    %1458 = vset.pattern.permute.xlu0 0
    %1459 = vperm.xlu0 %1458, %v1351
    %v1460 = vpop.permute.xlu0 %1459
    %v1462 = vmul.f32 %v1445, 0.0
    %v1463 = vmul.f32 %v1450, 0.0
    %v1464 = vmul.f32 %v1455, 0.0
    %v1465 = vmul.f32 %v1460, 0.0
    %1467 = vset.pattern.permute.xlu0 0
    %1468 = vperm.xlu0 %1467, %v1424
    %v1469 = vpop.permute.xlu0 %1468
    %1472 = vset.pattern.permute.xlu0 0
    %1473 = vperm.xlu0 %1472, %v1429
    %v1474 = vpop.permute.xlu0 %1473
    %1477 = vset.pattern.permute.xlu0 0
    %1478 = vperm.xlu0 %1477, %v1434
    %v1479 = vpop.permute.xlu0 %1478
    %1482 = vset.pattern.permute.xlu0 0
    %1483 = vperm.xlu0 %1482, %v1439
    %v1484 = vpop.permute.xlu0 %1483
    %v1486 = vmul.f32 %v721, %v1469
    %v1487 = vmul.f32 %v722, %v1474
    %v1488 = vmul.f32 %v723, %v1479
    %v1489 = vmul.f32 %v724, %v1484
    %v1490 = vadd.f32 %v1462, %v1486
    %v1491 = vadd.f32 %v1463, %v1487
    %v1492 = vadd.f32 %v1464, %v1488
    %v1493 = vadd.f32 %v1465, %v1489
    %v1494 = vadd.f32 %v598, %v792
    %v1495 = vadd.f32 %v599, %v797
    %v1496 = vadd.f32 %v600, %v802
    %v1497 = vadd.f32 %v601, %v807
    %1498 = vmatprep.subr.mxu0 0.0
    %1499 = vmatpush1.msra.mxu0 0.0
    %1500 = vmatprep.subr.mxu0 0.0
    %1501 = vmatpush1.msra.mxu0 0.0
    %1502 = vmatprep.subr.mxu0 0.0
    %1503 = vmatpush1.msra.mxu0 0.0
    %1504 = vmatprep.subr.mxu0 0.0
    %1505 = vmatpush1.msra.mxu0 0.0
    %1506 = vmatprep.subr.mxu0 0.0
    %1507 = vmatpush1.msra.mxu0 0.0
    %1508 = vmatprep.subr.mxu0 0.0
    %1509 = vmatpush1.msra.mxu0 0.0
    %1510 = vmatprep.subr.mxu0 0.0
    %1511 = vmatpush1.msra.mxu0 0.0
    %1512 = vmatprep.subr.mxu0 0.0
    %1513 = vmatpush1.msra.mxu0 0.0
    %1514 = vmatprep.subr.mxu0 0.0
    %1515 = vmatpush1.msra.mxu0 0.0
    %1516 = vmatprep.subr.mxu0 0.0
    %1517 = vmatpush1.msra.mxu0 0.0
    %1518 = vmatprep.subr.mxu0 0.0
    %1519 = vmatpush1.msra.mxu0 0.0
    %1520 = vmatprep.subr.mxu0 0.0
    %1521 = vmatpush1.msra.mxu0 0.0
    %1522 = vmatprep.subr.mxu0 0.0
    %1523 = vmatpush1.msra.mxu0 %v1497
    %1524 = vmatprep.subr.mxu0 0.0
    %1525 = vmatpush1.msra.mxu0 %v1496
    %1526 = vmatprep.subr.mxu0 0.0
    %1527 = vmatpush1.msra.mxu0 %v1495
    %1528 = vmatprep.subr.mxu0 0.0
    %1529 = vmatpush1.msra.mxu0 %v1494
    %1530 = vmatprep.subr.mxu0 0.0
    %1531 = vmatpush2.msra.mxu0 0.0
    %1532 = vmatprep.subr.mxu0 0.0
    %1533 = vmatpush2.msra.mxu0 0.0
    %1534 = vmatprep.subr.mxu0 0.0
    %1535 = vmatpush2.msra.mxu0 0.0
    %1536 = vmatprep.subr.mxu0 0.0
    %1537 = vmatpush2.msra.mxu0 0.0
    %1538 = vmatprep.subr.mxu0 0.0
    %1539 = vmatpush2.msra.mxu0 0.0
    %1540 = vmatprep.subr.mxu0 0.0
    %1541 = vmatpush2.msra.mxu0 0.0
    %1542 = vmatprep.subr.mxu0 0.0
    %1543 = vmatpush2.msra.mxu0 0.0
    %1544 = vmatprep.subr.mxu0 0.0
    %1545 = vmatpush2.msra.mxu0 0.0
    %1546 = vmatprep.subr.mxu0 0.0
    %1547 = vmatpush2.msra.mxu0 0.0
    %1548 = vmatprep.subr.mxu0 0.0
    %1549 = vmatpush2.msra.mxu0 0.0
    %1550 = vmatprep.subr.mxu0 0.0
    %1551 = vmatpush2.msra.mxu0 0.0
    %1552 = vmatprep.subr.mxu0 0.0
    %1553 = vmatpush2.msra.mxu0 0.0
    %1554 = vmatprep.subr.mxu0 0.0
    %1555 = vmatpush2.msra.mxu0 0.0
    %1556 = vmatprep.subr.mxu0 0.0
    %1557 = vmatpush2.msra.mxu0 0.0
    %1558 = vmatprep.subr.mxu0 0.0
    %1559 = vmatpush2.msra.mxu0 0.0
    %1560 = vmatprep.subr.mxu0 0.0
    %1561 = vmatpush2.msra.mxu0 0.0
    %1562 = vmatprep.mubr.f32.mxu0 0.0
    %1563 = vmatmul.mubr.f32.gmra.mxu0 %v625
    %v1564 = vpop.f32.mrf.mxu0
    %v1565 = vadd.f32 0.0, %v1564
    %v1566 = vpop.f32.mrf.mxu0
    %1567 = vmatprep.mubr.f32.mxu0 0.0
    %1568 = vmatmul.mubr.f32.gmra.mxu0 %v628
    %v1569 = vpop.f32.mrf.mxu0
    %v1570 = vadd.f32 0.0, %v1569
    %v1571 = vpop.f32.mrf.mxu0
    %1572 = vmatprep.mubr.f32.mxu0 0.0
    %1573 = vmatmul.mubr.f32.gmra.mxu0 %v631
    %v1574 = vpop.f32.mrf.mxu0
    %v1575 = vadd.f32 0.0, %v1574
    %v1576 = vpop.f32.mrf.mxu0
    %1577 = vmatprep.mubr.f32.mxu0 0.0
    %1578 = vmatmul.mubr.f32.gmra.mxu0 %v634
    %v1579 = vpop.f32.mrf.mxu0
    %v1580 = vadd.f32 0.0, %v1579
    %v1581 = vpop.f32.mrf.mxu0
    %1582 = vdwg.mxu0
    %v1583 = vmul.f32 %v1494, %v814
    %v1584 = vmul.f32 %v1495, %v814
    %v1585 = vmul.f32 %v1496, %v814
    %v1586 = vmul.f32 %v1497, %v814
    %v1587 = vmul.f32 %v1565, %v824
    %v1588 = vmul.f32 %v1570, %v824
    %v1589 = vmul.f32 %v1575, %v824
    %v1590 = vmul.f32 %v1580, %v824
    %v1591 = vadd.f32 %v1583, %v1587
    %v1592 = vadd.f32 %v1584, %v1588
    %v1593 = vadd.f32 %v1585, %v1589
    %v1594 = vadd.f32 %v1586, %v1590
    %1595 = vadd.xlane.f32.xlu0 %v1591
    %v1596 = vpop.xlane.xlu0 %1595
    %1597 = vadd.xlane.f32.xlu0 %v1592
    %v1598 = vpop.xlane.xlu0 %1597
    %1599 = vadd.xlane.f32.xlu0 %v1593
    %v1600 = vpop.xlane.xlu0 %1599
    %1601 = vadd.xlane.f32.xlu0 %v1594
    %v1602 = vpop.xlane.xlu0 %1601
    %v1603 = vadd.f32 %v1596, %v842
    %v1604 = vadd.f32 %v1598, %v842
    %v1605 = vadd.f32 %v1600, %v842
    %v1606 = vadd.f32 %v1602, %v842
    %v1607 = vsel %vm108, %v1603, -1e+30
    %v1608 = vsel %vm109, %v1604, -1e+30
    %v1609 = vsel %vm110, %v1605, -1e+30
    %v1610 = vsel %vm111, %v1606, -1e+30
    %v1611 = vsel %vm851, %v1607, -inf
    %v1612 = vsel %vm851, %v1608, -inf
    %v1613 = vsel %vm851, %v1609, -inf
    %v1614 = vsel %vm851, %v1610, -inf
    %v1615 = vmax.f32 %v1611, %v1612
    %v1616 = vmax.f32 %v1613, %v1614
    %v1617 = vmax.f32 %v1615, %v1616
    %v1618 = vrot.slane %v1617, 4
    %v1619 = vmax.f32 %v1617, %v1618
    %v1620 = vrot.slane %v1619, 2
    %v1621 = vmax.f32 %v1619, %v1620
    %v1622 = vrot.slane %v1621, 1
    %v1623 = vmax.f32 %v1621, %v1622
    %v1624 = vmul.f32 %v104, %v1623
    %v1625 = vmul.f32 %v105, %v1623
    %v1626 = vmul.f32 %v106, %v1623
    %v1627 = vmul.f32 %v107, %v1623
    %v1628 = vsel %vm851, %v1624, 0.0
    %1629 = vadd.xlane.f32.xlu0 %v1628
    %v1630 = vpop.xlane.xlu0 %1629
    %v1631 = vsel %vm851, %v1625, 0.0
    %1632 = vadd.xlane.f32.xlu0 %v1631
    %v1633 = vpop.xlane.xlu0 %1632
    %v1634 = vsel %vm851, %v1626, 0.0
    %1635 = vadd.xlane.f32.xlu0 %v1634
    %v1636 = vpop.xlane.xlu0 %1635
    %v1637 = vsel %vm851, %v1627, 0.0
    %1638 = vadd.xlane.f32.xlu0 %v1637
    %v1639 = vpop.xlane.xlu0 %1638
    %v1640 = vsub.f32 %v1603, %v1630
    %v1641 = vsub.f32 %v1604, %v1633
    %v1642 = vsub.f32 %v1605, %v1636
    %v1643 = vsub.f32 %v1606, %v1639
    %v1644 = vmul.f32 %v1640, 1.442695
    %v1645 = vpow.pop %v1644
    %v1646 = vmul.f32 %v1641, 1.442695
    %v1647 = vpow.pop %v1646
    %v1648 = vmul.f32 %v1642, 1.442695
    %v1649 = vpow.pop %v1648
    %v1650 = vmul.f32 %v1643, 1.442695
    %v1651 = vpow.pop %v1650
    %1652 = vmatprep.subr.mxu0 0.0
    %1653 = vmatpush1.msra.mxu0 0.0
    %1654 = vmatprep.subr.mxu0 0.0
    %1655 = vmatpush1.msra.mxu0 0.0
    %1656 = vmatprep.subr.mxu0 0.0
    %1657 = vmatpush1.msra.mxu0 0.0
    %1658 = vmatprep.subr.mxu0 0.0
    %1659 = vmatpush1.msra.mxu0 0.0
    %1660 = vmatprep.subr.mxu0 0.0
    %1661 = vmatpush1.msra.mxu0 0.0
    %1662 = vmatprep.subr.mxu0 0.0
    %1663 = vmatpush1.msra.mxu0 0.0
    %1664 = vmatprep.subr.mxu0 0.0
    %1665 = vmatpush1.msra.mxu0 0.0
    %1666 = vmatprep.subr.mxu0 0.0
    %1667 = vmatpush1.msra.mxu0 0.0
    %1668 = vmatprep.subr.mxu0 0.0
    %1669 = vmatpush1.msra.mxu0 0.0
    %1670 = vmatprep.subr.mxu0 0.0
    %1671 = vmatpush1.msra.mxu0 0.0
    %1672 = vmatprep.subr.mxu0 0.0
    %1673 = vmatpush1.msra.mxu0 0.0
    %1674 = vmatprep.subr.mxu0 0.0
    %1675 = vmatpush1.msra.mxu0 0.0
    %1676 = vmatprep.subr.mxu0 0.0
    %1677 = vmatpush1.msra.mxu0 %v1651
    %1678 = vmatprep.subr.mxu0 0.0
    %1679 = vmatpush1.msra.mxu0 %v1649
    %1680 = vmatprep.subr.mxu0 0.0
    %1681 = vmatpush1.msra.mxu0 %v1647
    %1682 = vmatprep.subr.mxu0 0.0
    %1683 = vmatpush1.msra.mxu0 %v1645
    %1684 = vmatprep.subr.mxu0 0.0
    %1685 = vmatpush2.msra.mxu0 0.0
    %1686 = vmatprep.subr.mxu0 0.0
    %1687 = vmatpush2.msra.mxu0 0.0
    %1688 = vmatprep.subr.mxu0 0.0
    %1689 = vmatpush2.msra.mxu0 0.0
    %1690 = vmatprep.subr.mxu0 0.0
    %1691 = vmatpush2.msra.mxu0 0.0
    %1692 = vmatprep.subr.mxu0 0.0
    %1693 = vmatpush2.msra.mxu0 0.0
    %1694 = vmatprep.subr.mxu0 0.0
    %1695 = vmatpush2.msra.mxu0 0.0
    %1696 = vmatprep.subr.mxu0 0.0
    %1697 = vmatpush2.msra.mxu0 0.0
    %1698 = vmatprep.subr.mxu0 0.0
    %1699 = vmatpush2.msra.mxu0 0.0
    %1700 = vmatprep.subr.mxu0 0.0
    %1701 = vmatpush2.msra.mxu0 0.0
    %1702 = vmatprep.subr.mxu0 0.0
    %1703 = vmatpush2.msra.mxu0 0.0
    %1704 = vmatprep.subr.mxu0 0.0
    %1705 = vmatpush2.msra.mxu0 0.0
    %1706 = vmatprep.subr.mxu0 0.0
    %1707 = vmatpush2.msra.mxu0 0.0
    %1708 = vmatprep.subr.mxu0 0.0
    %1709 = vmatpush2.msra.mxu0 0.0
    %1710 = vmatprep.subr.mxu0 0.0
    %1711 = vmatpush2.msra.mxu0 0.0
    %1712 = vmatprep.subr.mxu0 0.0
    %1713 = vmatpush2.msra.mxu0 0.0
    %1714 = vmatprep.subr.mxu0 0.0
    %1715 = vmatpush2.msra.mxu0 0.0
    %1716 = vmatprep.mubr.f32.mxu0 0.0
    %1717 = vmatmul.mubr.f32.gmra.mxu0 %v894
    %v1718 = vpop.f32.mrf.mxu0
    %v1719 = vadd.f32 0.0, %v1718
    %v1720 = vpop.f32.mrf.mxu0
    %1721 = vdwg.mxu0
    %v1723 = vsel %vm978, %v1719, 0
    %1725 = vmatprep.subr.mxu0 0.0
    %1726 = vmatpush1.msra.mxu0 0.0
    %1727 = vmatprep.subr.mxu0 0.0
    %1728 = vmatpush1.msra.mxu0 0.0
    %1729 = vmatprep.subr.mxu0 0.0
    %1730 = vmatpush1.msra.mxu0 0.0
    %1731 = vmatprep.subr.mxu0 0.0
    %1732 = vmatpush1.msra.mxu0 0.0
    %1733 = vmatprep.subr.mxu0 0.0
    %1734 = vmatpush1.msra.mxu0 0.0
    %1735 = vmatprep.subr.mxu0 0.0
    %1736 = vmatpush1.msra.mxu0 0.0
    %1737 = vmatprep.subr.mxu0 0.0
    %1738 = vmatpush1.msra.mxu0 0.0
    %1739 = vmatprep.subr.mxu0 0.0
    %1740 = vmatpush1.msra.mxu0 0.0
    %1741 = vmatprep.subr.mxu0 0.0
    %1742 = vmatpush1.msra.mxu0 0.0
    %1743 = vmatprep.subr.mxu0 0.0
    %1744 = vmatpush1.msra.mxu0 0.0
    %1745 = vmatprep.subr.mxu0 0.0
    %1746 = vmatpush1.msra.mxu0 0.0
    %1747 = vmatprep.subr.mxu0 0.0
    %1748 = vmatpush1.msra.mxu0 0.0
    %1749 = vmatprep.subr.mxu0 0.0
    %1750 = vmatpush1.msra.mxu0 0.0
    %1751 = vmatprep.subr.mxu0 0.0
    %1752 = vmatpush1.msra.mxu0 0.0
    %1753 = vmatprep.subr.mxu0 0.0
    %1754 = vmatpush1.msra.mxu0 0.0
    %1755 = vmatprep.subr.mxu0 0.0
    %1756 = vmatpush1.msra.mxu0 %v1723
    %1757 = vmatprep.subr.mxu0 0.0
    %1758 = vmatpush2.msra.mxu0 0.0
    %1759 = vmatprep.subr.mxu0 0.0
    %1760 = vmatpush2.msra.mxu0 0.0
    %1761 = vmatprep.subr.mxu0 0.0
    %1762 = vmatpush2.msra.mxu0 0.0
    %1763 = vmatprep.subr.mxu0 0.0
    %1764 = vmatpush2.msra.mxu0 0.0
    %1765 = vmatprep.subr.mxu0 0.0
    %1766 = vmatpush2.msra.mxu0 0.0
    %1767 = vmatprep.subr.mxu0 0.0
    %1768 = vmatpush2.msra.mxu0 0.0
    %1769 = vmatprep.subr.mxu0 0.0
    %1770 = vmatpush2.msra.mxu0 0.0
    %1771 = vmatprep.subr.mxu0 0.0
    %1772 = vmatpush2.msra.mxu0 0.0
    %1773 = vmatprep.subr.mxu0 0.0
    %1774 = vmatpush2.msra.mxu0 0.0
    %1775 = vmatprep.subr.mxu0 0.0
    %1776 = vmatpush2.msra.mxu0 0.0
    %1777 = vmatprep.subr.mxu0 0.0
    %1778 = vmatpush2.msra.mxu0 0.0
    %1779 = vmatprep.subr.mxu0 0.0
    %1780 = vmatpush2.msra.mxu0 0.0
    %1781 = vmatprep.subr.mxu0 0.0
    %1782 = vmatpush2.msra.mxu0 0.0
    %1783 = vmatprep.subr.mxu0 0.0
    %1784 = vmatpush2.msra.mxu0 0.0
    %1785 = vmatprep.subr.mxu0 0.0
    %1786 = vmatpush2.msra.mxu0 0.0
    %1787 = vmatprep.subr.mxu0 0.0
    %1788 = vmatpush2.msra.mxu0 0.0
    %1789 = vmatprep.mubr.f32.mxu0 0.0
    %1790 = vmatmul.mubr.f32.gmra.mxu0 %v967
    %v1791 = vpop.f32.mrf.mxu0
    %v1792 = vadd.f32 0.0, %v1791
    %v1793 = vpop.f32.mrf.mxu0
    %1794 = vmatprep.mubr.f32.mxu0 0.0
    %1795 = vmatmul.mubr.f32.gmra.mxu0 %v970
    %v1796 = vpop.f32.mrf.mxu0
    %v1797 = vadd.f32 0.0, %v1796
    %v1798 = vpop.f32.mrf.mxu0
    %1799 = vmatprep.mubr.f32.mxu0 0.0
    %1800 = vmatmul.mubr.f32.gmra.mxu0 %v973
    %v1801 = vpop.f32.mrf.mxu0
    %v1802 = vadd.f32 0.0, %v1801
    %v1803 = vpop.f32.mrf.mxu0
    %1804 = vmatprep.mubr.f32.mxu0 0.0
    %1805 = vmatmul.mubr.f32.gmra.mxu0 %v976
    %v1806 = vpop.f32.mrf.mxu0
    %v1807 = vadd.f32 0.0, %v1806
    %v1808 = vpop.f32.mrf.mxu0
    %1809 = vdwg.mxu0
    %v1810 = vrcp.pop %v1792
    %v1811 = vrcp.pop %v1797
    %v1812 = vrcp.pop %v1802
    %v1813 = vrcp.pop %v1807
    %v1814 = vmul.f32 %v1645, %v1810
    %v1815 = vmul.f32 %v1647, %v1811
    %v1816 = vmul.f32 %v1649, %v1812
    %v1817 = vmul.f32 %v1651, %v1813
    %1819 = vset.pattern.permute.xlu0 0
    %1820 = vperm.xlu0 %1819, %v1814
    %v1821 = vpop.permute.xlu0 %1820
    %1824 = vset.pattern.permute.xlu0 0
    %1825 = vperm.xlu0 %1824, %v1815
    %v1826 = vpop.permute.xlu0 %1825
    %1829 = vset.pattern.permute.xlu0 0
    %1830 = vperm.xlu0 %1829, %v1816
    %v1831 = vpop.permute.xlu0 %1830
    %1834 = vset.pattern.permute.xlu0 0
    %1835 = vperm.xlu0 %1834, %v1817
    %v1836 = vpop.permute.xlu0 %1835
    %v1838 = vmul.f32 %v1494, %v1821
    %v1839 = vmul.f32 %v1495, %v1826
    %v1840 = vmul.f32 %v1496, %v1831
    %v1841 = vmul.f32 %v1497, %v1836
    %1842 = vmatprep.subr.mxu0 0.0
    %1843 = vmatpush1.msra.mxu0 0.0
    %1844 = vmatprep.subr.mxu0 0.0
    %1845 = vmatpush1.msra.mxu0 0.0
    %1846 = vmatprep.subr.mxu0 0.0
    %1847 = vmatpush1.msra.mxu0 0.0
    %1848 = vmatprep.subr.mxu0 0.0
    %1849 = vmatpush1.msra.mxu0 0.0
    %1850 = vmatprep.subr.mxu0 0.0
    %1851 = vmatpush1.msra.mxu0 0.0
    %1852 = vmatprep.subr.mxu0 0.0
    %1853 = vmatpush1.msra.mxu0 0.0
    %1854 = vmatprep.subr.mxu0 0.0
    %1855 = vmatpush1.msra.mxu0 0.0
    %1856 = vmatprep.subr.mxu0 0.0
    %1857 = vmatpush1.msra.mxu0 0.0
    %1858 = vmatprep.subr.mxu0 0.0
    %1859 = vmatpush1.msra.mxu0 0.0
    %1860 = vmatprep.subr.mxu0 0.0
    %1861 = vmatpush1.msra.mxu0 0.0
    %1862 = vmatprep.subr.mxu0 0.0
    %1863 = vmatpush1.msra.mxu0 0.0
    %1864 = vmatprep.subr.mxu0 0.0
    %1865 = vmatpush1.msra.mxu0 0.0
    %1866 = vmatprep.subr.mxu0 0.0
    %1867 = vmatpush1.msra.mxu0 %v1841
    %1868 = vmatprep.subr.mxu0 0.0
    %1869 = vmatpush1.msra.mxu0 %v1840
    %1870 = vmatprep.subr.mxu0 0.0
    %1871 = vmatpush1.msra.mxu0 %v1839
    %1872 = vmatprep.subr.mxu0 0.0
    %1873 = vmatpush1.msra.mxu0 %v1838
    %1874 = vmatprep.subr.mxu0 0.0
    %1875 = vmatpush2.msra.mxu0 0.0
    %1876 = vmatprep.subr.mxu0 0.0
    %1877 = vmatpush2.msra.mxu0 0.0
    %1878 = vmatprep.subr.mxu0 0.0
    %1879 = vmatpush2.msra.mxu0 0.0
    %1880 = vmatprep.subr.mxu0 0.0
    %1881 = vmatpush2.msra.mxu0 0.0
    %1882 = vmatprep.subr.mxu0 0.0
    %1883 = vmatpush2.msra.mxu0 0.0
    %1884 = vmatprep.subr.mxu0 0.0
    %1885 = vmatpush2.msra.mxu0 0.0
    %1886 = vmatprep.subr.mxu0 0.0
    %1887 = vmatpush2.msra.mxu0 0.0
    %1888 = vmatprep.subr.mxu0 0.0
    %1889 = vmatpush2.msra.mxu0 0.0
    %1890 = vmatprep.subr.mxu0 0.0
    %1891 = vmatpush2.msra.mxu0 0.0
    %1892 = vmatprep.subr.mxu0 0.0
    %1893 = vmatpush2.msra.mxu0 0.0
    %1894 = vmatprep.subr.mxu0 0.0
    %1895 = vmatpush2.msra.mxu0 0.0
    %1896 = vmatprep.subr.mxu0 0.0
    %1897 = vmatpush2.msra.mxu0 0.0
    %1898 = vmatprep.subr.mxu0 0.0
    %1899 = vmatpush2.msra.mxu0 0.0
    %1900 = vmatprep.subr.mxu0 0.0
    %1901 = vmatpush2.msra.mxu0 0.0
    %1902 = vmatprep.subr.mxu0 0.0
    %1903 = vmatpush2.msra.mxu0 0.0
    %1904 = vmatprep.subr.mxu0 0.0
    %1905 = vmatpush2.msra.mxu0 0.0
    %1906 = vmatprep.mubr.f32.mxu0 0.0
    %1907 = vmatmul.mubr.f32.gmra.mxu0 %v894
    %v1908 = vpop.f32.mrf.mxu0
    %v1909 = vadd.f32 0.0, %v1908
    %v1910 = vpop.f32.mrf.mxu0
    %1911 = vdwg.mxu0
    %1912 = vmatprep.subr.mxu0 0.0
    %1913 = vmatpush1.msra.mxu0 %v619
    %1914 = vmatprep.subr.mxu0 0.0
    %1915 = vmatpush1.msra.mxu0 %v618
    %1916 = vmatprep.subr.mxu0 0.0
    %1917 = vmatpush1.msra.mxu0 %v617
    %1918 = vmatprep.subr.mxu0 0.0
    %1919 = vmatpush1.msra.mxu0 %v616
    %1920 = vmatprep.subr.mxu0 0.0
    %1921 = vmatpush1.msra.mxu0 %v615
    %1922 = vmatprep.subr.mxu0 0.0
    %1923 = vmatpush1.msra.mxu0 %v614
    %1924 = vmatprep.subr.mxu0 0.0
    %1925 = vmatpush1.msra.mxu0 %v613
    %1926 = vmatprep.subr.mxu0 0.0
    %1927 = vmatpush1.msra.mxu0 %v612
    %1928 = vmatprep.subr.mxu0 0.0
    %1929 = vmatpush1.msra.mxu0 %v611
    %1930 = vmatprep.subr.mxu0 0.0
    %1931 = vmatpush1.msra.mxu0 %v610
    %1932 = vmatprep.subr.mxu0 0.0
    %1933 = vmatpush1.msra.mxu0 %v609
    %1934 = vmatprep.subr.mxu0 0.0
    %1935 = vmatpush1.msra.mxu0 %v608
    %1936 = vmatprep.subr.mxu0 0.0
    %1937 = vmatpush1.msra.mxu0 %v607
    %1938 = vmatprep.subr.mxu0 0.0
    %1939 = vmatpush1.msra.mxu0 %v606
    %1940 = vmatprep.subr.mxu0 0.0
    %1941 = vmatpush1.msra.mxu0 %v605
    %1942 = vmatprep.subr.mxu0 0.0
    %1943 = vmatpush1.msra.mxu0 %v604
    %1944 = vmatprep.subr.mxu0 0.0
    %1945 = vmatpush2.msra.mxu0 0.0
    %1946 = vmatprep.subr.mxu0 0.0
    %1947 = vmatpush2.msra.mxu0 0.0
    %1948 = vmatprep.subr.mxu0 0.0
    %1949 = vmatpush2.msra.mxu0 0.0
    %1950 = vmatprep.subr.mxu0 0.0
    %1951 = vmatpush2.msra.mxu0 0.0
    %1952 = vmatprep.subr.mxu0 0.0
    %1953 = vmatpush2.msra.mxu0 0.0
    %1954 = vmatprep.subr.mxu0 0.0
    %1955 = vmatpush2.msra.mxu0 0.0
    %1956 = vmatprep.subr.mxu0 0.0
    %1957 = vmatpush2.msra.mxu0 0.0
    %1958 = vmatprep.subr.mxu0 0.0
    %1959 = vmatpush2.msra.mxu0 0.0
    %1960 = vmatprep.subr.mxu0 0.0
    %1961 = vmatpush2.msra.mxu0 0.0
    %1962 = vmatprep.subr.mxu0 0.0
    %1963 = vmatpush2.msra.mxu0 0.0
    %1964 = vmatprep.subr.mxu0 0.0
    %1965 = vmatpush2.msra.mxu0 0.0
    %1966 = vmatprep.subr.mxu0 0.0
    %1967 = vmatpush2.msra.mxu0 0.0
    %1968 = vmatprep.subr.mxu0 0.0
    %1969 = vmatpush2.msra.mxu0 0.0
    %1970 = vmatprep.subr.mxu0 0.0
    %1971 = vmatpush2.msra.mxu0 0.0
    %1972 = vmatprep.subr.mxu0 0.0
    %1973 = vmatpush2.msra.mxu0 0.0
    %1974 = vmatprep.subr.mxu0 0.0
    %1975 = vmatpush2.msra.mxu0 0.0
    %1976 = vmatprep.mubr.f32.mxu0 0.0
    %1977 = vmatmul.mubr.f32.gmra.mxu0 %v1909
    %v1978 = vpop.f32.mrf.mxu0
    %v1979 = vadd.f32 %v1173, %v1978
    %v1980 = vpop.f32.mrf.mxu0
    %1981 = vdwg.mxu0
    %v1982 = vtanh.pop %v1979
    %v1983 = vlaneseq
    %v1984 = vshrl.u32 %v1983, 7
    %v1985 = vsub.s32 1, %v1984
    %v1986 = vrot.slane %v621, %v1985
    %v1987 = vmul.f32 %v1982, %v1986
    %v1988 = vsel %vm978, %v1987, 0.0
    %1989 = vadd.xlane.f32.xlu0 %v1988
    %v1990 = vpop.xlane.xlu0 %1989
    %s1991 = sld [smem:[#allocation3 + $0x1]]
    %v1992 = vstv %s1991
    %v1993 = vadd.f32 %v1990, %v1992
    %v1994 = vmax.f32 %v1257, %v1993
    %v1995 = vsub.f32 %v1257, %v1994
    %v1996 = vmul.f32 %v1995, 1.442695
    %v1997 = vpow.pop %v1996
    %v1998 = vsub.f32 %v1993, %v1994
    %v1999 = vmul.f32 %v1998, 1.442695
    %v2000 = vpow.pop %v1999
    %v2001 = vmul.f32 %v1265, %v1997
    %v2002 = vadd.f32 %v2001, %v2000
    %v2004 = vsel %vm978, %v1997, 0
    %2006 = vmatprep.subr.mxu0 0.0
    %2007 = vmatpush1.msra.mxu0 0.0
    %2008 = vmatprep.subr.mxu0 0.0
    %2009 = vmatpush1.msra.mxu0 0.0
    %2010 = vmatprep.subr.mxu0 0.0
    %2011 = vmatpush1.msra.mxu0 0.0
    %2012 = vmatprep.subr.mxu0 0.0
    %2013 = vmatpush1.msra.mxu0 0.0
    %2014 = vmatprep.subr.mxu0 0.0
    %2015 = vmatpush1.msra.mxu0 0.0
    %2016 = vmatprep.subr.mxu0 0.0
    %2017 = vmatpush1.msra.mxu0 0.0
    %2018 = vmatprep.subr.mxu0 0.0
    %2019 = vmatpush1.msra.mxu0 0.0
    %2020 = vmatprep.subr.mxu0 0.0
    %2021 = vmatpush1.msra.mxu0 0.0
    %2022 = vmatprep.subr.mxu0 0.0
    %2023 = vmatpush1.msra.mxu0 0.0
    %2024 = vmatprep.subr.mxu0 0.0
    %2025 = vmatpush1.msra.mxu0 0.0
    %2026 = vmatprep.subr.mxu0 0.0
    %2027 = vmatpush1.msra.mxu0 0.0
    %2028 = vmatprep.subr.mxu0 0.0
    %2029 = vmatpush1.msra.mxu0 0.0
    %2030 = vmatprep.subr.mxu0 0.0
    %2031 = vmatpush1.msra.mxu0 0.0
    %2032 = vmatprep.subr.mxu0 0.0
    %2033 = vmatpush1.msra.mxu0 0.0
    %2034 = vmatprep.subr.mxu0 0.0
    %2035 = vmatpush1.msra.mxu0 0.0
    %2036 = vmatprep.subr.mxu0 0.0
    %2037 = vmatpush1.msra.mxu0 %v2004
    %2038 = vmatprep.subr.mxu0 0.0
    %2039 = vmatpush2.msra.mxu0 0.0
    %2040 = vmatprep.subr.mxu0 0.0
    %2041 = vmatpush2.msra.mxu0 0.0
    %2042 = vmatprep.subr.mxu0 0.0
    %2043 = vmatpush2.msra.mxu0 0.0
    %2044 = vmatprep.subr.mxu0 0.0
    %2045 = vmatpush2.msra.mxu0 0.0
    %2046 = vmatprep.subr.mxu0 0.0
    %2047 = vmatpush2.msra.mxu0 0.0
    %2048 = vmatprep.subr.mxu0 0.0
    %2049 = vmatpush2.msra.mxu0 0.0
    %2050 = vmatprep.subr.mxu0 0.0
    %2051 = vmatpush2.msra.mxu0 0.0
    %2052 = vmatprep.subr.mxu0 0.0
    %2053 = vmatpush2.msra.mxu0 0.0
    %2054 = vmatprep.subr.mxu0 0.0
    %2055 = vmatpush2.msra.mxu0 0.0
    %2056 = vmatprep.subr.mxu0 0.0
    %2057 = vmatpush2.msra.mxu0 0.0
    %2058 = vmatprep.subr.mxu0 0.0
    %2059 = vmatpush2.msra.mxu0 0.0
    %2060 = vmatprep.subr.mxu0 0.0
    %2061 = vmatpush2.msra.mxu0 0.0
    %2062 = vmatprep.subr.mxu0 0.0
    %2063 = vmatpush2.msra.mxu0 0.0
    %2064 = vmatprep.subr.mxu0 0.0
    %2065 = vmatpush2.msra.mxu0 0.0
    %2066 = vmatprep.subr.mxu0 0.0
    %2067 = vmatpush2.msra.mxu0 0.0
    %2068 = vmatprep.subr.mxu0 0.0
    %2069 = vmatpush2.msra.mxu0 0.0
    %2070 = vmatprep.mubr.f32.mxu0 0.0
    %2071 = vmatmul.mubr.f32.gmra.mxu0 %v967
    %v2072 = vpop.f32.mrf.mxu0
    %v2073 = vadd.f32 0.0, %v2072
    %v2074 = vpop.f32.mrf.mxu0
    %2075 = vmatprep.mubr.f32.mxu0 0.0
    %2076 = vmatmul.mubr.f32.gmra.mxu0 %v970
    %v2077 = vpop.f32.mrf.mxu0
    %v2078 = vadd.f32 0.0, %v2077
    %v2079 = vpop.f32.mrf.mxu0
    %2080 = vmatprep.mubr.f32.mxu0 0.0
    %2081 = vmatmul.mubr.f32.gmra.mxu0 %v973
    %v2082 = vpop.f32.mrf.mxu0
    %v2083 = vadd.f32 0.0, %v2082
    %v2084 = vpop.f32.mrf.mxu0
    %2085 = vmatprep.mubr.f32.mxu0 0.0
    %2086 = vmatmul.mubr.f32.gmra.mxu0 %v976
    %v2087 = vpop.f32.mrf.mxu0
    %v2088 = vadd.f32 0.0, %v2087
    %v2089 = vpop.f32.mrf.mxu0
    %2090 = vdwg.mxu0
    %v2092 = vsel %vm978, %v2000, 0
    %2094 = vmatprep.subr.mxu0 0.0
    %2095 = vmatpush1.msra.mxu0 0.0
    %2096 = vmatprep.subr.mxu0 0.0
    %2097 = vmatpush1.msra.mxu0 0.0
    %2098 = vmatprep.subr.mxu0 0.0
    %2099 = vmatpush1.msra.mxu0 0.0
    %2100 = vmatprep.subr.mxu0 0.0
    %2101 = vmatpush1.msra.mxu0 0.0
    %2102 = vmatprep.subr.mxu0 0.0
    %2103 = vmatpush1.msra.mxu0 0.0
    %2104 = vmatprep.subr.mxu0 0.0
    %2105 = vmatpush1.msra.mxu0 0.0
    %2106 = vmatprep.subr.mxu0 0.0
    %2107 = vmatpush1.msra.mxu0 0.0
    %2108 = vmatprep.subr.mxu0 0.0
    %2109 = vmatpush1.msra.mxu0 0.0
    %2110 = vmatprep.subr.mxu0 0.0
    %2111 = vmatpush1.msra.mxu0 0.0
    %2112 = vmatprep.subr.mxu0 0.0
    %2113 = vmatpush1.msra.mxu0 0.0
    %2114 = vmatprep.subr.mxu0 0.0
    %2115 = vmatpush1.msra.mxu0 0.0
    %2116 = vmatprep.subr.mxu0 0.0
    %2117 = vmatpush1.msra.mxu0 0.0
    %2118 = vmatprep.subr.mxu0 0.0
    %2119 = vmatpush1.msra.mxu0 0.0
    %2120 = vmatprep.subr.mxu0 0.0
    %2121 = vmatpush1.msra.mxu0 0.0
    %2122 = vmatprep.subr.mxu0 0.0
    %2123 = vmatpush1.msra.mxu0 0.0
    %2124 = vmatprep.subr.mxu0 0.0
    %2125 = vmatpush1.msra.mxu0 %v2092
    %2126 = vmatprep.subr.mxu0 0.0
    %2127 = vmatpush2.msra.mxu0 0.0
    %2128 = vmatprep.subr.mxu0 0.0
    %2129 = vmatpush2.msra.mxu0 0.0
    %2130 = vmatprep.subr.mxu0 0.0
    %2131 = vmatpush2.msra.mxu0 0.0
    %2132 = vmatprep.subr.mxu0 0.0
    %2133 = vmatpush2.msra.mxu0 0.0
    %2134 = vmatprep.subr.mxu0 0.0
    %2135 = vmatpush2.msra.mxu0 0.0
    %2136 = vmatprep.subr.mxu0 0.0
    %2137 = vmatpush2.msra.mxu0 0.0
    %2138 = vmatprep.subr.mxu0 0.0
    %2139 = vmatpush2.msra.mxu0 0.0
    %2140 = vmatprep.subr.mxu0 0.0
    %2141 = vmatpush2.msra.mxu0 0.0
    %2142 = vmatprep.subr.mxu0 0.0
    %2143 = vmatpush2.msra.mxu0 0.0
    %2144 = vmatprep.subr.mxu0 0.0
    %2145 = vmatpush2.msra.mxu0 0.0
    %2146 = vmatprep.subr.mxu0 0.0
    %2147 = vmatpush2.msra.mxu0 0.0
    %2148 = vmatprep.subr.mxu0 0.0
    %2149 = vmatpush2.msra.mxu0 0.0
    %2150 = vmatprep.subr.mxu0 0.0
    %2151 = vmatpush2.msra.mxu0 0.0
    %2152 = vmatprep.subr.mxu0 0.0
    %2153 = vmatpush2.msra.mxu0 0.0
    %2154 = vmatprep.subr.mxu0 0.0
    %2155 = vmatpush2.msra.mxu0 0.0
    %2156 = vmatprep.subr.mxu0 0.0
    %2157 = vmatpush2.msra.mxu0 0.0
    %2158 = vmatprep.mubr.f32.mxu0 0.0
    %2159 = vmatmul.mubr.f32.gmra.mxu0 %v967
    %v2160 = vpop.f32.mrf.mxu0
    %v2161 = vadd.f32 0.0, %v2160
    %v2162 = vpop.f32.mrf.mxu0
    %2163 = vmatprep.mubr.f32.mxu0 0.0
    %2164 = vmatmul.mubr.f32.gmra.mxu0 %v970
    %v2165 = vpop.f32.mrf.mxu0
    %v2166 = vadd.f32 0.0, %v2165
    %v2167 = vpop.f32.mrf.mxu0
    %2168 = vmatprep.mubr.f32.mxu0 0.0
    %2169 = vmatmul.mubr.f32.gmra.mxu0 %v973
    %v2170 = vpop.f32.mrf.mxu0
    %v2171 = vadd.f32 0.0, %v2170
    %v2172 = vpop.f32.mrf.mxu0
    %2173 = vmatprep.mubr.f32.mxu0 0.0
    %2174 = vmatmul.mubr.f32.gmra.mxu0 %v976
    %v2175 = vpop.f32.mrf.mxu0
    %v2176 = vadd.f32 0.0, %v2175
    %v2177 = vpop.f32.mrf.mxu0
    %2178 = vdwg.mxu0
    %2180 = vset.pattern.permute.xlu0 0
    %2181 = vperm.xlu0 %2180, %v2073
    %v2182 = vpop.permute.xlu0 %2181
    %2185 = vset.pattern.permute.xlu0 0
    %2186 = vperm.xlu0 %2185, %v2078
    %v2187 = vpop.permute.xlu0 %2186
    %2190 = vset.pattern.permute.xlu0 0
    %2191 = vperm.xlu0 %2190, %v2083
    %v2192 = vpop.permute.xlu0 %2191
    %2195 = vset.pattern.permute.xlu0 0
    %2196 = vperm.xlu0 %2195, %v2088
    %v2197 = vpop.permute.xlu0 %2196
    %v2199 = vmul.f32 %v1490, %v2182
    %v2200 = vmul.f32 %v1491, %v2187
    %v2201 = vmul.f32 %v1492, %v2192
    %v2202 = vmul.f32 %v1493, %v2197
    %2204 = vset.pattern.permute.xlu0 0
    %2205 = vperm.xlu0 %2204, %v2161
    %v2206 = vpop.permute.xlu0 %2205
    %2209 = vset.pattern.permute.xlu0 0
    %2210 = vperm.xlu0 %2209, %v2166
    %v2211 = vpop.permute.xlu0 %2210
    %2214 = vset.pattern.permute.xlu0 0
    %2215 = vperm.xlu0 %2214, %v2171
    %v2216 = vpop.permute.xlu0 %2215
    %2219 = vset.pattern.permute.xlu0 0
    %2220 = vperm.xlu0 %2219, %v2176
    %v2221 = vpop.permute.xlu0 %2220
    %v2223 = vmul.f32 %v1494, %v2206
    %v2224 = vmul.f32 %v1495, %v2211
    %v2225 = vmul.f32 %v1496, %v2216
    %v2226 = vmul.f32 %v1497, %v2221
    %v2227 = vadd.f32 %v2199, %v2223
    %v2228 = vadd.f32 %v2200, %v2224
    %v2229 = vadd.f32 %v2201, %v2225
    %v2230 = vadd.f32 %v2202, %v2226
    %v2231 = vadd.f32 %v598, %v1565
    %v2232 = vadd.f32 %v599, %v1570
    %v2233 = vadd.f32 %v600, %v1575
    %v2234 = vadd.f32 %v601, %v1580
    %2235 = vmatprep.subr.mxu0 0.0
    %2236 = vmatpush1.msra.mxu0 0.0
    %2237 = vmatprep.subr.mxu0 0.0
    %2238 = vmatpush1.msra.mxu0 0.0
    %2239 = vmatprep.subr.mxu0 0.0
    %2240 = vmatpush1.msra.mxu0 0.0
    %2241 = vmatprep.subr.mxu0 0.0
    %2242 = vmatpush1.msra.mxu0 0.0
    %2243 = vmatprep.subr.mxu0 0.0
    %2244 = vmatpush1.msra.mxu0 0.0
    %2245 = vmatprep.subr.mxu0 0.0
    %2246 = vmatpush1.msra.mxu0 0.0
    %2247 = vmatprep.subr.mxu0 0.0
    %2248 = vmatpush1.msra.mxu0 0.0
    %2249 = vmatprep.subr.mxu0 0.0
    %2250 = vmatpush1.msra.mxu0 0.0
    %2251 = vmatprep.subr.mxu0 0.0
    %2252 = vmatpush1.msra.mxu0 0.0
    %2253 = vmatprep.subr.mxu0 0.0
    %2254 = vmatpush1.msra.mxu0 0.0
    %2255 = vmatprep.subr.mxu0 0.0
    %2256 = vmatpush1.msra.mxu0 0.0
    %2257 = vmatprep.subr.mxu0 0.0
    %2258 = vmatpush1.msra.mxu0 0.0
    %2259 = vmatprep.subr.mxu0 0.0
    %2260 = vmatpush1.msra.mxu0 %v2234
    %2261 = vmatprep.subr.mxu0 0.0
    %2262 = vmatpush1.msra.mxu0 %v2233
    %2263 = vmatprep.subr.mxu0 0.0
    %2264 = vmatpush1.msra.mxu0 %v2232
    %2265 = vmatprep.subr.mxu0 0.0
    %2266 = vmatpush1.msra.mxu0 %v2231
    %2267 = vmatprep.subr.mxu0 0.0
    %2268 = vmatpush2.msra.mxu0 0.0
    %2269 = vmatprep.subr.mxu0 0.0
    %2270 = vmatpush2.msra.mxu0 0.0
    %2271 = vmatprep.subr.mxu0 0.0
    %2272 = vmatpush2.msra.mxu0 0.0
    %2273 = vmatprep.subr.mxu0 0.0
    %2274 = vmatpush2.msra.mxu0 0.0
    %2275 = vmatprep.subr.mxu0 0.0
    %2276 = vmatpush2.msra.mxu0 0.0
    %2277 = vmatprep.subr.mxu0 0.0
    %2278 = vmatpush2.msra.mxu0 0.0
    %2279 = vmatprep.subr.mxu0 0.0
    %2280 = vmatpush2.msra.mxu0 0.0
    %2281 = vmatprep.subr.mxu0 0.0
    %2282 = vmatpush2.msra.mxu0 0.0
    %2283 = vmatprep.subr.mxu0 0.0
    %2284 = vmatpush2.msra.mxu0 0.0
    %2285 = vmatprep.subr.mxu0 0.0
    %2286 = vmatpush2.msra.mxu0 0.0
    %2287 = vmatprep.subr.mxu0 0.0
    %2288 = vmatpush2.msra.mxu0 0.0
    %2289 = vmatprep.subr.mxu0 0.0
    %2290 = vmatpush2.msra.mxu0 0.0
    %2291 = vmatprep.subr.mxu0 0.0
    %2292 = vmatpush2.msra.mxu0 0.0
    %2293 = vmatprep.subr.mxu0 0.0
    %2294 = vmatpush2.msra.mxu0 0.0
    %2295 = vmatprep.subr.mxu0 0.0
    %2296 = vmatpush2.msra.mxu0 0.0
    %2297 = vmatprep.subr.mxu0 0.0
    %2298 = vmatpush2.msra.mxu0 0.0
    %2299 = vmatprep.mubr.f32.mxu0 0.0
    %2300 = vmatmul.mubr.f32.gmra.mxu0 %v625
    %v2301 = vpop.f32.mrf.mxu0
    %v2302 = vadd.f32 0.0, %v2301
    %v2303 = vpop.f32.mrf.mxu0
    %2304 = vmatprep.mubr.f32.mxu0 0.0
    %2305 = vmatmul.mubr.f32.gmra.mxu0 %v628
    %v2306 = vpop.f32.mrf.mxu0
    %v2307 = vadd.f32 0.0, %v2306
    %v2308 = vpop.f32.mrf.mxu0
    %2309 = vmatprep.mubr.f32.mxu0 0.0
    %2310 = vmatmul.mubr.f32.gmra.mxu0 %v631
    %v2311 = vpop.f32.mrf.mxu0
    %v2312 = vadd.f32 0.0, %v2311
    %v2313 = vpop.f32.mrf.mxu0
    %2314 = vmatprep.mubr.f32.mxu0 0.0
    %2315 = vmatmul.mubr.f32.gmra.mxu0 %v634
    %v2316 = vpop.f32.mrf.mxu0
    %v2317 = vadd.f32 0.0, %v2316
    %v2318 = vpop.f32.mrf.mxu0
    %2319 = vdwg.mxu0
    %v2320 = vmul.f32 %v2231, %v814
    %v2321 = vmul.f32 %v2232, %v814
    %v2322 = vmul.f32 %v2233, %v814
    %v2323 = vmul.f32 %v2234, %v814
    %v2324 = vmul.f32 %v2302, %v824
    %v2325 = vmul.f32 %v2307, %v824
    %v2326 = vmul.f32 %v2312, %v824
    %v2327 = vmul.f32 %v2317, %v824
    %v2328 = vadd.f32 %v2320, %v2324
    %v2329 = vadd.f32 %v2321, %v2325
    %v2330 = vadd.f32 %v2322, %v2326
    %v2331 = vadd.f32 %v2323, %v2327
    %2332 = vadd.xlane.f32.xlu0 %v2328
    %v2333 = vpop.xlane.xlu0 %2332
    %2334 = vadd.xlane.f32.xlu0 %v2329
    %v2335 = vpop.xlane.xlu0 %2334
    %2336 = vadd.xlane.f32.xlu0 %v2330
    %v2337 = vpop.xlane.xlu0 %2336
    %2338 = vadd.xlane.f32.xlu0 %v2331
    %v2339 = vpop.xlane.xlu0 %2338
    %v2340 = vadd.f32 %v2333, %v842
    %v2341 = vadd.f32 %v2335, %v842
    %v2342 = vadd.f32 %v2337, %v842
    %v2343 = vadd.f32 %v2339, %v842
    %v2344 = vsel %vm108, %v2340, -1e+30
    %v2345 = vsel %vm109, %v2341, -1e+30
    %v2346 = vsel %vm110, %v2342, -1e+30
    %v2347 = vsel %vm111, %v2343, -1e+30
    %v2348 = vsel %vm851, %v2344, -inf
    %v2349 = vsel %vm851, %v2345, -inf
    %v2350 = vsel %vm851, %v2346, -inf
    %v2351 = vsel %vm851, %v2347, -inf
    %v2352 = vmax.f32 %v2348, %v2349
    %v2353 = vmax.f32 %v2350, %v2351
    %v2354 = vmax.f32 %v2352, %v2353
    %v2355 = vrot.slane %v2354, 4
    %v2356 = vmax.f32 %v2354, %v2355
    %v2357 = vrot.slane %v2356, 2
    %v2358 = vmax.f32 %v2356, %v2357
    %v2359 = vrot.slane %v2358, 1
    %v2360 = vmax.f32 %v2358, %v2359
    %v2361 = vmul.f32 %v104, %v2360
    %v2362 = vmul.f32 %v105, %v2360
    %v2363 = vmul.f32 %v106, %v2360
    %v2364 = vmul.f32 %v107, %v2360
    %v2365 = vsel %vm851, %v2361, 0.0
    %2366 = vadd.xlane.f32.xlu0 %v2365
    %v2367 = vpop.xlane.xlu0 %2366
    %v2368 = vsel %vm851, %v2362, 0.0
    %2369 = vadd.xlane.f32.xlu0 %v2368
    %v2370 = vpop.xlane.xlu0 %2369
    %v2371 = vsel %vm851, %v2363, 0.0
    %2372 = vadd.xlane.f32.xlu0 %v2371
    %v2373 = vpop.xlane.xlu0 %2372
    %v2374 = vsel %vm851, %v2364, 0.0
    %2375 = vadd.xlane.f32.xlu0 %v2374
    %v2376 = vpop.xlane.xlu0 %2375
    %v2377 = vsub.f32 %v2340, %v2367
    %v2378 = vsub.f32 %v2341, %v2370
    %v2379 = vsub.f32 %v2342, %v2373
    %v2380 = vsub.f32 %v2343, %v2376
    %v2381 = vmul.f32 %v2377, 1.442695
    %v2382 = vpow.pop %v2381
    %v2383 = vmul.f32 %v2378, 1.442695
    %v2384 = vpow.pop %v2383
    %v2385 = vmul.f32 %v2379, 1.442695
    %v2386 = vpow.pop %v2385
    %v2387 = vmul.f32 %v2380, 1.442695
    %v2388 = vpow.pop %v2387
    %2389 = vmatprep.subr.mxu0 0.0
    %2390 = vmatpush1.msra.mxu0 0.0
    %2391 = vmatprep.subr.mxu0 0.0
    %2392 = vmatpush1.msra.mxu0 0.0
    %2393 = vmatprep.subr.mxu0 0.0
    %2394 = vmatpush1.msra.mxu0 0.0
    %2395 = vmatprep.subr.mxu0 0.0
    %2396 = vmatpush1.msra.mxu0 0.0
    %2397 = vmatprep.subr.mxu0 0.0
    %2398 = vmatpush1.msra.mxu0 0.0
    %2399 = vmatprep.subr.mxu0 0.0
    %2400 = vmatpush1.msra.mxu0 0.0
    %2401 = vmatprep.subr.mxu0 0.0
    %2402 = vmatpush1.msra.mxu0 0.0
    %2403 = vmatprep.subr.mxu0 0.0
    %2404 = vmatpush1.msra.mxu0 0.0
    %2405 = vmatprep.subr.mxu0 0.0
    %2406 = vmatpush1.msra.mxu0 0.0
    %2407 = vmatprep.subr.mxu0 0.0
    %2408 = vmatpush1.msra.mxu0 0.0
    %2409 = vmatprep.subr.mxu0 0.0
    %2410 = vmatpush1.msra.mxu0 0.0
    %2411 = vmatprep.subr.mxu0 0.0
    %2412 = vmatpush1.msra.mxu0 0.0
    %2413 = vmatprep.subr.mxu0 0.0
    %2414 = vmatpush1.msra.mxu0 %v2388
    %2415 = vmatprep.subr.mxu0 0.0
    %2416 = vmatpush1.msra.mxu0 %v2386
    %2417 = vmatprep.subr.mxu0 0.0
    %2418 = vmatpush1.msra.mxu0 %v2384
    %2419 = vmatprep.subr.mxu0 0.0
    %2420 = vmatpush1.msra.mxu0 %v2382
    %2421 = vmatprep.subr.mxu0 0.0
    %2422 = vmatpush2.msra.mxu0 0.0
    %2423 = vmatprep.subr.mxu0 0.0
    %2424 = vmatpush2.msra.mxu0 0.0
    %2425 = vmatprep.subr.mxu0 0.0
    %2426 = vmatpush2.msra.mxu0 0.0
    %2427 = vmatprep.subr.mxu0 0.0
    %2428 = vmatpush2.msra.mxu0 0.0
    %2429 = vmatprep.subr.mxu0 0.0
    %2430 = vmatpush2.msra.mxu0 0.0
    %2431 = vmatprep.subr.mxu0 0.0
    %2432 = vmatpush2.msra.mxu0 0.0
    %2433 = vmatprep.subr.mxu0 0.0
    %2434 = vmatpush2.msra.mxu0 0.0
    %2435 = vmatprep.subr.mxu0 0.0
    %2436 = vmatpush2.msra.mxu0 0.0
    %2437 = vmatprep.subr.mxu0 0.0
    %2438 = vmatpush2.msra.mxu0 0.0
    %2439 = vmatprep.subr.mxu0 0.0
    %2440 = vmatpush2.msra.mxu0 0.0
    %2441 = vmatprep.subr.mxu0 0.0
    %2442 = vmatpush2.msra.mxu0 0.0
    %2443 = vmatprep.subr.mxu0 0.0
    %2444 = vmatpush2.msra.mxu0 0.0
    %2445 = vmatprep.subr.mxu0 0.0
    %2446 = vmatpush2.msra.mxu0 0.0
    %2447 = vmatprep.subr.mxu0 0.0
    %2448 = vmatpush2.msra.mxu0 0.0
    %2449 = vmatprep.subr.mxu0 0.0
    %2450 = vmatpush2.msra.mxu0 0.0
    %2451 = vmatprep.subr.mxu0 0.0
    %2452 = vmatpush2.msra.mxu0 0.0
    %2453 = vmatprep.mubr.f32.mxu0 0.0
    %2454 = vmatmul.mubr.f32.gmra.mxu0 %v894
    %v2455 = vpop.f32.mrf.mxu0
    %v2456 = vadd.f32 0.0, %v2455
    %v2457 = vpop.f32.mrf.mxu0
    %2458 = vdwg.mxu0
    %v2460 = vsel %vm978, %v2456, 0
    %2462 = vmatprep.subr.mxu0 0.0
    %2463 = vmatpush1.msra.mxu0 0.0
    %2464 = vmatprep.subr.mxu0 0.0
    %2465 = vmatpush1.msra.mxu0 0.0
    %2466 = vmatprep.subr.mxu0 0.0
    %2467 = vmatpush1.msra.mxu0 0.0
    %2468 = vmatprep.subr.mxu0 0.0
    %2469 = vmatpush1.msra.mxu0 0.0
    %2470 = vmatprep.subr.mxu0 0.0
    %2471 = vmatpush1.msra.mxu0 0.0
    %2472 = vmatprep.subr.mxu0 0.0
    %2473 = vmatpush1.msra.mxu0 0.0
    %2474 = vmatprep.subr.mxu0 0.0
    %2475 = vmatpush1.msra.mxu0 0.0
    %2476 = vmatprep.subr.mxu0 0.0
    %2477 = vmatpush1.msra.mxu0 0.0
    %2478 = vmatprep.subr.mxu0 0.0
    %2479 = vmatpush1.msra.mxu0 0.0
    %2480 = vmatprep.subr.mxu0 0.0
    %2481 = vmatpush1.msra.mxu0 0.0
    %2482 = vmatprep.subr.mxu0 0.0
    %2483 = vmatpush1.msra.mxu0 0.0
    %2484 = vmatprep.subr.mxu0 0.0
    %2485 = vmatpush1.msra.mxu0 0.0
    %2486 = vmatprep.subr.mxu0 0.0
    %2487 = vmatpush1.msra.mxu0 0.0
    %2488 = vmatprep.subr.mxu0 0.0
    %2489 = vmatpush1.msra.mxu0 0.0
    %2490 = vmatprep.subr.mxu0 0.0
    %2491 = vmatpush1.msra.mxu0 0.0
    %2492 = vmatprep.subr.mxu0 0.0
    %2493 = vmatpush1.msra.mxu0 %v2460
    %2494 = vmatprep.subr.mxu0 0.0
    %2495 = vmatpush2.msra.mxu0 0.0
    %2496 = vmatprep.subr.mxu0 0.0
    %2497 = vmatpush2.msra.mxu0 0.0
    %2498 = vmatprep.subr.mxu0 0.0
    %2499 = vmatpush2.msra.mxu0 0.0
    %2500 = vmatprep.subr.mxu0 0.0
    %2501 = vmatpush2.msra.mxu0 0.0
    %2502 = vmatprep.subr.mxu0 0.0
    %2503 = vmatpush2.msra.mxu0 0.0
    %2504 = vmatprep.subr.mxu0 0.0
    %2505 = vmatpush2.msra.mxu0 0.0
    %2506 = vmatprep.subr.mxu0 0.0
    %2507 = vmatpush2.msra.mxu0 0.0
    %2508 = vmatprep.subr.mxu0 0.0
    %2509 = vmatpush2.msra.mxu0 0.0
    %2510 = vmatprep.subr.mxu0 0.0
    %2511 = vmatpush2.msra.mxu0 0.0
    %2512 = vmatprep.subr.mxu0 0.0
    %2513 = vmatpush2.msra.mxu0 0.0
    %2514 = vmatprep.subr.mxu0 0.0
    %2515 = vmatpush2.msra.mxu0 0.0
    %2516 = vmatprep.subr.mxu0 0.0
    %2517 = vmatpush2.msra.mxu0 0.0
    %2518 = vmatprep.subr.mxu0 0.0
    %2519 = vmatpush2.msra.mxu0 0.0
    %2520 = vmatprep.subr.mxu0 0.0
    %2521 = vmatpush2.msra.mxu0 0.0
    %2522 = vmatprep.subr.mxu0 0.0
    %2523 = vmatpush2.msra.mxu0 0.0
    %2524 = vmatprep.subr.mxu0 0.0
    %2525 = vmatpush2.msra.mxu0 0.0
    %2526 = vmatprep.mubr.f32.mxu0 0.0
    %2527 = vmatmul.mubr.f32.gmra.mxu0 %v967
    %v2528 = vpop.f32.mrf.mxu0
    %v2529 = vadd.f32 0.0, %v2528
    %v2530 = vpop.f32.mrf.mxu0
    %2531 = vmatprep.mubr.f32.mxu0 0.0
    %2532 = vmatmul.mubr.f32.gmra.mxu0 %v970
    %v2533 = vpop.f32.mrf.mxu0
    %v2534 = vadd.f32 0.0, %v2533
    %v2535 = vpop.f32.mrf.mxu0
    %2536 = vmatprep.mubr.f32.mxu0 0.0
    %2537 = vmatmul.mubr.f32.gmra.mxu0 %v973
    %v2538 = vpop.f32.mrf.mxu0
    %v2539 = vadd.f32 0.0, %v2538
    %v2540 = vpop.f32.mrf.mxu0
    %2541 = vmatprep.mubr.f32.mxu0 0.0
    %2542 = vmatmul.mubr.f32.gmra.mxu0 %v976
    %v2543 = vpop.f32.mrf.mxu0
    %v2544 = vadd.f32 0.0, %v2543
    %v2545 = vpop.f32.mrf.mxu0
    %2546 = vdwg.mxu0
    %v2547 = vrcp.pop %v2529
    %v2548 = vrcp.pop %v2534
    %v2549 = vrcp.pop %v2539
    %v2550 = vrcp.pop %v2544
    %v2551 = vmul.f32 %v2382, %v2547
    %v2552 = vmul.f32 %v2384, %v2548
    %v2553 = vmul.f32 %v2386, %v2549
    %v2554 = vmul.f32 %v2388, %v2550
    %2556 = vset.pattern.permute.xlu0 0
    %2557 = vperm.xlu0 %2556, %v2551
    %v2558 = vpop.permute.xlu0 %2557
    %2561 = vset.pattern.permute.xlu0 0
    %2562 = vperm.xlu0 %2561, %v2552
    %v2563 = vpop.permute.xlu0 %2562
    %2566 = vset.pattern.permute.xlu0 0
    %2567 = vperm.xlu0 %2566, %v2553
    %v2568 = vpop.permute.xlu0 %2567
    %2571 = vset.pattern.permute.xlu0 0
    %2572 = vperm.xlu0 %2571, %v2554
    %v2573 = vpop.permute.xlu0 %2572
    %v2575 = vmul.f32 %v2231, %v2558
    %v2576 = vmul.f32 %v2232, %v2563
    %v2577 = vmul.f32 %v2233, %v2568
    %v2578 = vmul.f32 %v2234, %v2573
    %2579 = vmatprep.subr.mxu0 0.0
    %2580 = vmatpush1.msra.mxu0 0.0
    %2581 = vmatprep.subr.mxu0 0.0
    %2582 = vmatpush1.msra.mxu0 0.0
    %2583 = vmatprep.subr.mxu0 0.0
    %2584 = vmatpush1.msra.mxu0 0.0
    %2585 = vmatprep.subr.mxu0 0.0
    %2586 = vmatpush1.msra.mxu0 0.0
    %2587 = vmatprep.subr.mxu0 0.0
    %2588 = vmatpush1.msra.mxu0 0.0
    %2589 = vmatprep.subr.mxu0 0.0
    %2590 = vmatpush1.msra.mxu0 0.0
    %2591 = vmatprep.subr.mxu0 0.0
    %2592 = vmatpush1.msra.mxu0 0.0
    %2593 = vmatprep.subr.mxu0 0.0
    %2594 = vmatpush1.msra.mxu0 0.0
    %2595 = vmatprep.subr.mxu0 0.0
    %2596 = vmatpush1.msra.mxu0 0.0
    %2597 = vmatprep.subr.mxu0 0.0
    %2598 = vmatpush1.msra.mxu0 0.0
    %2599 = vmatprep.subr.mxu0 0.0
    %2600 = vmatpush1.msra.mxu0 0.0
    %2601 = vmatprep.subr.mxu0 0.0
    %2602 = vmatpush1.msra.mxu0 0.0
    %2603 = vmatprep.subr.mxu0 0.0
    %2604 = vmatpush1.msra.mxu0 %v2578
    %2605 = vmatprep.subr.mxu0 0.0
    %2606 = vmatpush1.msra.mxu0 %v2577
    %2607 = vmatprep.subr.mxu0 0.0
    %2608 = vmatpush1.msra.mxu0 %v2576
    %2609 = vmatprep.subr.mxu0 0.0
    %2610 = vmatpush1.msra.mxu0 %v2575
    %2611 = vmatprep.subr.mxu0 0.0
    %2612 = vmatpush2.msra.mxu0 0.0
    %2613 = vmatprep.subr.mxu0 0.0
    %2614 = vmatpush2.msra.mxu0 0.0
    %2615 = vmatprep.subr.mxu0 0.0
    %2616 = vmatpush2.msra.mxu0 0.0
    %2617 = vmatprep.subr.mxu0 0.0
    %2618 = vmatpush2.msra.mxu0 0.0
    %2619 = vmatprep.subr.mxu0 0.0
    %2620 = vmatpush2.msra.mxu0 0.0
    %2621 = vmatprep.subr.mxu0 0.0
    %2622 = vmatpush2.msra.mxu0 0.0
    %2623 = vmatprep.subr.mxu0 0.0
    %2624 = vmatpush2.msra.mxu0 0.0
    %2625 = vmatprep.subr.mxu0 0.0
    %2626 = vmatpush2.msra.mxu0 0.0
    %2627 = vmatprep.subr.mxu0 0.0
    %2628 = vmatpush2.msra.mxu0 0.0
    %2629 = vmatprep.subr.mxu0 0.0
    %2630 = vmatpush2.msra.mxu0 0.0
    %2631 = vmatprep.subr.mxu0 0.0
    %2632 = vmatpush2.msra.mxu0 0.0
    %2633 = vmatprep.subr.mxu0 0.0
    %2634 = vmatpush2.msra.mxu0 0.0
    %2635 = vmatprep.subr.mxu0 0.0
    %2636 = vmatpush2.msra.mxu0 0.0
    %2637 = vmatprep.subr.mxu0 0.0
    %2638 = vmatpush2.msra.mxu0 0.0
    %2639 = vmatprep.subr.mxu0 0.0
    %2640 = vmatpush2.msra.mxu0 0.0
    %2641 = vmatprep.subr.mxu0 0.0
    %2642 = vmatpush2.msra.mxu0 0.0
    %2643 = vmatprep.mubr.f32.mxu0 0.0
    %2644 = vmatmul.mubr.f32.gmra.mxu0 %v894
    %v2645 = vpop.f32.mrf.mxu0
    %v2646 = vadd.f32 0.0, %v2645
    %v2647 = vpop.f32.mrf.mxu0
    %2648 = vdwg.mxu0
    %2649 = vmatprep.subr.mxu0 0.0
    %2650 = vmatpush1.msra.mxu0 %v619
    %2651 = vmatprep.subr.mxu0 0.0
    %2652 = vmatpush1.msra.mxu0 %v618
    %2653 = vmatprep.subr.mxu0 0.0
    %2654 = vmatpush1.msra.mxu0 %v617
    %2655 = vmatprep.subr.mxu0 0.0
    %2656 = vmatpush1.msra.mxu0 %v616
    %2657 = vmatprep.subr.mxu0 0.0
    %2658 = vmatpush1.msra.mxu0 %v615
    %2659 = vmatprep.subr.mxu0 0.0
    %2660 = vmatpush1.msra.mxu0 %v614
    %2661 = vmatprep.subr.mxu0 0.0
    %2662 = vmatpush1.msra.mxu0 %v613
    %2663 = vmatprep.subr.mxu0 0.0
    %2664 = vmatpush1.msra.mxu0 %v612
    %2665 = vmatprep.subr.mxu0 0.0
    %2666 = vmatpush1.msra.mxu0 %v611
    %2667 = vmatprep.subr.mxu0 0.0
    %2668 = vmatpush1.msra.mxu0 %v610
    %2669 = vmatprep.subr.mxu0 0.0
    %2670 = vmatpush1.msra.mxu0 %v609
    %2671 = vmatprep.subr.mxu0 0.0
    %2672 = vmatpush1.msra.mxu0 %v608
    %2673 = vmatprep.subr.mxu0 0.0
    %2674 = vmatpush1.msra.mxu0 %v607
    %2675 = vmatprep.subr.mxu0 0.0
    %2676 = vmatpush1.msra.mxu0 %v606
    %2677 = vmatprep.subr.mxu0 0.0
    %2678 = vmatpush1.msra.mxu0 %v605
    %2679 = vmatprep.subr.mxu0 0.0
    %2680 = vmatpush1.msra.mxu0 %v604
    %2681 = vmatprep.subr.mxu0 0.0
    %2682 = vmatpush2.msra.mxu0 0.0
    %2683 = vmatprep.subr.mxu0 0.0
    %2684 = vmatpush2.msra.mxu0 0.0
    %2685 = vmatprep.subr.mxu0 0.0
    %2686 = vmatpush2.msra.mxu0 0.0
    %2687 = vmatprep.subr.mxu0 0.0
    %2688 = vmatpush2.msra.mxu0 0.0
    %2689 = vmatprep.subr.mxu0 0.0
    %2690 = vmatpush2.msra.mxu0 0.0
    %2691 = vmatprep.subr.mxu0 0.0
    %2692 = vmatpush2.msra.mxu0 0.0
    %2693 = vmatprep.subr.mxu0 0.0
    %2694 = vmatpush2.msra.mxu0 0.0
    %2695 = vmatprep.subr.mxu0 0.0
    %2696 = vmatpush2.msra.mxu0 0.0
    %2697 = vmatprep.subr.mxu0 0.0
    %2698 = vmatpush2.msra.mxu0 0.0
    %2699 = vmatprep.subr.mxu0 0.0
    %2700 = vmatpush2.msra.mxu0 0.0
    %2701 = vmatprep.subr.mxu0 0.0
    %2702 = vmatpush2.msra.mxu0 0.0
    %2703 = vmatprep.subr.mxu0 0.0
    %2704 = vmatpush2.msra.mxu0 0.0
    %2705 = vmatprep.subr.mxu0 0.0
    %2706 = vmatpush2.msra.mxu0 0.0
    %2707 = vmatprep.subr.mxu0 0.0
    %2708 = vmatpush2.msra.mxu0 0.0
    %2709 = vmatprep.subr.mxu0 0.0
    %2710 = vmatpush2.msra.mxu0 0.0
    %2711 = vmatprep.subr.mxu0 0.0
    %2712 = vmatpush2.msra.mxu0 0.0
    %2713 = vmatprep.mubr.f32.mxu0 0.0
    %2714 = vmatmul.mubr.f32.gmra.mxu0 %v2646
    %v2715 = vpop.f32.mrf.mxu0
    %v2716 = vadd.f32 %v1173, %v2715
    %v2717 = vpop.f32.mrf.mxu0
    %2718 = vdwg.mxu0
    %v2719 = vtanh.pop %v2716
    %v2720 = vlaneseq
    %v2721 = vshrl.u32 %v2720, 7
    %v2722 = vsub.s32 2, %v2721
    %v2723 = vrot.slane %v621, %v2722
    %v2724 = vmul.f32 %v2719, %v2723
    %v2725 = vsel %vm978, %v2724, 0.0
    %2726 = vadd.xlane.f32.xlu0 %v2725
    %v2727 = vpop.xlane.xlu0 %2726
    %s2728 = sld [smem:[#allocation3 + $0x2]]
    %v2729 = vstv %s2728
    %v2730 = vadd.f32 %v2727, %v2729
    %v2731 = vmax.f32 %v1994, %v2730
    %v2732 = vsub.f32 %v1994, %v2731
    %v2733 = vmul.f32 %v2732, 1.442695
    %v2734 = vpow.pop %v2733
    %v2735 = vsub.f32 %v2730, %v2731
    %v2736 = vmul.f32 %v2735, 1.442695
    %v2737 = vpow.pop %v2736
    %v2738 = vmul.f32 %v2002, %v2734
    %v2739 = vadd.f32 %v2738, %v2737
    %v2741 = vsel %vm978, %v2734, 0
    %2743 = vmatprep.subr.mxu0 0.0
    %2744 = vmatpush1.msra.mxu0 0.0
    %2745 = vmatprep.subr.mxu0 0.0
    %2746 = vmatpush1.msra.mxu0 0.0
    %2747 = vmatprep.subr.mxu0 0.0
    %2748 = vmatpush1.msra.mxu0 0.0
    %2749 = vmatprep.subr.mxu0 0.0
    %2750 = vmatpush1.msra.mxu0 0.0
    %2751 = vmatprep.subr.mxu0 0.0
    %2752 = vmatpush1.msra.mxu0 0.0
    %2753 = vmatprep.subr.mxu0 0.0
    %2754 = vmatpush1.msra.mxu0 0.0
    %2755 = vmatprep.subr.mxu0 0.0
    %2756 = vmatpush1.msra.mxu0 0.0
    %2757 = vmatprep.subr.mxu0 0.0
    %2758 = vmatpush1.msra.mxu0 0.0
    %2759 = vmatprep.subr.mxu0 0.0
    %2760 = vmatpush1.msra.mxu0 0.0
    %2761 = vmatprep.subr.mxu0 0.0
    %2762 = vmatpush1.msra.mxu0 0.0
    %2763 = vmatprep.subr.mxu0 0.0
    %2764 = vmatpush1.msra.mxu0 0.0
    %2765 = vmatprep.subr.mxu0 0.0
    %2766 = vmatpush1.msra.mxu0 0.0
    %2767 = vmatprep.subr.mxu0 0.0
    %2768 = vmatpush1.msra.mxu0 0.0
    %2769 = vmatprep.subr.mxu0 0.0
    %2770 = vmatpush1.msra.mxu0 0.0
    %2771 = vmatprep.subr.mxu0 0.0
    %2772 = vmatpush1.msra.mxu0 0.0
    %2773 = vmatprep.subr.mxu0 0.0
    %2774 = vmatpush1.msra.mxu0 %v2741
    %2775 = vmatprep.subr.mxu0 0.0
    %2776 = vmatpush2.msra.mxu0 0.0
    %2777 = vmatprep.subr.mxu0 0.0
    %2778 = vmatpush2.msra.mxu0 0.0
    %2779 = vmatprep.subr.mxu0 0.0
    %2780 = vmatpush2.msra.mxu0 0.0
    %2781 = vmatprep.subr.mxu0 0.0
    %2782 = vmatpush2.msra.mxu0 0.0
    %2783 = vmatprep.subr.mxu0 0.0
    %2784 = vmatpush2.msra.mxu0 0.0
    %2785 = vmatprep.subr.mxu0 0.0
    %2786 = vmatpush2.msra.mxu0 0.0
    %2787 = vmatprep.subr.mxu0 0.0
    %2788 = vmatpush2.msra.mxu0 0.0
    %2789 = vmatprep.subr.mxu0 0.0
    %2790 = vmatpush2.msra.mxu0 0.0
    %2791 = vmatprep.subr.mxu0 0.0
    %2792 = vmatpush2.msra.mxu0 0.0
    %2793 = vmatprep.subr.mxu0 0.0
    %2794 = vmatpush2.msra.mxu0 0.0
    %2795 = vmatprep.subr.mxu0 0.0
    %2796 = vmatpush2.msra.mxu0 0.0
    %2797 = vmatprep.subr.mxu0 0.0
    %2798 = vmatpush2.msra.mxu0 0.0
    %2799 = vmatprep.subr.mxu0 0.0
    %2800 = vmatpush2.msra.mxu0 0.0
    %2801 = vmatprep.subr.mxu0 0.0
    %2802 = vmatpush2.msra.mxu0 0.0
    %2803 = vmatprep.subr.mxu0 0.0
    %2804 = vmatpush2.msra.mxu0 0.0
    %2805 = vmatprep.subr.mxu0 0.0
    %2806 = vmatpush2.msra.mxu0 0.0
    %2807 = vmatprep.mubr.f32.mxu0 0.0
    %2808 = vmatmul.mubr.f32.gmra.mxu0 %v967
    %v2809 = vpop.f32.mrf.mxu0
    %v2810 = vadd.f32 0.0, %v2809
    %v2811 = vpop.f32.mrf.mxu0
    %2812 = vmatprep.mubr.f32.mxu0 0.0
    %2813 = vmatmul.mubr.f32.gmra.mxu0 %v970
    %v2814 = vpop.f32.mrf.mxu0
    %v2815 = vadd.f32 0.0, %v2814
    %v2816 = vpop.f32.mrf.mxu0
    %2817 = vmatprep.mubr.f32.mxu0 0.0
    %2818 = vmatmul.mubr.f32.gmra.mxu0 %v973
    %v2819 = vpop.f32.mrf.mxu0
    %v2820 = vadd.f32 0.0, %v2819
    %v2821 = vpop.f32.mrf.mxu0
    %2822 = vmatprep.mubr.f32.mxu0 0.0
    %2823 = vmatmul.mubr.f32.gmra.mxu0 %v976
    %v2824 = vpop.f32.mrf.mxu0
    %v2825 = vadd.f32 0.0, %v2824
    %v2826 = vpop.f32.mrf.mxu0
    %2827 = vdwg.mxu0
    %v2829 = vsel %vm978, %v2737, 0
    %2831 = vmatprep.subr.mxu0 0.0
    %2832 = vmatpush1.msra.mxu0 0.0
    %2833 = vmatprep.subr.mxu0 0.0
    %2834 = vmatpush1.msra.mxu0 0.0
    %2835 = vmatprep.subr.mxu0 0.0
    %2836 = vmatpush1.msra.mxu0 0.0
    %2837 = vmatprep.subr.mxu0 0.0
    %2838 = vmatpush1.msra.mxu0 0.0
    %2839 = vmatprep.subr.mxu0 0.0
    %2840 = vmatpush1.msra.mxu0 0.0
    %2841 = vmatprep.subr.mxu0 0.0
    %2842 = vmatpush1.msra.mxu0 0.0
    %2843 = vmatprep.subr.mxu0 0.0
    %2844 = vmatpush1.msra.mxu0 0.0
    %2845 = vmatprep.subr.mxu0 0.0
    %2846 = vmatpush1.msra.mxu0 0.0
    %2847 = vmatprep.subr.mxu0 0.0
    %2848 = vmatpush1.msra.mxu0 0.0
    %2849 = vmatprep.subr.mxu0 0.0
    %2850 = vmatpush1.msra.mxu0 0.0
    %2851 = vmatprep.subr.mxu0 0.0
    %2852 = vmatpush1.msra.mxu0 0.0
    %2853 = vmatprep.subr.mxu0 0.0
    %2854 = vmatpush1.msra.mxu0 0.0
    %2855 = vmatprep.subr.mxu0 0.0
    %2856 = vmatpush1.msra.mxu0 0.0
    %2857 = vmatprep.subr.mxu0 0.0
    %2858 = vmatpush1.msra.mxu0 0.0
    %2859 = vmatprep.subr.mxu0 0.0
    %2860 = vmatpush1.msra.mxu0 0.0
    %2861 = vmatprep.subr.mxu0 0.0
    %2862 = vmatpush1.msra.mxu0 %v2829
    %2863 = vmatprep.subr.mxu0 0.0
    %2864 = vmatpush2.msra.mxu0 0.0
    %2865 = vmatprep.subr.mxu0 0.0
    %2866 = vmatpush2.msra.mxu0 0.0
    %2867 = vmatprep.subr.mxu0 0.0
    %2868 = vmatpush2.msra.mxu0 0.0
    %2869 = vmatprep.subr.mxu0 0.0
    %2870 = vmatpush2.msra.mxu0 0.0
    %2871 = vmatprep.subr.mxu0 0.0
    %2872 = vmatpush2.msra.mxu0 0.0
    %2873 = vmatprep.subr.mxu0 0.0
    %2874 = vmatpush2.msra.mxu0 0.0
    %2875 = vmatprep.subr.mxu0 0.0
    %2876 = vmatpush2.msra.mxu0 0.0
    %2877 = vmatprep.subr.mxu0 0.0
    %2878 = vmatpush2.msra.mxu0 0.0
    %2879 = vmatprep.subr.mxu0 0.0
    %2880 = vmatpush2.msra.mxu0 0.0
    %2881 = vmatprep.subr.mxu0 0.0
    %2882 = vmatpush2.msra.mxu0 0.0
    %2883 = vmatprep.subr.mxu0 0.0
    %2884 = vmatpush2.msra.mxu0 0.0
    %2885 = vmatprep.subr.mxu0 0.0
    %2886 = vmatpush2.msra.mxu0 0.0
    %2887 = vmatprep.subr.mxu0 0.0
    %2888 = vmatpush2.msra.mxu0 0.0
    %2889 = vmatprep.subr.mxu0 0.0
    %2890 = vmatpush2.msra.mxu0 0.0
    %2891 = vmatprep.subr.mxu0 0.0
    %2892 = vmatpush2.msra.mxu0 0.0
    %2893 = vmatprep.subr.mxu0 0.0
    %2894 = vmatpush2.msra.mxu0 0.0
    %2895 = vmatprep.mubr.f32.mxu0 0.0
    %2896 = vmatmul.mubr.f32.gmra.mxu0 %v967
    %v2897 = vpop.f32.mrf.mxu0
    %v2898 = vadd.f32 0.0, %v2897
    %v2899 = vpop.f32.mrf.mxu0
    %2900 = vmatprep.mubr.f32.mxu0 0.0
    %2901 = vmatmul.mubr.f32.gmra.mxu0 %v970
    %v2902 = vpop.f32.mrf.mxu0
    %v2903 = vadd.f32 0.0, %v2902
    %v2904 = vpop.f32.mrf.mxu0
    %2905 = vmatprep.mubr.f32.mxu0 0.0
    %2906 = vmatmul.mubr.f32.gmra.mxu0 %v973
    %v2907 = vpop.f32.mrf.mxu0
    %v2908 = vadd.f32 0.0, %v2907
    %v2909 = vpop.f32.mrf.mxu0
    %2910 = vmatprep.mubr.f32.mxu0 0.0
    %2911 = vmatmul.mubr.f32.gmra.mxu0 %v976
    %v2912 = vpop.f32.mrf.mxu0
    %v2913 = vadd.f32 0.0, %v2912
    %v2914 = vpop.f32.mrf.mxu0
    %2915 = vdwg.mxu0
    %2917 = vset.pattern.permute.xlu0 0
    %2918 = vperm.xlu0 %2917, %v2810
    %v2919 = vpop.permute.xlu0 %2918
    %2922 = vset.pattern.permute.xlu0 0
    %2923 = vperm.xlu0 %2922, %v2815
    %v2924 = vpop.permute.xlu0 %2923
    %2927 = vset.pattern.permute.xlu0 0
    %2928 = vperm.xlu0 %2927, %v2820
    %v2929 = vpop.permute.xlu0 %2928
    %2932 = vset.pattern.permute.xlu0 0
    %2933 = vperm.xlu0 %2932, %v2825
    %v2934 = vpop.permute.xlu0 %2933
    %v2936 = vmul.f32 %v2227, %v2919
    %v2937 = vmul.f32 %v2228, %v2924
    %v2938 = vmul.f32 %v2229, %v2929
    %v2939 = vmul.f32 %v2230, %v2934
    %2941 = vset.pattern.permute.xlu0 0
    %2942 = vperm.xlu0 %2941, %v2898
    %v2943 = vpop.permute.xlu0 %2942
    %2946 = vset.pattern.permute.xlu0 0
    %2947 = vperm.xlu0 %2946, %v2903
    %v2948 = vpop.permute.xlu0 %2947
    %2951 = vset.pattern.permute.xlu0 0
    %2952 = vperm.xlu0 %2951, %v2908
    %v2953 = vpop.permute.xlu0 %2952
    %2956 = vset.pattern.permute.xlu0 0
    %2957 = vperm.xlu0 %2956, %v2913
    %v2958 = vpop.permute.xlu0 %2957
    %v2960 = vmul.f32 %v2231, %v2943
    %v2961 = vmul.f32 %v2232, %v2948
    %v2962 = vmul.f32 %v2233, %v2953
    %v2963 = vmul.f32 %v2234, %v2958
    %v2964 = vadd.f32 %v2936, %v2960
    %v2965 = vadd.f32 %v2937, %v2961
    %v2966 = vadd.f32 %v2938, %v2962
    %v2967 = vadd.f32 %v2939, %v2963
    %v2968 = vrcp.pop %v2739
    %v2970 = vsel %vm978, %v2968, 0
    %2972 = vmatprep.subr.mxu0 0.0
    %2973 = vmatpush1.msra.mxu0 0.0
    %2974 = vmatprep.subr.mxu0 0.0
    %2975 = vmatpush1.msra.mxu0 0.0
    %2976 = vmatprep.subr.mxu0 0.0
    %2977 = vmatpush1.msra.mxu0 0.0
    %2978 = vmatprep.subr.mxu0 0.0
    %2979 = vmatpush1.msra.mxu0 0.0
    %2980 = vmatprep.subr.mxu0 0.0
    %2981 = vmatpush1.msra.mxu0 0.0
    %2982 = vmatprep.subr.mxu0 0.0
    %2983 = vmatpush1.msra.mxu0 0.0
    %2984 = vmatprep.subr.mxu0 0.0
    %2985 = vmatpush1.msra.mxu0 0.0
    %2986 = vmatprep.subr.mxu0 0.0
    %2987 = vmatpush1.msra.mxu0 0.0
    %2988 = vmatprep.subr.mxu0 0.0
    %2989 = vmatpush1.msra.mxu0 0.0
    %2990 = vmatprep.subr.mxu0 0.0
    %2991 = vmatpush1.msra.mxu0 0.0
    %2992 = vmatprep.subr.mxu0 0.0
    %2993 = vmatpush1.msra.mxu0 0.0
    %2994 = vmatprep.subr.mxu0 0.0
    %2995 = vmatpush1.msra.mxu0 0.0
    %2996 = vmatprep.subr.mxu0 0.0
    %2997 = vmatpush1.msra.mxu0 0.0
    %2998 = vmatprep.subr.mxu0 0.0
    %2999 = vmatpush1.msra.mxu0 0.0
    %3000 = vmatprep.subr.mxu0 0.0
    %3001 = vmatpush1.msra.mxu0 0.0
    %3002 = vmatprep.subr.mxu0 0.0
    %3003 = vmatpush1.msra.mxu0 %v2970
    %3004 = vmatprep.subr.mxu0 0.0
    %3005 = vmatpush2.msra.mxu0 0.0
    %3006 = vmatprep.subr.mxu0 0.0
    %3007 = vmatpush2.msra.mxu0 0.0
    %3008 = vmatprep.subr.mxu0 0.0
    %3009 = vmatpush2.msra.mxu0 0.0
    %3010 = vmatprep.subr.mxu0 0.0
    %3011 = vmatpush2.msra.mxu0 0.0
    %3012 = vmatprep.subr.mxu0 0.0
    %3013 = vmatpush2.msra.mxu0 0.0
    %3014 = vmatprep.subr.mxu0 0.0
    %3015 = vmatpush2.msra.mxu0 0.0
    %3016 = vmatprep.subr.mxu0 0.0
    %3017 = vmatpush2.msra.mxu0 0.0
    %3018 = vmatprep.subr.mxu0 0.0
    %3019 = vmatpush2.msra.mxu0 0.0
    %3020 = vmatprep.subr.mxu0 0.0
    %3021 = vmatpush2.msra.mxu0 0.0
    %3022 = vmatprep.subr.mxu0 0.0
    %3023 = vmatpush2.msra.mxu0 0.0
    %3024 = vmatprep.subr.mxu0 0.0
    %3025 = vmatpush2.msra.mxu0 0.0
    %3026 = vmatprep.subr.mxu0 0.0
    %3027 = vmatpush2.msra.mxu0 0.0
    %3028 = vmatprep.subr.mxu0 0.0
    %3029 = vmatpush2.msra.mxu0 0.0
    %3030 = vmatprep.subr.mxu0 0.0
    %3031 = vmatpush2.msra.mxu0 0.0
    %3032 = vmatprep.subr.mxu0 0.0
    %3033 = vmatpush2.msra.mxu0 0.0
    %3034 = vmatprep.subr.mxu0 0.0
    %3035 = vmatpush2.msra.mxu0 0.0
    %3036 = vmatprep.mubr.f32.mxu0 0.0
    %3037 = vmatmul.mubr.f32.gmra.mxu0 %v967
    %v3038 = vpop.f32.mrf.mxu0
    %v3039 = vadd.f32 0.0, %v3038
    %v3040 = vpop.f32.mrf.mxu0
    %3041 = vmatprep.mubr.f32.mxu0 0.0
    %3042 = vmatmul.mubr.f32.gmra.mxu0 %v970
    %v3043 = vpop.f32.mrf.mxu0
    %v3044 = vadd.f32 0.0, %v3043
    %v3045 = vpop.f32.mrf.mxu0
    %3046 = vmatprep.mubr.f32.mxu0 0.0
    %3047 = vmatmul.mubr.f32.gmra.mxu0 %v973
    %v3048 = vpop.f32.mrf.mxu0
    %v3049 = vadd.f32 0.0, %v3048
    %v3050 = vpop.f32.mrf.mxu0
    %3051 = vmatprep.mubr.f32.mxu0 0.0
    %3052 = vmatmul.mubr.f32.gmra.mxu0 %v976
    %v3053 = vpop.f32.mrf.mxu0
    %v3054 = vadd.f32 0.0, %v3053
    %v3055 = vpop.f32.mrf.mxu0
    %3056 = vdwg.mxu0
    %3058 = vset.pattern.permute.xlu0 0
    %3059 = vperm.xlu0 %3058, %v3039
    %v3060 = vpop.permute.xlu0 %3059
    %3063 = vset.pattern.permute.xlu0 0
    %3064 = vperm.xlu0 %3063, %v3044
    %v3065 = vpop.permute.xlu0 %3064
    %3068 = vset.pattern.permute.xlu0 0
    %3069 = vperm.xlu0 %3068, %v3049
    %v3070 = vpop.permute.xlu0 %3069
    %3073 = vset.pattern.permute.xlu0 0
    %3074 = vperm.xlu0 %3073, %v3054
    %v3075 = vpop.permute.xlu0 %3074
    %v3077 = vmul.f32 %v2964, %v3060
    %v3078 = vmul.f32 %v2965, %v3065
    %v3079 = vmul.f32 %v2966, %v3070
    %v3080 = vmul.f32 %v2967, %v3075
    %v3082 = vsel %vm623, %v101, 0
    %v3085 = vsel %vm623, %v102, 0
    %3087 = vmatprep.subr.mxu0 0.0
    %3088 = vmatpush1.msra.mxu0 0.0
    %3089 = vmatprep.subr.mxu0 0.0
    %3090 = vmatpush1.msra.mxu0 0.0
    %3091 = vmatprep.subr.mxu0 0.0
    %3092 = vmatpush1.msra.mxu0 0.0
    %3093 = vmatprep.subr.mxu0 0.0
    %3094 = vmatpush1.msra.mxu0 0.0
    %3095 = vmatprep.subr.mxu0 0.0
    %3096 = vmatpush1.msra.mxu0 0.0
    %3097 = vmatprep.subr.mxu0 0.0
    %3098 = vmatpush1.msra.mxu0 0.0
    %3099 = vmatprep.subr.mxu0 0.0
    %3100 = vmatpush1.msra.mxu0 0.0
    %3101 = vmatprep.subr.mxu0 0.0
    %3102 = vmatpush1.msra.mxu0 0.0
    %3103 = vmatprep.subr.mxu0 0.0
    %3104 = vmatpush1.msra.mxu0 0.0
    %3105 = vmatprep.subr.mxu0 0.0
    %3106 = vmatpush1.msra.mxu0 0.0
    %3107 = vmatprep.subr.mxu0 0.0
    %3108 = vmatpush1.msra.mxu0 0.0
    %3109 = vmatprep.subr.mxu0 0.0
    %3110 = vmatpush1.msra.mxu0 0.0
    %3111 = vmatprep.subr.mxu0 0.0
    %3112 = vmatpush1.msra.mxu0 %v3080
    %3113 = vmatprep.subr.mxu0 0.0
    %3114 = vmatpush1.msra.mxu0 %v3079
    %3115 = vmatprep.subr.mxu0 0.0
    %3116 = vmatpush1.msra.mxu0 %v3078
    %3117 = vmatprep.subr.mxu0 0.0
    %3118 = vmatpush1.msra.mxu0 %v3077
    %3119 = vmatprep.subr.mxu0 0.0
    %3120 = vmatpush2.msra.mxu0 0.0
    %3121 = vmatprep.subr.mxu0 0.0
    %3122 = vmatpush2.msra.mxu0 0.0
    %3123 = vmatprep.subr.mxu0 0.0
    %3124 = vmatpush2.msra.mxu0 0.0
    %3125 = vmatprep.subr.mxu0 0.0
    %3126 = vmatpush2.msra.mxu0 0.0
    %3127 = vmatprep.subr.mxu0 0.0
    %3128 = vmatpush2.msra.mxu0 0.0
    %3129 = vmatprep.subr.mxu0 0.0
    %3130 = vmatpush2.msra.mxu0 0.0
    %3131 = vmatprep.subr.mxu0 0.0
    %3132 = vmatpush2.msra.mxu0 0.0
    %3133 = vmatprep.subr.mxu0 0.0
    %3134 = vmatpush2.msra.mxu0 0.0
    %3135 = vmatprep.subr.mxu0 0.0
    %3136 = vmatpush2.msra.mxu0 0.0
    %3137 = vmatprep.subr.mxu0 0.0
    %3138 = vmatpush2.msra.mxu0 0.0
    %3139 = vmatprep.subr.mxu0 0.0
    %3140 = vmatpush2.msra.mxu0 0.0
    %3141 = vmatprep.subr.mxu0 0.0
    %3142 = vmatpush2.msra.mxu0 0.0
    %3143 = vmatprep.subr.mxu0 0.0
    %3144 = vmatpush2.msra.mxu0 0.0
    %3145 = vmatprep.subr.mxu0 0.0
    %3146 = vmatpush2.msra.mxu0 0.0
    %3147 = vmatprep.subr.mxu0 0.0
    %3148 = vmatpush2.msra.mxu0 0.0
    %3149 = vmatprep.subr.mxu0 0.0
    %3150 = vmatpush2.msra.mxu0 0.0
    %3151 = vmatprep.mubr.f32.mxu0 0.0
    %3152 = vmatmul.mubr.f32.gmra.mxu0 %v3082
    %v3153 = vpop.f32.mrf.mxu0
    %v3154 = vadd.f32 0.0, %v3153
    %v3155 = vpop.f32.mrf.mxu0
    %3156 = vmatprep.mubr.f32.mxu0 0.0
    %3157 = vmatmul.mubr.f32.gmra.mxu0 %v3085
    %v3158 = vpop.f32.mrf.mxu0
    %v3159 = vadd.f32 0.0, %v3158
    %v3160 = vpop.f32.mrf.mxu0
    %3161 = vdwg.mxu0
    %v3162 = vadd.f32 %v73, %v3154
    %v3163 = vadd.f32 %v74, %v3159
    %3164 = vst [vmem:[%s18] sm:$0xff] %v3162
    %3165 = vst [vmem:[%s18 + $0x8] sm:$0xff] %v3163
    // Predicated region
    $region78: #{dmpnn_forward.2} parent=1 // pred_check
      _
    $region79: #{dmpnn_forward.2} parent=1 // pred_check_branch
      %3167 = sbr.rel (0) target = $region81
    $region80: #{dmpnn_forward.2} parent=1 // pred_region
      _
    $region81: #{dmpnn_forward.2} parent=1 // pred_fallthru
      _
    // Predicated region
    $region82: #{dmpnn_forward.2} parent=1 // pred_check
      _
    $region83: #{dmpnn_forward.2} parent=1 // pred_check_branch
      %3169 = sbr.rel (0) target = $region85
    $region84: #{dmpnn_forward.2} parent=1 // pred_region
      _
    $region85: #{dmpnn_forward.2} parent=1 // pred_fallthru
      _
    %3170 = vsyncpa [#allocation4], 1

</llo_original>
